<compile_context>
chip_gen: v5e
topology: v5e:2x2
jax: 0.10.0
libtpu: 0.0.40
codegen_flags: <defaults>
</compile_context>

<pallas_src>
import jax
import jax.numpy as jnp
from jax.experimental import pallas as pl
from jax.experimental.pallas import tpu as pltpu


def _round_up(x, m):
    return ((x + m - 1) // m) * m


def amil_kernel(n_ref,                                   # SMEM (1,) int32: valid instance count
                h_ref, w1_ref, b1_ref, wab_ref, bab_ref, # VMEM tiles / resident weights
                wc_ref, bc_ref, wp_ref, bp_ref,          # bc/bp are SMEM (1,) scalars
                risk_ref, a_col_ref,                     # outputs
                m_scr, s_scr, acc_scr):                  # VMEM scratch (online softmax)
    i = pl.program_id(0)
    tn = h_ref.shape[0]
    d2 = wc_ref.shape[-1]

    # --- init accumulators on the first grid step ----------------------------
    @pl.when(i == 0)
    def _init():
        m_scr[...] = jnp.full_like(m_scr, -1e30)   # finite "-inf" (avoids NaN in exp)
        s_scr[...] = jnp.zeros_like(s_scr)
        acc_scr[...] = jnp.zeros_like(acc_scr)

    # --- fc: relu(h @ W1 + b1) ; bf16 inputs straight to the MXU, f32 acc -----
    h1 = jnp.dot(h_ref[...], w1_ref[...],
                 preferred_element_type=jnp.float32) + b1_ref[...]
    h1 = jnp.maximum(h1, 0.0)                                        # (TN, D1) f32

    # --- gated attention: fused [Wa | Wb] matmul ------------------------------
    g = jnp.dot(h1, wab_ref[...],
                preferred_element_type=jnp.float32) + bab_ref[...]   # (TN, 2*D2)
    att = jnp.tanh(g[:, :d2]) * jax.nn.sigmoid(g[:, d2:])            # (TN, D2)

    # --- attention_c: broadcast-mul + lane reduction (no 1-column matmul) -----
    logit = jnp.sum(att * wc_ref[...], axis=-1, keepdims=True) + bc_ref[0]  # (TN, 1)
    a_col_ref[...] = logit                                           # raw pre-softmax attention

    # --- mask rows past the true bag length (zero-padded tail) ----------------
    row = i * tn + jax.lax.broadcasted_iota(jnp.int32, (tn, 1), 0)
    logit_m = jnp.where(row < n_ref[0], logit, -1e30)

    # --- online softmax + un-normalized attention pooling ---------------------
    tile_max = jnp.max(logit_m, axis=0, keepdims=True)               # (1, 1)
    m_new = jnp.maximum(m_scr[...], tile_max)
    alpha = jnp.exp(m_scr[...] - m_new)
    e = jnp.exp(logit_m - m_new)                                     # (TN, 1); masked rows -> 0
    s_scr[...] = alpha * s_scr[...] + jnp.sum(e, axis=0, keepdims=True)
    acc_scr[...] = alpha * acc_scr[...] + jnp.sum(e * h1, axis=0, keepdims=True)
    m_scr[...] = m_new

    # --- finalize on the last grid step ---------------------------------------
    @pl.when(i == pl.num_programs(0) - 1)
    def _finalize():
        m_pool = acc_scr[...] / s_scr[...]                           # (1, D1), one divide total
        risk = jnp.sum(m_pool * wp_ref[...], axis=-1, keepdims=True) + bp_ref[0]
        risk_ref[...] = risk.astype(risk_ref.dtype)


def amil_forward(h, params, *, block_n=1024):
    """Returns (risk (1,1), A_raw (1,N), results_dict {}) matching AMIL.forward defaults."""
    assert block_n % 128 == 0
    N, L = h.shape
    D1 = params["w1"].shape[1]
    D2 = params["wc"].shape[1]

    tn = min(block_n, _round_up(N, 128))
    n_pad = _round_up(N, tn)
    if n_pad != N:
        h = jnp.pad(h, ((0, n_pad - N), (0, 0)))
    n_arr = jnp.array([N], jnp.int32)

    # Fuse the two attention-branch projections into one matmul.
    wab = jnp.concatenate([params["wa"], params["wb"]], axis=1)       # (D1, 2*D2)
    bab = jnp.concatenate([params["ba"], params["bb"]], axis=1)       # (1, 2*D2)

    grid = (n_pad // tn,)

    risk, a_col = pl.pallas_call(
        amil_kernel,
        out_shape=(jax.ShapeDtypeStruct((1, 1), jnp.float32),
                   jax.ShapeDtypeStruct((n_pad, 1), jnp.float32)),
        grid=grid,
        in_specs=[
            pl.BlockSpec(memory_space=pltpu.MemorySpace.SMEM),        # n (valid rows)
            pl.BlockSpec((tn, L), lambda i: (i, 0)),                  # h tile (streamed)
            pl.BlockSpec((L, D1), lambda i: (0, 0)),                  # W1 (resident)
            pl.BlockSpec((1, D1), lambda i: (0, 0)),                  # b1
            pl.BlockSpec((D1, 2 * D2), lambda i: (0, 0)),             # [Wa|Wb]
            pl.BlockSpec((1, 2 * D2), lambda i: (0, 0)),              # [ba|bb]
            pl.BlockSpec((1, D2), lambda i: (0, 0)),                  # Wc (row form)
            pl.BlockSpec(memory_space=pltpu.MemorySpace.SMEM),        # bc scalar
            pl.BlockSpec((1, D1), lambda i: (0, 0)),                  # Wp (row form)
            pl.BlockSpec(memory_space=pltpu.MemorySpace.SMEM),        # bp scalar
        ],
        out_specs=(pl.BlockSpec((1, 1), lambda i: (0, 0)),            # risk (written last step)
                   pl.BlockSpec((tn, 1), lambda i: (i, 0))),          # raw attention per tile
        scratch_shapes=[pltpu.VMEM((1, 1), jnp.float32),              # running max
                        pltpu.VMEM((1, 1), jnp.float32),              # running sum(exp)
                        pltpu.VMEM((1, D1), jnp.float32)],            # un-normalized M
        compiler_params=pltpu.CompilerParams(
            dimension_semantics=("arbitrary",),                       # sequential reduction over N
            vmem_limit_bytes=32 * 1024 * 1024),
    )(n_arr, h, params["w1"], params["b1"], wab, bab,
      params["wc"], params["bc"], params["wp"], params["bp"])

    # Crop padding and present as (1, N) like torch.transpose(A, 1, 0).
    A_raw = a_col[:N, 0][None, :]
    return risk, A_raw, {}


def init_params(key, L, D1, D2):
    ks = jax.random.split(key, 10)
    s = 0.02
    return {
        # W1 / h are the dominant DMA traffic -> keep them bf16 (MXU accumulates f32).
        "w1": (s * jax.random.normal(ks[0], (L, D1))).astype(jnp.bfloat16),
        "b1": (0.01 * jax.random.normal(ks[1], (1, D1))).astype(jnp.float32),
        "wa": (s * jax.random.normal(ks[2], (D1, D2))).astype(jnp.float32),
        "ba": (0.01 * jax.random.normal(ks[3], (1, D2))).astype(jnp.float32),
        "wb": (s * jax.random.normal(ks[4], (D1, D2))).astype(jnp.float32),
        "bb": (0.01 * jax.random.normal(ks[5], (1, D2))).astype(jnp.float32),
        "wc": (s * jax.random.normal(ks[6], (1, D2))).astype(jnp.float32),   # Linear(D2,1), row form
        "bc": (0.01 * jax.random.normal(ks[7], (1,))).astype(jnp.float32),
        "wp": (s * jax.random.normal(ks[8], (1, D1))).astype(jnp.float32),   # Linear(D1,1), row form
        "bp": (0.01 * jax.random.normal(ks[9], (1,))).astype(jnp.float32),
    }


def amil_reference(h, p):
    h32 = h.astype(jnp.float32)
    h1 = jnp.maximum(h32 @ p["w1"].astype(jnp.float32) + p["b1"], 0.0)
    a = jnp.tanh(h1 @ p["wa"] + p["ba"])
    b = jax.nn.sigmoid(h1 @ p["wb"] + p["bb"])
    A = (a * b) @ p["wc"].T + p["bc"][0]               # (N, 1)
    A_raw = A.T                                        # (1, N)
    A_sm = jax.nn.softmax(A_raw, axis=1)
    M = A_sm @ h1                                      # (1, D1)
    risk = M @ p["wp"].T + p["bp"][0]
    return risk, A_raw


if __name__ == "__main__":
    # size_arg='tiny' -> size = [1024, 64, 32].
    L, D1, D2 = 1024, 64, 32
    N = 1000   # not a multiple of the tile -> exercises padding + tail masking

    key = jax.random.PRNGKey(0)
    k_h, k_p = jax.random.split(key)
    h = jax.random.normal(k_h, (N, L), dtype=jnp.float32).astype(jnp.bfloat16)
    params = init_params(k_p, L, D1, D2)

    # block_n=256 so the 1-D grid has 4 steps (multi-tile online softmax is exercised).
    risk, A_raw, results = amil_forward(h, params, block_n=256)
    jax.block_until_ready((risk, A_raw))

    risk_ref, A_raw_ref = amil_reference(h, params)
    assert risk.shape == (1, 1) and A_raw.shape == (1, N)
    assert jnp.allclose(risk, risk_ref, atol=1e-3, rtol=1e-3)
    assert jnp.allclose(A_raw, A_raw_ref, atol=1e-3, rtol=1e-3)

    print("KERNEL_OK")
</pallas_src>

<mosaic_0001>
module attributes {stable_mosaic.version = 11 : i64} {
  func.func @amil_kernel(%arg0: i32, %arg1: memref<1xi32, #tpu.memory_space<smem>>, %arg2: memref<256x1024xbf16, #tpu.memory_space<vmem>>, %arg3: memref<1024x64xbf16, #tpu.memory_space<vmem>>, %arg4: memref<1x64xf32, #tpu.memory_space<vmem>>, %arg5: memref<64x64xf32, #tpu.memory_space<vmem>>, %arg6: memref<1x64xf32, #tpu.memory_space<vmem>>, %arg7: memref<1x32xf32, #tpu.memory_space<vmem>>, %arg8: memref<1xf32, #tpu.memory_space<smem>>, %arg9: memref<1x64xf32, #tpu.memory_space<vmem>>, %arg10: memref<1xf32, #tpu.memory_space<smem>>, %arg11: memref<1x1xf32, #tpu.memory_space<vmem>>, %arg12: memref<256x1xf32, #tpu.memory_space<vmem>>, %arg13: memref<1x1xf32, #tpu.memory_space<vmem>>, %arg14: memref<1x1xf32, #tpu.memory_space<vmem>>, %arg15: memref<1x64xf32, #tpu.memory_space<vmem>>) attributes {dimension_semantics = [#tpu.dimension_semantics<arbitrary>], iteration_bounds = array<i64: 4>, scalar_prefetch = 0 : i64, scratch_operands = 3 : i64, tpu.core_type = #tpu.core_type<tc>, window_params = [{transform_indices = @transform_0, window_bounds = array<i64: 1>}, {transform_indices = @transform_1, window_bounds = array<i64: 256, 1024>}, {pipeline_mode = #tpu.pipeline_mode<synchronous>, transform_indices = @transform_2, window_bounds = array<i64: 1024, 64>}, {pipeline_mode = #tpu.pipeline_mode<synchronous>, transform_indices = @transform_3, window_bounds = array<i64: 1, 64>}, {pipeline_mode = #tpu.pipeline_mode<synchronous>, transform_indices = @transform_4, window_bounds = array<i64: 64, 64>}, {pipeline_mode = #tpu.pipeline_mode<synchronous>, transform_indices = @transform_5, window_bounds = array<i64: 1, 64>}, {pipeline_mode = #tpu.pipeline_mode<synchronous>, transform_indices = @transform_6, window_bounds = array<i64: 1, 32>}, {transform_indices = @transform_7, window_bounds = array<i64: 1>}, {pipeline_mode = #tpu.pipeline_mode<synchronous>, transform_indices = @transform_8, window_bounds = array<i64: 1, 64>}, {transform_indices = @transform_9, window_bounds = array<i64: 1>}, {pipeline_mode = #tpu.pipeline_mode<synchronous>, transform_indices = @transform_10, window_bounds = array<i64: 1, 1>}, {transform_indices = @transform_11, window_bounds = array<i64: 256, 1>}]} {
    %c0_i32 = arith.constant 0 : i32
    %0 = arith.cmpi eq, %arg0, %c0_i32 : i32
    %1 = arith.extui %0 : i1 to i32
    %c0_i32_0 = arith.constant 0 : i32
    %2 = arith.cmpi ne, %1, %c0_i32_0 : i32
    scf.if %2 {
      %cst_39 = arith.constant -1.000000e+30 : f32
      %72 = vector.broadcast %cst_39 : f32 to vector<1x1xf32>
      %c0_40 = arith.constant 0 : index
      %c0_41 = arith.constant 0 : index
      %73 = vector.load %arg13[%c0_40, %c0_41] : memref<1x1xf32, #tpu.memory_space<vmem>>, vector<1x1xf32>
      tpu.vector_store %arg13[%c0_40, %c0_41], %72 {strides = array<i32>} : memref<1x1xf32, #tpu.memory_space<vmem>>, vector<1x1xf32>,
      %cst_42 = arith.constant 0.000000e+00 : f32
      %74 = vector.broadcast %cst_42 : f32 to vector<1x1xf32>
      %c0_43 = arith.constant 0 : index
      %c0_44 = arith.constant 0 : index
      %75 = vector.load %arg14[%c0_43, %c0_44] : memref<1x1xf32, #tpu.memory_space<vmem>>, vector<1x1xf32>
      tpu.vector_store %arg14[%c0_43, %c0_44], %74 {strides = array<i32>} : memref<1x1xf32, #tpu.memory_space<vmem>>, vector<1x1xf32>,
      %cst_45 = arith.constant 0.000000e+00 : f32
      %76 = vector.broadcast %cst_45 : f32 to vector<1x64xf32>
      %c0_46 = arith.constant 0 : index
      %c0_47 = arith.constant 0 : index
      %77 = vector.load %arg15[%c0_46, %c0_47] : memref<1x64xf32, #tpu.memory_space<vmem>>, vector<1x64xf32>
      tpu.vector_store %arg15[%c0_46, %c0_47], %76 {strides = array<i32>} : memref<1x64xf32, #tpu.memory_space<vmem>>, vector<1x64xf32>,
    } else {
    }
    %c0 = arith.constant 0 : index
    %c0_1 = arith.constant 0 : index
    %3 = vector.load %arg2[%c0, %c0_1] : memref<256x1024xbf16, #tpu.memory_space<vmem>>, vector<256x1024xbf16>
    %c0_2 = arith.constant 0 : index
    %c0_3 = arith.constant 0 : index
    %4 = vector.load %arg3[%c0_2, %c0_3] : memref<1024x64xbf16, #tpu.memory_space<vmem>>, vector<1024x64xbf16>
    %cst = arith.constant dense<0.000000e+00> : vector<256x64xf32>
    %5 = tpu.matmul %3, %4, %cst {dimension_numbers = #tpu.dot_dimension_numbers<[1], [0], [0], [1], [0, 0, 1, 1], [], []>} : vector<256x1024xbf16>, vector<1024x64xbf16>, vector<256x64xf32> -> vector<256x64xf32>
    %c0_4 = arith.constant 0 : index
    %c0_5 = arith.constant 0 : index
    %6 = vector.load %arg4[%c0_4, %c0_5] : memref<1x64xf32, #tpu.memory_space<vmem>>, vector<1x64xf32>
    %7 = vector.broadcast %6 : vector<1x64xf32> to vector<256x64xf32>
    %8 = arith.addf %5, %7 : vector<256x64xf32>
    %cst_6 = arith.constant 0.000000e+00 : f32
    %9 = vector.broadcast %cst_6 : f32 to vector<256x64xf32>
    %10 = arith.maximumf %8, %9 : vector<256x64xf32>
    %c0_7 = arith.constant 0 : index
    %c0_8 = arith.constant 0 : index
    %11 = vector.load %arg5[%c0_7, %c0_8] : memref<64x64xf32, #tpu.memory_space<vmem>>, vector<64x64xf32>
    %cst_9 = arith.constant dense<0.000000e+00> : vector<256x64xf32>
    %12 = tpu.matmul %10, %11, %cst_9 {dimension_numbers = #tpu.dot_dimension_numbers<[1], [0], [0], [1], [0, 0, 1, 1], [], []>} : vector<256x64xf32>, vector<64x64xf32>, vector<256x64xf32> -> vector<256x64xf32>
    %c0_10 = arith.constant 0 : index
    %c0_11 = arith.constant 0 : index
    %13 = vector.load %arg6[%c0_10, %c0_11] : memref<1x64xf32, #tpu.memory_space<vmem>>, vector<1x64xf32>
    %14 = vector.broadcast %13 : vector<1x64xf32> to vector<256x64xf32>
    %15 = arith.addf %12, %14 : vector<256x64xf32>
    %16 = vector.extract_strided_slice %15 {offsets = [0, 0], sizes = [256, 32], strides = [1, 1]} : vector<256x64xf32> to vector<256x32xf32>
    %17 = math.tanh %16 : vector<256x32xf32>
    %18 = vector.extract_strided_slice %15 {offsets = [0, 32], sizes = [256, 32], strides = [1, 1]} : vector<256x64xf32> to vector<256x32xf32>
    %19 = arith.negf %18 : vector<256x32xf32>
    %20 = math.exp %19 : vector<256x32xf32>
    %cst_12 = arith.constant 1.000000e+00 : f32
    %21 = vector.broadcast %cst_12 : f32 to vector<256x32xf32>
    %22 = arith.addf %21, %20 : vector<256x32xf32>
    %23 = arith.divf %21, %22 : vector<256x32xf32>
    %24 = arith.mulf %17, %23 : vector<256x32xf32>
    %c0_13 = arith.constant 0 : index
    %c0_14 = arith.constant 0 : index
    %25 = vector.load %arg7[%c0_13, %c0_14] : memref<1x32xf32, #tpu.memory_space<vmem>>, vector<1x32xf32>
    %26 = vector.broadcast %25 : vector<1x32xf32> to vector<256x32xf32>
    %27 = arith.mulf %24, %26 : vector<256x32xf32>
    %cst_15 = arith.constant dense<0.000000e+00> : vector<256xf32>
    %28 = vector.multi_reduction <add>, %27, %cst_15 [1] : vector<256x32xf32> to vector<256xf32>
    %29 = vector.shape_cast %28 : vector<256xf32> to vector<256x1xf32>
    %c0_16 = arith.constant 0 : index
    %30 = memref.load %arg8[%c0_16] : memref<1xf32, #tpu.memory_space<smem>>
    %31 = vector.broadcast %30 : f32 to vector<256x1xf32>
    %32 = arith.addf %29, %31 : vector<256x1xf32>
    %c0_17 = arith.constant 0 : index
    %c0_18 = arith.constant 0 : index
    %33 = vector.load %arg12[%c0_17, %c0_18] : memref<256x1xf32, #tpu.memory_space<vmem>>, vector<256x1xf32>
    tpu.vector_store %arg12[%c0_17, %c0_18], %32 {strides = array<i32>} : memref<256x1xf32, #tpu.memory_space<vmem>>, vector<256x1xf32>,
    %c256_i32 = arith.constant 256 : i32
    %34 = arith.muli %arg0, %c256_i32 : i32
    %35 = tpu.iota {dimensions = array<i32: 0>} : vector<256x1xi32>
    %36 = vector.broadcast %34 : i32 to vector<256x1xi32>
    %37 = arith.addi %36, %35 : vector<256x1xi32>
    %c0_19 = arith.constant 0 : index
    %38 = memref.load %arg1[%c0_19] : memref<1xi32, #tpu.memory_space<smem>>
    %39 = vector.broadcast %38 : i32 to vector<256x1xi32>
    %40 = arith.cmpi slt, %37, %39 : vector<256x1xi32>
    %cst_20 = arith.constant -1.000000e+30 : f32
    %41 = vector.broadcast %cst_20 : f32 to vector<256x1xf32>
    %42 = arith.select %40, %32, %41 : vector<256x1xi1>, vector<256x1xf32>
    %cst_21 = arith.constant dense<0xFF800000> : vector<1xf32>
    %43 = vector.multi_reduction <maximumf>, %42, %cst_21 [0] : vector<256x1xf32> to vector<1xf32>
    %44 = vector.shape_cast %43 : vector<1xf32> to vector<1x1xf32>
    %c0_22 = arith.constant 0 : index
    %c0_23 = arith.constant 0 : index
    %45 = vector.load %arg13[%c0_22, %c0_23] : memref<1x1xf32, #tpu.memory_space<vmem>>, vector<1x1xf32>
    %46 = arith.maximumf %45, %44 : vector<1x1xf32>
    %c0_24 = arith.constant 0 : index
    %c0_25 = arith.constant 0 : index
    %47 = vector.load %arg13[%c0_24, %c0_25] : memref<1x1xf32, #tpu.memory_space<vmem>>, vector<1x1xf32>
    %48 = arith.subf %47, %46 : vector<1x1xf32>
    %49 = math.exp %48 : vector<1x1xf32>
    %50 = vector.broadcast %46 : vector<1x1xf32> to vector<256x1xf32>
    %51 = arith.subf %42, %50 : vector<256x1xf32>
    %52 = math.exp %51 : vector<256x1xf32>
    %c0_26 = arith.constant 0 : index
    %c0_27 = arith.constant 0 : index
    %53 = vector.load %arg14[%c0_26, %c0_27] : memref<1x1xf32, #tpu.memory_space<vmem>>, vector<1x1xf32>
    %54 = arith.mulf %49, %53 : vector<1x1xf32>
    %cst_28 = arith.constant dense<0.000000e+00> : vector<1xf32>
    %55 = vector.multi_reduction <add>, %52, %cst_28 [0] : vector<256x1xf32> to vector<1xf32>
    %56 = vector.shape_cast %55 : vector<1xf32> to vector<1x1xf32>
    %57 = arith.addf %54, %56 : vector<1x1xf32>
    %c0_29 = arith.constant 0 : index
    %c0_30 = arith.constant 0 : index
    %58 = vector.load %arg14[%c0_29, %c0_30] : memref<1x1xf32, #tpu.memory_space<vmem>>, vector<1x1xf32>
    tpu.vector_store %arg14[%c0_29, %c0_30], %57 {strides = array<i32>} : memref<1x1xf32, #tpu.memory_space<vmem>>, vector<1x1xf32>,
    %c0_31 = arith.constant 0 : index
    %c0_32 = arith.constant 0 : index
    %59 = vector.load %arg15[%c0_31, %c0_32] : memref<1x64xf32, #tpu.memory_space<vmem>>, vector<1x64xf32>
    %60 = vector.broadcast %49 : vector<1x1xf32> to vector<1x64xf32>
    %61 = arith.mulf %60, %59 : vector<1x64xf32>
    %62 = vector.broadcast %52 : vector<256x1xf32> to vector<256x64xf32>
    %63 = arith.mulf %62, %10 : vector<256x64xf32>
    %cst_33 = arith.constant dense<0.000000e+00> : vector<64xf32>
    %64 = vector.multi_reduction <add>, %63, %cst_33 [0] : vector<256x64xf32> to vector<64xf32>
    %65 = vector.shape_cast %64 : vector<64xf32> to vector<1x64xf32>
    %66 = arith.addf %61, %65 : vector<1x64xf32>
    %c0_34 = arith.constant 0 : index
    %c0_35 = arith.constant 0 : index
    %67 = vector.load %arg15[%c0_34, %c0_35] : memref<1x64xf32, #tpu.memory_space<vmem>>, vector<1x64xf32>
    tpu.vector_store %arg15[%c0_34, %c0_35], %66 {strides = array<i32>} : memref<1x64xf32, #tpu.memory_space<vmem>>, vector<1x64xf32>,
    %c0_36 = arith.constant 0 : index
    %c0_37 = arith.constant 0 : index
    %68 = vector.load %arg13[%c0_36, %c0_37] : memref<1x1xf32, #tpu.memory_space<vmem>>, vector<1x1xf32>
    tpu.vector_store %arg13[%c0_36, %c0_37], %46 {strides = array<i32>} : memref<1x1xf32, #tpu.memory_space<vmem>>, vector<1x1xf32>,
    %c3_i32 = arith.constant 3 : i32
    %69 = arith.cmpi eq, %arg0, %c3_i32 : i32
    %70 = arith.extui %69 : i1 to i32
    %c0_i32_38 = arith.constant 0 : i32
    %71 = arith.cmpi ne, %70, %c0_i32_38 : i32
    scf.if %71 {
      %c0_39 = arith.constant 0 : index
      %c0_40 = arith.constant 0 : index
      %72 = vector.load %arg15[%c0_39, %c0_40] : memref<1x64xf32, #tpu.memory_space<vmem>>, vector<1x64xf32>
      %c0_41 = arith.constant 0 : index
      %c0_42 = arith.constant 0 : index
      %73 = vector.load %arg14[%c0_41, %c0_42] : memref<1x1xf32, #tpu.memory_space<vmem>>, vector<1x1xf32>
      %74 = vector.broadcast %73 : vector<1x1xf32> to vector<1x64xf32>
      %75 = arith.divf %72, %74 : vector<1x64xf32>
      %c0_43 = arith.constant 0 : index
      %c0_44 = arith.constant 0 : index
      %76 = vector.load %arg9[%c0_43, %c0_44] : memref<1x64xf32, #tpu.memory_space<vmem>>, vector<1x64xf32>
      %77 = arith.mulf %75, %76 : vector<1x64xf32>
      %cst_45 = arith.constant dense<0.000000e+00> : vector<1xf32>
      %78 = vector.multi_reduction <add>, %77, %cst_45 [1] : vector<1x64xf32> to vector<1xf32>
      %79 = vector.shape_cast %78 : vector<1xf32> to vector<1x1xf32>
      %c0_46 = arith.constant 0 : index
      %80 = memref.load %arg10[%c0_46] : memref<1xf32, #tpu.memory_space<smem>>
      %81 = vector.broadcast %80 : f32 to vector<1x1xf32>
      %82 = arith.addf %79, %81 : vector<1x1xf32>
      %c0_47 = arith.constant 0 : index
      %c0_48 = arith.constant 0 : index
      %83 = vector.load %arg11[%c0_47, %c0_48] : memref<1x1xf32, #tpu.memory_space<vmem>>, vector<1x1xf32>
      tpu.vector_store %arg11[%c0_47, %c0_48], %82 {strides = array<i32>} : memref<1x1xf32, #tpu.memory_space<vmem>>, vector<1x1xf32>,
    } else {
    }
    return
  }
  func.func @transform_0(%arg0: i32) -> i32 {
    %c0_i32 = arith.constant 0 : i32
    %c0_i32_0 = arith.constant 0 : i32
    return %c0_i32 : i32
  }
  func.func @transform_1(%arg0: i32) -> (i32, i32) {
    %c0_i32 = arith.constant 0 : i32
    %c0_i32_0 = arith.constant 0 : i32
    return %arg0, %c0_i32 : i32, i32
  }
  func.func @transform_2(%arg0: i32) -> (i32, i32) {
    %c0_i32 = arith.constant 0 : i32
    %c0_i32_0 = arith.constant 0 : i32
    %c0_i32_1 = arith.constant 0 : i32
    return %c0_i32, %c0_i32_0 : i32, i32
  }
  func.func @transform_3(%arg0: i32) -> (i32, i32) {
    %c0_i32 = arith.constant 0 : i32
    %c0_i32_0 = arith.constant 0 : i32
    %c0_i32_1 = arith.constant 0 : i32
    return %c0_i32, %c0_i32_0 : i32, i32
  }
  func.func @transform_4(%arg0: i32) -> (i32, i32) {
    %c0_i32 = arith.constant 0 : i32
    %c0_i32_0 = arith.constant 0 : i32
    %c0_i32_1 = arith.constant 0 : i32
    return %c0_i32, %c0_i32_0 : i32, i32
  }
  func.func @transform_5(%arg0: i32) -> (i32, i32) {
    %c0_i32 = arith.constant 0 : i32
    %c0_i32_0 = arith.constant 0 : i32
    %c0_i32_1 = arith.constant 0 : i32
    return %c0_i32, %c0_i32_0 : i32, i32
  }
  func.func @transform_6(%arg0: i32) -> (i32, i32) {
    %c0_i32 = arith.constant 0 : i32
    %c0_i32_0 = arith.constant 0 : i32
    %c0_i32_1 = arith.constant 0 : i32
    return %c0_i32, %c0_i32_0 : i32, i32
  }
  func.func @transform_7(%arg0: i32) -> i32 {
    %c0_i32 = arith.constant 0 : i32
    %c0_i32_0 = arith.constant 0 : i32
    return %c0_i32 : i32
  }
  func.func @transform_8(%arg0: i32) -> (i32, i32) {
    %c0_i32 = arith.constant 0 : i32
    %c0_i32_0 = arith.constant 0 : i32
    %c0_i32_1 = arith.constant 0 : i32
    return %c0_i32, %c0_i32_0 : i32, i32
  }
  func.func @transform_9(%arg0: i32) -> i32 {
    %c0_i32 = arith.constant 0 : i32
    %c0_i32_0 = arith.constant 0 : i32
    return %c0_i32 : i32
  }
  func.func @transform_10(%arg0: i32) -> (i32, i32) {
    %c0_i32 = arith.constant 0 : i32
    %c0_i32_0 = arith.constant 0 : i32
    %c0_i32_1 = arith.constant 0 : i32
    return %c0_i32, %c0_i32_0 : i32, i32
  }
  func.func @transform_11(%arg0: i32) -> (i32, i32) {
    %c0_i32 = arith.constant 0 : i32
    %c0_i32_0 = arith.constant 0 : i32
    return %arg0, %c0_i32 : i32, i32
  }
}

</mosaic_0001>

<llo_original>
// kernel: tpu_custom_call.1
$region0: #{tpu_custom_call.1}
  #allocation0 [shape = 'u32[]', space=smem, size = 0x4, offset = 0x4, fixed_abs, tag = 'smem constant byte address 0x4 - core index']
  #allocation1 [shape = 'u32[72,128]{1,0:T(1,128)}', space=vmem, size = 0x9000, scoped, tag = 'internal scratch']
  #allocation2 [shape = 'f32[1,1]{1,0:T(1,128)}', space=vmem, size = 0x200, scoped, tag = 'scratch operand']
  #allocation3 [shape = 'f32[1,1]{1,0:T(1,128)}', space=vmem, size = 0x200, scoped, tag = 'scratch operand']
  #allocation4 [shape = 'f32[1,64]{1,0:T(1,128)}', space=vmem, size = 0x200, scoped, tag = 'scratch operand']
  #allocation5 [shape = 's32[1]{0:T(128)S(6)}', space=smem, size = 0x200, scoped, tag = 'scoped memory for tpu_custom_call.1']
  #allocation6 [shape = 'f32[1]{0:T(128)S(6)}', space=smem, size = 0x200, scoped, tag = 'scoped memory for tpu_custom_call.1']
  #allocation7 [shape = 'f32[1]{0:T(128)S(6)}', space=smem, size = 0x200, scoped, tag = 'scoped memory for tpu_custom_call.1']
  %s0 = inlined_call_operand.<no memory space> [shape: s32[1], index: 0, kind: input, shape index: {}]
  %s1 = inlined_call_operand.hbm [shape: bf16[1024,1024], index: 1, kind: input, shape index: {}]
  %s2 = inlined_call_operand.vmem [shape: bf16[1024,64], index: 2, kind: input, shape index: {}]
  %s3 = inlined_call_operand.hbm [shape: f32[1,64], index: 3, kind: input, shape index: {}]
  %s4 = inlined_call_operand.hbm [shape: f32[64,64], index: 4, kind: input, shape index: {}]
  %s5 = inlined_call_operand.hbm [shape: f32[1,64], index: 5, kind: input, shape index: {}]
  %s6 = inlined_call_operand.hbm [shape: f32[1,32], index: 6, kind: input, shape index: {}]
  %s7 = inlined_call_operand.<no memory space> [shape: f32[1], index: 7, kind: input, shape index: {}]
  %s8 = inlined_call_operand.hbm [shape: f32[1,64], index: 8, kind: input, shape index: {}]
  %s9 = inlined_call_operand.<no memory space> [shape: f32[1], index: 9, kind: input, shape index: {}]
  %s10 = inlined_call_operand.hbm [shape: f32[1,1], index: 10, kind: output, shape index: {0}]
  %s11 = inlined_call_operand.vmem [shape: f32[1024,1], index: 11, kind: output, shape index: {1}]
  %12 = xla_tuple %s10, %s11
  %s13 = sld [smem:[#allocation0]]
  $region113: #{tpu_custom_call.1} parent=0
    _
  %s15 = ssub.s32 1, %s13
  %s16 = scalar_select 0, %s15, %s13
  %17 = sst [smem:[#allocation5]] %s0
  %18 = sst [smem:[#allocation6]] %s7
  %19 = sst [smem:[#allocation7]] %s9
  $region1: #{tpu_custom_call.1} parent=0
    #allocation8 [shape = 'u8[1048576]{0}', space=vmem, size = 0x100000, scoped, tag = 'input window, operand 1']
    #allocation9 [shape = 's32[2]{0}', space=sflag, size = 0x8, scoped, tag = 'scoped memory for tpu_custom_call.1']
    #allocation10 [shape = 's32[2]{0}', space=sflag, size = 0x8, scoped, tag = 'scoped memory for tpu_custom_call.1']
    #allocation11 [shape = 'u8[512]{0}', space=vmem, size = 0x400, scoped, tag = 'input window, operand 3, single buffered']
    #allocation12 [shape = 's32[1]{0}', space=sflag, size = 0x4, scoped, tag = 'scoped memory for tpu_custom_call.1']
    #allocation13 [shape = 'u8[32768]{0}', space=vmem, size = 0x8000, scoped, tag = 'input window, operand 4, single buffered']
    #allocation14 [shape = 'u8[512]{0}', space=vmem, size = 0x400, scoped, tag = 'input window, operand 5, single buffered']
    #allocation15 [shape = 's32[1]{0}', space=sflag, size = 0x4, scoped, tag = 'scoped memory for tpu_custom_call.1']
    #allocation16 [shape = 'u8[512]{0}', space=vmem, size = 0x400, scoped, tag = 'input window, operand 6, single buffered']
    #allocation17 [shape = 'u8[512]{0}', space=vmem, size = 0x400, scoped, tag = 'input window, operand 8, single buffered']
    #allocation18 [shape = 's32[1]{0}', space=sflag, size = 0x4, scoped, tag = 'scoped memory for tpu_custom_call.1']
    #allocation19 [shape = 'u8[512]{0}', space=vmem, size = 0x400, scoped, tag = 'output window, operand 0, single buffered']
    %20 = vsyncpa [#allocation9], 0
    %s21 = scalar_lea.sflag [#allocation9], 1
    %22 = vsyncpa %s21, 0
    %23 = vsyncpa [#allocation12], 0
    %24 = vsyncpa [#allocation15], 0
    %25 = vsyncpa [#allocation18], 0
    %26 = vsyncpa [#allocation10], 0
    loop: start=0, step=1, limit=6
    $region2: #{tpu_custom_call.1} parent=1 // loop_pre_header
      _
    $region3: #{tpu_custom_call.1} parent=1 // loop_header
      %s28 = sphi 0, %s32
      %p29 = scmp.ge.s32.totalorder %s28, 6
      %s36 = sphi 0, %s36
      %s38 = sphi 0, %s36
      %s39 = sphi 0, %s38
      %s53 = sphi 0, %s39
      %s59 = sphi 0, %s61
      %s62 = sphi 0, %s59
      %s63 = sphi 0, %s62
      %s79 = sphi 0, %s63
      %s83 = sphi 0, %s83
      %s85 = sphi 0, %s83
      %s86 = sphi 0, %s85
      %s100 = sphi 0, %s86
      %s104 = sphi 0, %s104
      %s106 = sphi 0, %s104
      %s107 = sphi 0, %s106
      %s121 = sphi 0, %s107
      %s125 = sphi 0, %s125
      %s127 = sphi 0, %s125
      %s128 = sphi 0, %s127
      %s142 = sphi 0, %s128
      %s146 = sphi 0, %s146
      %s148 = sphi 0, %s146
      %s149 = sphi 0, %s148
      %s163 = sphi 0, %s149
      %s167 = sphi 0, %s167
      %s169 = sphi 0, %s167
      %s170 = sphi 0, %s169
      %s184 = sphi 0, %s170
      %s188 = sphi 0, %s188
      %s190 = sphi 0, %s188
      %s191 = sphi 0, %s190
      %s205 = sphi 0, %s191
      %s209 = sphi 0, %s209
      %s211 = sphi 0, %s209
      %s212 = sphi 0, %s211
      %s226 = sphi 0, %s212
      %s230 = sphi 0, %s230
      %s232 = sphi 0, %s230
      %s233 = sphi 0, %s232
      %s247 = sphi 0, %s233
      %s251 = sphi 0, %s251
      %s253 = sphi 0, %s251
      %s254 = sphi 0, %s253
      %s268 = sphi 0, %s254
      %s274 = sphi 0, %s276
      %s277 = sphi 0, %s274
      %s278 = sphi 0, %s277
      %s294 = sphi 0, %s278
    $region4: #{tpu_custom_call.1} parent=1 // loop_header_branch
      %31 = sbr.rel (%p29) target = $region8
    $region5: #{tpu_custom_call.1} parent=1 // loop_body
      %s33 = ssub.s32 %s28, 1
      %s34 = ssub.s32 %s28, 2
      %s35 = sadd.s32 %s28, 1
      %s37 = sadd.s32 %s36, 1
      %p40 = scmp.eq.s32.totalorder %s28, 3
      %p41 = scmp.ne.s32.totalorder %s36, %s38
      %p42 = scmp.eq.s32.totalorder %s28, 0
      %p43 = por %p41, %p42
      %p44 = scmp.ne.s32.totalorder %s36, %s38
      %p45 = scmp.eq.s32.totalorder %s33, 3
      %p46 = por %p44, %p45
      %p47 = scmp.ne.s32.totalorder %s38, %s39
      %p48 = scmp.eq.s32.totalorder %s33, 0
      %p49 = por %p47, %p48
      %p50 = scmp.ne.s32.totalorder %s38, %s39
      %p51 = scmp.eq.s32.totalorder %s34, 3
      %p52 = por %p50, %p51
      %p54 = scmp.ne.s32.totalorder %s39, %s53
      %p55 = scmp.eq.s32.totalorder %s34, 0
      %p56 = por %p54, %p55
      %s57 = ssub.s32 %s28, %s35
      %p58 = scmp.eq.s32.totalorder %s57, 0
      %s60 = sadd.s32 %s59, 1
      %s61 = scalar_select %p58, %s59, %s60
      %p64 = pneg %p58
      %p65 = scmp.eq.s32.totalorder %s28, 3
      %p66 = por %p64, %p65
      %p67 = scmp.ne.s32.totalorder %s59, %s62
      %p68 = scmp.eq.s32.totalorder %s28, 0
      %p69 = por %p67, %p68
      %p70 = scmp.ne.s32.totalorder %s59, %s62
      %p71 = scmp.eq.s32.totalorder %s33, 3
      %p72 = por %p70, %p71
      %p73 = scmp.ne.s32.totalorder %s62, %s63
      %p74 = scmp.eq.s32.totalorder %s33, 0
      %p75 = por %p73, %p74
      %p76 = scmp.ne.s32.totalorder %s62, %s63
      %p77 = scmp.eq.s32.totalorder %s34, 3
      %p78 = por %p76, %p77
      %p80 = scmp.ne.s32.totalorder %s63, %s79
      %p81 = scmp.eq.s32.totalorder %s34, 0
      %p82 = por %p80, %p81
      %s84 = sadd.s32 %s83, 1
      %p87 = scmp.eq.s32.totalorder %s28, 3
      %p88 = scmp.ne.s32.totalorder %s83, %s85
      %p89 = scmp.eq.s32.totalorder %s28, 0
      %p90 = por %p88, %p89
      %p91 = scmp.ne.s32.totalorder %s83, %s85
      %p92 = scmp.eq.s32.totalorder %s33, 3
      %p93 = por %p91, %p92
      %p94 = scmp.ne.s32.totalorder %s85, %s86
      %p95 = scmp.eq.s32.totalorder %s33, 0
      %p96 = por %p94, %p95
      %p97 = scmp.ne.s32.totalorder %s85, %s86
      %p98 = scmp.eq.s32.totalorder %s34, 3
      %p99 = por %p97, %p98
      %p101 = scmp.ne.s32.totalorder %s86, %s100
      %p102 = scmp.eq.s32.totalorder %s34, 0
      %p103 = por %p101, %p102
      %s105 = sadd.s32 %s104, 1
      %p108 = scmp.eq.s32.totalorder %s28, 3
      %p109 = scmp.ne.s32.totalorder %s104, %s106
      %p110 = scmp.eq.s32.totalorder %s28, 0
      %p111 = por %p109, %p110
      %p112 = scmp.ne.s32.totalorder %s104, %s106
      %p113 = scmp.eq.s32.totalorder %s33, 3
      %p114 = por %p112, %p113
      %p115 = scmp.ne.s32.totalorder %s106, %s107
      %p116 = scmp.eq.s32.totalorder %s33, 0
      %p117 = por %p115, %p116
      %p118 = scmp.ne.s32.totalorder %s106, %s107
      %p119 = scmp.eq.s32.totalorder %s34, 3
      %p120 = por %p118, %p119
      %p122 = scmp.ne.s32.totalorder %s107, %s121
      %p123 = scmp.eq.s32.totalorder %s34, 0
      %p124 = por %p122, %p123
      %s126 = sadd.s32 %s125, 1
      %p129 = scmp.eq.s32.totalorder %s28, 3
      %p130 = scmp.ne.s32.totalorder %s125, %s127
      %p131 = scmp.eq.s32.totalorder %s28, 0
      %p132 = por %p130, %p131
      %p133 = scmp.ne.s32.totalorder %s125, %s127
      %p134 = scmp.eq.s32.totalorder %s33, 3
      %p135 = por %p133, %p134
      %p136 = scmp.ne.s32.totalorder %s127, %s128
      %p137 = scmp.eq.s32.totalorder %s33, 0
      %p138 = por %p136, %p137
      %p139 = scmp.ne.s32.totalorder %s127, %s128
      %p140 = scmp.eq.s32.totalorder %s34, 3
      %p141 = por %p139, %p140
      %p143 = scmp.ne.s32.totalorder %s128, %s142
      %p144 = scmp.eq.s32.totalorder %s34, 0
      %p145 = por %p143, %p144
      %s147 = sadd.s32 %s146, 1
      %p150 = scmp.eq.s32.totalorder %s28, 3
      %p151 = scmp.ne.s32.totalorder %s146, %s148
      %p152 = scmp.eq.s32.totalorder %s28, 0
      %p153 = por %p151, %p152
      %p154 = scmp.ne.s32.totalorder %s146, %s148
      %p155 = scmp.eq.s32.totalorder %s33, 3
      %p156 = por %p154, %p155
      %p157 = scmp.ne.s32.totalorder %s148, %s149
      %p158 = scmp.eq.s32.totalorder %s33, 0
      %p159 = por %p157, %p158
      %p160 = scmp.ne.s32.totalorder %s148, %s149
      %p161 = scmp.eq.s32.totalorder %s34, 3
      %p162 = por %p160, %p161
      %p164 = scmp.ne.s32.totalorder %s149, %s163
      %p165 = scmp.eq.s32.totalorder %s34, 0
      %p166 = por %p164, %p165
      %s168 = sadd.s32 %s167, 1
      %p171 = scmp.eq.s32.totalorder %s28, 3
      %p172 = scmp.ne.s32.totalorder %s167, %s169
      %p173 = scmp.eq.s32.totalorder %s28, 0
      %p174 = por %p172, %p173
      %p175 = scmp.ne.s32.totalorder %s167, %s169
      %p176 = scmp.eq.s32.totalorder %s33, 3
      %p177 = por %p175, %p176
      %p178 = scmp.ne.s32.totalorder %s169, %s170
      %p179 = scmp.eq.s32.totalorder %s33, 0
      %p180 = por %p178, %p179
      %p181 = scmp.ne.s32.totalorder %s169, %s170
      %p182 = scmp.eq.s32.totalorder %s34, 3
      %p183 = por %p181, %p182
      %p185 = scmp.ne.s32.totalorder %s170, %s184
      %p186 = scmp.eq.s32.totalorder %s34, 0
      %p187 = por %p185, %p186
      %s189 = sadd.s32 %s188, 1
      %p192 = scmp.eq.s32.totalorder %s28, 3
      %p193 = scmp.ne.s32.totalorder %s188, %s190
      %p194 = scmp.eq.s32.totalorder %s28, 0
      %p195 = por %p193, %p194
      %p196 = scmp.ne.s32.totalorder %s188, %s190
      %p197 = scmp.eq.s32.totalorder %s33, 3
      %p198 = por %p196, %p197
      %p199 = scmp.ne.s32.totalorder %s190, %s191
      %p200 = scmp.eq.s32.totalorder %s33, 0
      %p201 = por %p199, %p200
      %p202 = scmp.ne.s32.totalorder %s190, %s191
      %p203 = scmp.eq.s32.totalorder %s34, 3
      %p204 = por %p202, %p203
      %p206 = scmp.ne.s32.totalorder %s191, %s205
      %p207 = scmp.eq.s32.totalorder %s34, 0
      %p208 = por %p206, %p207
      %s210 = sadd.s32 %s209, 1
      %p213 = scmp.eq.s32.totalorder %s28, 3
      %p214 = scmp.ne.s32.totalorder %s209, %s211
      %p215 = scmp.eq.s32.totalorder %s28, 0
      %p216 = por %p214, %p215
      %p217 = scmp.ne.s32.totalorder %s209, %s211
      %p218 = scmp.eq.s32.totalorder %s33, 3
      %p219 = por %p217, %p218
      %p220 = scmp.ne.s32.totalorder %s211, %s212
      %p221 = scmp.eq.s32.totalorder %s33, 0
      %p222 = por %p220, %p221
      %p223 = scmp.ne.s32.totalorder %s211, %s212
      %p224 = scmp.eq.s32.totalorder %s34, 3
      %p225 = por %p223, %p224
      %p227 = scmp.ne.s32.totalorder %s212, %s226
      %p228 = scmp.eq.s32.totalorder %s34, 0
      %p229 = por %p227, %p228
      %s231 = sadd.s32 %s230, 1
      %p234 = scmp.eq.s32.totalorder %s28, 3
      %p235 = scmp.ne.s32.totalorder %s230, %s232
      %p236 = scmp.eq.s32.totalorder %s28, 0
      %p237 = por %p235, %p236
      %p238 = scmp.ne.s32.totalorder %s230, %s232
      %p239 = scmp.eq.s32.totalorder %s33, 3
      %p240 = por %p238, %p239
      %p241 = scmp.ne.s32.totalorder %s232, %s233
      %p242 = scmp.eq.s32.totalorder %s33, 0
      %p243 = por %p241, %p242
      %p244 = scmp.ne.s32.totalorder %s232, %s233
      %p245 = scmp.eq.s32.totalorder %s34, 3
      %p246 = por %p244, %p245
      %p248 = scmp.ne.s32.totalorder %s233, %s247
      %p249 = scmp.eq.s32.totalorder %s34, 0
      %p250 = por %p248, %p249
      %s252 = sadd.s32 %s251, 1
      %p255 = scmp.eq.s32.totalorder %s28, 3
      %p256 = scmp.ne.s32.totalorder %s251, %s253
      %p257 = scmp.eq.s32.totalorder %s28, 0
      %p258 = por %p256, %p257
      %p259 = scmp.ne.s32.totalorder %s251, %s253
      %p260 = scmp.eq.s32.totalorder %s33, 3
      %p261 = por %p259, %p260
      %p262 = scmp.ne.s32.totalorder %s253, %s254
      %p263 = scmp.eq.s32.totalorder %s33, 0
      %p264 = por %p262, %p263
      %p265 = scmp.ne.s32.totalorder %s253, %s254
      %p266 = scmp.eq.s32.totalorder %s34, 3
      %p267 = por %p265, %p266
      %p269 = scmp.ne.s32.totalorder %s254, %s268
      %p270 = scmp.eq.s32.totalorder %s34, 0
      %p271 = por %p269, %p270
      %s272 = ssub.s32 %s28, %s35
      %p273 = scmp.eq.s32.totalorder %s272, 0
      %s275 = sadd.s32 %s274, 1
      %s276 = scalar_select %p273, %s274, %s275
      %p279 = pneg %p273
      %p280 = scmp.eq.s32.totalorder %s28, 3
      %p281 = por %p279, %p280
      %p282 = scmp.ne.s32.totalorder %s274, %s277
      %p283 = scmp.eq.s32.totalorder %s28, 0
      %p284 = por %p282, %p283
      %p285 = scmp.ne.s32.totalorder %s274, %s277
      %p286 = scmp.eq.s32.totalorder %s33, 3
      %p287 = por %p285, %p286
      %p288 = scmp.ne.s32.totalorder %s277, %s278
      %p289 = scmp.eq.s32.totalorder %s33, 0
      %p290 = por %p288, %p289
      %p291 = scmp.ne.s32.totalorder %s277, %s278
      %p292 = scmp.eq.s32.totalorder %s34, 3
      %p293 = por %p291, %p292
      %p295 = scmp.ne.s32.totalorder %s278, %s294
      %p296 = scmp.eq.s32.totalorder %s34, 0
      %p297 = por %p295, %p296
      %p298 = scmp.le.s32.totalorder 1, %s28
      %p299 = scmp.lt.s32.totalorder %s28, 5
      %p300 = pnand %p298, %p299
      %p301 = pneg %p300
      // Predicated region
      $region9: #{tpu_custom_call.1} parent=5 // pred_check
        _
      $region10: #{tpu_custom_call.1} parent=5 // pred_check_branch
        %303 = sbr.rel (%p300) target = $region12
      $region11: #{tpu_custom_call.1} parent=5 // pred_region
        %s304 = ssub.s32 %s28, 1
        // Predicated region
        $region13: #{tpu_custom_call.1} parent=11 // pred_check
          %p305 = pneg %p49
        $region14: #{tpu_custom_call.1} parent=11 // pred_check_branch
          %307 = sbr.rel (%p305) target = $region16
        $region15: #{tpu_custom_call.1} parent=11 // pred_region
          _
        $region16: #{tpu_custom_call.1} parent=11 // pred_fallthru
          _
        // Predicated region
        $region17: #{tpu_custom_call.1} parent=11 // pred_check
          %p308 = pneg %p96
        $region18: #{tpu_custom_call.1} parent=11 // pred_check_branch
          %310 = sbr.rel (%p308) target = $region20
        $region19: #{tpu_custom_call.1} parent=11 // pred_region
          _
        $region20: #{tpu_custom_call.1} parent=11 // pred_fallthru
          _
        // Predicated region
        $region21: #{tpu_custom_call.1} parent=11 // pred_check
          %p311 = pneg %p117
        $region22: #{tpu_custom_call.1} parent=11 // pred_check_branch
          %313 = sbr.rel (%p311) target = $region24
        $region23: #{tpu_custom_call.1} parent=11 // pred_region
          %315 = vsyncadd [#allocation12], 0
          %s317 = sshll.u32 %s3, 4
          %s318 = int_to_ptr.hbm [resolvable:$true] %s317
          %s319 = sshll.u32 [#allocation11], 4
          %s320 = int_to_ptr.vmem [resolvable:$true] %s319
          %322 = dma.hbm_to_vmem [thread:$0]  %s318, 16, %s320, [#allocation12]
        $region24: #{tpu_custom_call.1} parent=11 // pred_fallthru
          _
        // Predicated region
        $region25: #{tpu_custom_call.1} parent=11 // pred_check
          %p323 = pneg %p138
        $region26: #{tpu_custom_call.1} parent=11 // pred_check_branch
          %325 = sbr.rel (%p323) target = $region28
        $region27: #{tpu_custom_call.1} parent=11 // pred_region
          %327 = vsyncadd [#allocation12], 0
          %s328 = sshll.u32 %s4, 4
          %s329 = int_to_ptr.hbm [resolvable:$true] %s328
          %s330 = sshll.u32 [#allocation13], 4
          %s331 = int_to_ptr.vmem [resolvable:$true] %s330
          %336 = dma.hbm_to_vmem [thread:$0]  %s329, 1024, %s331, [#allocation12], 128, 128, 8
        $region28: #{tpu_custom_call.1} parent=11 // pred_fallthru
          _
        // Predicated region
        $region29: #{tpu_custom_call.1} parent=11 // pred_check
          %p337 = pneg %p159
        $region30: #{tpu_custom_call.1} parent=11 // pred_check_branch
          %339 = sbr.rel (%p337) target = $region32
        $region31: #{tpu_custom_call.1} parent=11 // pred_region
          %341 = vsyncadd [#allocation15], 0
          %s343 = sshll.u32 %s5, 4
          %s344 = int_to_ptr.hbm [resolvable:$true] %s343
          %s345 = sshll.u32 [#allocation14], 4
          %s346 = int_to_ptr.vmem [resolvable:$true] %s345
          %348 = dma.hbm_to_vmem [thread:$0]  %s344, 16, %s346, [#allocation15]
        $region32: #{tpu_custom_call.1} parent=11 // pred_fallthru
          _
        // Predicated region
        $region33: #{tpu_custom_call.1} parent=11 // pred_check
          %p349 = pneg %p180
        $region34: #{tpu_custom_call.1} parent=11 // pred_check_branch
          %351 = sbr.rel (%p349) target = $region36
        $region35: #{tpu_custom_call.1} parent=11 // pred_region
          %353 = vsyncadd [#allocation15], 0
          %s355 = sshll.u32 %s6, 4
          %s356 = int_to_ptr.hbm [resolvable:$true] %s355
          %s357 = sshll.u32 [#allocation16], 4
          %s358 = int_to_ptr.vmem [resolvable:$true] %s357
          %360 = dma.hbm_to_vmem [thread:$0]  %s356, 16, %s358, [#allocation15]
        $region36: #{tpu_custom_call.1} parent=11 // pred_fallthru
          _
        // Predicated region
        $region37: #{tpu_custom_call.1} parent=11 // pred_check
          %p361 = pneg %p201
        $region38: #{tpu_custom_call.1} parent=11 // pred_check_branch
          %363 = sbr.rel (%p361) target = $region40
        $region39: #{tpu_custom_call.1} parent=11 // pred_region
          _
        $region40: #{tpu_custom_call.1} parent=11 // pred_fallthru
          _
        // Predicated region
        $region41: #{tpu_custom_call.1} parent=11 // pred_check
          %p364 = pneg %p222
        $region42: #{tpu_custom_call.1} parent=11 // pred_check_branch
          %366 = sbr.rel (%p364) target = $region44
        $region43: #{tpu_custom_call.1} parent=11 // pred_region
          %368 = vsyncadd [#allocation18], 0
          %s370 = sshll.u32 %s8, 4
          %s371 = int_to_ptr.hbm [resolvable:$true] %s370
          %s372 = sshll.u32 [#allocation17], 4
          %s373 = int_to_ptr.vmem [resolvable:$true] %s372
          %375 = dma.hbm_to_vmem [thread:$0]  %s371, 16, %s373, [#allocation18]
        $region44: #{tpu_custom_call.1} parent=11 // pred_fallthru
          _
        // Predicated region
        $region45: #{tpu_custom_call.1} parent=11 // pred_check
          %p376 = pneg %p243
        $region46: #{tpu_custom_call.1} parent=11 // pred_check_branch
          %378 = sbr.rel (%p376) target = $region48
        $region47: #{tpu_custom_call.1} parent=11 // pred_region
          _
        $region48: #{tpu_custom_call.1} parent=11 // pred_fallthru
          _
      $region12: #{tpu_custom_call.1} parent=5 // pred_fallthru
        _
      %p379 = scmp.lt.s32.totalorder %s28, 4
      // Predicated region
      $region49: #{tpu_custom_call.1} parent=5 // pred_check
        %p380 = pneg %p379
      $region50: #{tpu_custom_call.1} parent=5 // pred_check_branch
        %382 = sbr.rel (%p380) target = $region52
      $region51: #{tpu_custom_call.1} parent=5 // pred_region
        // Predicated region
        $region53: #{tpu_custom_call.1} parent=51 // pred_check
          %p383 = pneg %p69
        $region54: #{tpu_custom_call.1} parent=51 // pred_check_branch
          %385 = sbr.rel (%p383) target = $region56
        $region55: #{tpu_custom_call.1} parent=51 // pred_region
          %s386 = sand.u32 %s59, 1
          %s387 = scalar_lea.sflag [#allocation9], %s386
          %s388 = sand.u32 %s59, 1
          %s389 = smul.addr %s388, 1024
          %s390 = scalar_lea.vmem [#allocation8], %s389
          %s391 = smul.u32 32, %s28
          %393 = vsyncadd %s387, 0
          %s394 = smul.addr %s391, 8
          %s395 = smul.addr %s394, 4
          %s396 = scalar_lea.hbm %s1, %s395
          %s397 = sshll.u32 %s396, 4
          %s398 = int_to_ptr.hbm [resolvable:$true] %s397
          %s399 = sshll.u32 %s390, 4
          %s400 = int_to_ptr.vmem [resolvable:$true] %s399
          %405 = dma.hbm_to_vmem [thread:$0]  %s398, 16384, %s400, %s387, 512, 512, 32
        $region56: #{tpu_custom_call.1} parent=51 // pred_fallthru
          _
      $region52: #{tpu_custom_call.1} parent=5 // pred_fallthru
        _
      %p406 = scmp.le.s32.totalorder 1, %s28
      %p407 = scmp.lt.s32.totalorder %s28, 5
      %p408 = pnand %p406, %p407
      %p409 = pneg %p408
      // Predicated region
      $region57: #{tpu_custom_call.1} parent=5 // pred_check
        _
      $region58: #{tpu_custom_call.1} parent=5 // pred_check_branch
        %411 = sbr.rel (%p408) target = $region60
      $region59: #{tpu_custom_call.1} parent=5 // pred_region
        %s412 = ssub.s32 %s28, 1
        %s413 = sand.u32 %s62, 1
        %s414 = scalar_lea.sflag [#allocation9], %s413
        %s415 = sand.u32 %s62, 1
        %s416 = smul.addr %s415, 1024
        %s417 = scalar_lea.vmem [#allocation8], %s416
        // Predicated region
        $region61: #{tpu_custom_call.1} parent=59 // pred_check
          %p418 = pneg %p75
        $region62: #{tpu_custom_call.1} parent=59 // pred_check_branch
          %420 = sbr.rel (%p418) target = $region64
        $region63: #{tpu_custom_call.1} parent=59 // pred_region
          %422 = dma.done %s414, 16384
        $region64: #{tpu_custom_call.1} parent=59 // pred_fallthru
          _
        // Predicated region
        $region65: #{tpu_custom_call.1} parent=59 // pred_check
          %p423 = pneg %p117
        $region66: #{tpu_custom_call.1} parent=59 // pred_check_branch
          %425 = sbr.rel (%p423) target = $region68
        $region67: #{tpu_custom_call.1} parent=59 // pred_region
          %427 = dma.done [#allocation12], 16
        $region68: #{tpu_custom_call.1} parent=59 // pred_fallthru
          _
        // Predicated region
        $region69: #{tpu_custom_call.1} parent=59 // pred_check
          %p428 = pneg %p138
        $region70: #{tpu_custom_call.1} parent=59 // pred_check_branch
          %430 = sbr.rel (%p428) target = $region72
        $region71: #{tpu_custom_call.1} parent=59 // pred_region
          %432 = dma.done [#allocation12], 1024
        $region72: #{tpu_custom_call.1} parent=59 // pred_fallthru
          _
        // Predicated region
        $region73: #{tpu_custom_call.1} parent=59 // pred_check
          %p433 = pneg %p159
        $region74: #{tpu_custom_call.1} parent=59 // pred_check_branch
          %435 = sbr.rel (%p433) target = $region76
        $region75: #{tpu_custom_call.1} parent=59 // pred_region
          %437 = dma.done [#allocation15], 16
        $region76: #{tpu_custom_call.1} parent=59 // pred_fallthru
          _
        // Predicated region
        $region77: #{tpu_custom_call.1} parent=59 // pred_check
          %p438 = pneg %p180
        $region78: #{tpu_custom_call.1} parent=59 // pred_check_branch
          %440 = sbr.rel (%p438) target = $region80
        $region79: #{tpu_custom_call.1} parent=59 // pred_region
          %442 = dma.done [#allocation15], 16
        $region80: #{tpu_custom_call.1} parent=59 // pred_fallthru
          _
        // Predicated region
        $region81: #{tpu_custom_call.1} parent=59 // pred_check
          %p443 = pneg %p222
        $region82: #{tpu_custom_call.1} parent=59 // pred_check_branch
          %445 = sbr.rel (%p443) target = $region84
        $region83: #{tpu_custom_call.1} parent=59 // pred_region
          %447 = dma.done [#allocation18], 16
        $region84: #{tpu_custom_call.1} parent=59 // pred_fallthru
          _
        %p448 = pneg %p49
        %p449 = pneg %p46
        %s450 = sand.u32 %s62, 1
        %s451 = scalar_lea.sflag [#allocation9], %s450
        %s452 = sand.u32 %s62, 1
        %s453 = smul.addr %s452, 1024
        %s454 = scalar_lea.vmem [#allocation8], %s453
        %p455 = pneg %p75
        %p456 = pneg %p72
        %p457 = pneg %p96
        %p458 = pneg %p93
        %p459 = pneg %p117
        %p460 = pneg %p114
        %p461 = pneg %p138
        %p462 = pneg %p135
        %p463 = pneg %p159
        %p464 = pneg %p156
        %p465 = pneg %p180
        %p466 = pneg %p177
        %p467 = pneg %p201
        %p468 = pneg %p198
        %p469 = pneg %p222
        %p470 = pneg %p219
        %p471 = pneg %p243
        %p472 = pneg %p240
        %p473 = pneg %p264
        %p474 = pneg %p261
        %p475 = pneg %p290
        %p476 = pneg %p287
        %s477 = smul.u32 32, %s33
        %p478 = scmp.lt.s32.totalorder %s477, 127
        %s479 = scalar_select %p478, %s477, 127
        %s480 = smul.addr %s479, 8
        %s481 = scalar_lea.vmem %s11, %s480
        %s482 = smul.u32 32, %s33
        %s483 = smul.u32 32, %s33
        %p484 = scmp.lt.s32.totalorder %s483, 127
        %s485 = scalar_select %p484, %s483, 127
        %s486 = smul.addr %s485, 8
        %s487 = scalar_lea.vmem %s11, %s486
        %s488 = smul.u32 32, %s33
        %p489 = scmp.eq.s32.totalorder %s33, 0
        // Predicated region
        $region85: #{tpu_custom_call.1} parent=59 // pred_check
          %p490 = pneg %p489
        $region86: #{tpu_custom_call.1} parent=59 // pred_check_branch
          %492 = sbr.rel (%p490) target = $region88
        $region87: #{tpu_custom_call.1} parent=59 // pred_region
          %vm493 = vcmask 0
          %494 = vst.msk [vmem:[#allocation2] sm:$0x1] %vm493, -1e+30
          %495 = vst.msk [vmem:[#allocation3] sm:$0x1] %vm493, 0.0
          %vm496 = vcmask 516096
          %497 = vst.msk [vmem:[#allocation4] sm:$0x1] %vm496, 0.0
        $region88: #{tpu_custom_call.1} parent=59 // pred_fallthru
          _
        %v498 = vld [vmem:[%s417] sm:$0xff]
        %v499 = vld [vmem:[%s417 + $0x8] sm:$0xff]
        %v500 = vld [vmem:[%s417 + $0x10] sm:$0xff]
        %v501 = vld [vmem:[%s417 + $0x18] sm:$0xff]
        %v502 = vld [vmem:[%s417 + $0x20] sm:$0xff]
        %v503 = vld [vmem:[%s417 + $0x28] sm:$0xff]
        %v504 = vld [vmem:[%s417 + $0x30] sm:$0xff]
        %v505 = vld [vmem:[%s417 + $0x38] sm:$0xff]
        %v506 = vld [vmem:[%s417 + $0x40] sm:$0xff]
        %v507 = vld [vmem:[%s417 + $0x48] sm:$0xff]
        %v508 = vld [vmem:[%s417 + $0x50] sm:$0xff]
        %v509 = vld [vmem:[%s417 + $0x58] sm:$0xff]
        %v510 = vld [vmem:[%s417 + $0x60] sm:$0xff]
        %v511 = vld [vmem:[%s417 + $0x68] sm:$0xff]
        %v512 = vld [vmem:[%s417 + $0x70] sm:$0xff]
        %v513 = vld [vmem:[%s417 + $0x78] sm:$0xff]
        %v514 = vld [vmem:[%s417 + $0x80] sm:$0xff]
        %v515 = vld [vmem:[%s417 + $0x88] sm:$0xff]
        %v516 = vld [vmem:[%s417 + $0x90] sm:$0xff]
        %v517 = vld [vmem:[%s417 + $0x98] sm:$0xff]
        %v518 = vld [vmem:[%s417 + $0xa0] sm:$0xff]
        %v519 = vld [vmem:[%s417 + $0xa8] sm:$0xff]
        %v520 = vld [vmem:[%s417 + $0xb0] sm:$0xff]
        %v521 = vld [vmem:[%s417 + $0xb8] sm:$0xff]
        %v522 = vld [vmem:[%s417 + $0xc0] sm:$0xff]
        %v523 = vld [vmem:[%s417 + $0xc8] sm:$0xff]
        %v524 = vld [vmem:[%s417 + $0xd0] sm:$0xff]
        %v525 = vld [vmem:[%s417 + $0xd8] sm:$0xff]
        %v526 = vld [vmem:[%s417 + $0xe0] sm:$0xff]
        %v527 = vld [vmem:[%s417 + $0xe8] sm:$0xff]
        %v528 = vld [vmem:[%s417 + $0xf0] sm:$0xff]
        %v529 = vld [vmem:[%s417 + $0xf8] sm:$0xff]
        %v530 = vld [vmem:[%s417 + $0x100] sm:$0xff]
        %v531 = vld [vmem:[%s417 + $0x108] sm:$0xff]
        %v532 = vld [vmem:[%s417 + $0x110] sm:$0xff]
        %v533 = vld [vmem:[%s417 + $0x118] sm:$0xff]
        %v534 = vld [vmem:[%s417 + $0x120] sm:$0xff]
        %v535 = vld [vmem:[%s417 + $0x128] sm:$0xff]
        %v536 = vld [vmem:[%s417 + $0x130] sm:$0xff]
        %v537 = vld [vmem:[%s417 + $0x138] sm:$0xff]
        %v538 = vld [vmem:[%s417 + $0x140] sm:$0xff]
        %v539 = vld [vmem:[%s417 + $0x148] sm:$0xff]
        %v540 = vld [vmem:[%s417 + $0x150] sm:$0xff]
        %v541 = vld [vmem:[%s417 + $0x158] sm:$0xff]
        %v542 = vld [vmem:[%s417 + $0x160] sm:$0xff]
        %v543 = vld [vmem:[%s417 + $0x168] sm:$0xff]
        %v544 = vld [vmem:[%s417 + $0x170] sm:$0xff]
        %v545 = vld [vmem:[%s417 + $0x178] sm:$0xff]
        %v546 = vld [vmem:[%s417 + $0x180] sm:$0xff]
        %v547 = vld [vmem:[%s417 + $0x188] sm:$0xff]
        %v548 = vld [vmem:[%s417 + $0x190] sm:$0xff]
        %v549 = vld [vmem:[%s417 + $0x198] sm:$0xff]
        %v550 = vld [vmem:[%s417 + $0x1a0] sm:$0xff]
        %v551 = vld [vmem:[%s417 + $0x1a8] sm:$0xff]
        %v552 = vld [vmem:[%s417 + $0x1b0] sm:$0xff]
        %v553 = vld [vmem:[%s417 + $0x1b8] sm:$0xff]
        %v554 = vld [vmem:[%s417 + $0x1c0] sm:$0xff]
        %v555 = vld [vmem:[%s417 + $0x1c8] sm:$0xff]
        %v556 = vld [vmem:[%s417 + $0x1d0] sm:$0xff]
        %v557 = vld [vmem:[%s417 + $0x1d8] sm:$0xff]
        %v558 = vld [vmem:[%s417 + $0x1e0] sm:$0xff]
        %v559 = vld [vmem:[%s417 + $0x1e8] sm:$0xff]
        %v560 = vld [vmem:[%s417 + $0x1f0] sm:$0xff]
        %v561 = vld [vmem:[%s417 + $0x1f8] sm:$0xff]
        %v562 = vld [vmem:[%s417 + $0x200] sm:$0xff]
        %v563 = vld [vmem:[%s417 + $0x208] sm:$0xff]
        %v564 = vld [vmem:[%s417 + $0x210] sm:$0xff]
        %v565 = vld [vmem:[%s417 + $0x218] sm:$0xff]
        %v566 = vld [vmem:[%s417 + $0x220] sm:$0xff]
        %v567 = vld [vmem:[%s417 + $0x228] sm:$0xff]
        %v568 = vld [vmem:[%s417 + $0x230] sm:$0xff]
        %v569 = vld [vmem:[%s417 + $0x238] sm:$0xff]
        %v570 = vld [vmem:[%s417 + $0x240] sm:$0xff]
        %v571 = vld [vmem:[%s417 + $0x248] sm:$0xff]
        %v572 = vld [vmem:[%s417 + $0x250] sm:$0xff]
        %v573 = vld [vmem:[%s417 + $0x258] sm:$0xff]
        %v574 = vld [vmem:[%s417 + $0x260] sm:$0xff]
        %v575 = vld [vmem:[%s417 + $0x268] sm:$0xff]
        %v576 = vld [vmem:[%s417 + $0x270] sm:$0xff]
        %v577 = vld [vmem:[%s417 + $0x278] sm:$0xff]
        %v578 = vld [vmem:[%s417 + $0x280] sm:$0xff]
        %v579 = vld [vmem:[%s417 + $0x288] sm:$0xff]
        %v580 = vld [vmem:[%s417 + $0x290] sm:$0xff]
        %v581 = vld [vmem:[%s417 + $0x298] sm:$0xff]
        %v582 = vld [vmem:[%s417 + $0x2a0] sm:$0xff]
        %v583 = vld [vmem:[%s417 + $0x2a8] sm:$0xff]
        %v584 = vld [vmem:[%s417 + $0x2b0] sm:$0xff]
        %v585 = vld [vmem:[%s417 + $0x2b8] sm:$0xff]
        %v586 = vld [vmem:[%s417 + $0x2c0] sm:$0xff]
        %v587 = vld [vmem:[%s417 + $0x2c8] sm:$0xff]
        %v588 = vld [vmem:[%s417 + $0x2d0] sm:$0xff]
        %v589 = vld [vmem:[%s417 + $0x2d8] sm:$0xff]
        %v590 = vld [vmem:[%s417 + $0x2e0] sm:$0xff]
        %v591 = vld [vmem:[%s417 + $0x2e8] sm:$0xff]
        %v592 = vld [vmem:[%s417 + $0x2f0] sm:$0xff]
        %v593 = vld [vmem:[%s417 + $0x2f8] sm:$0xff]
        %v594 = vld [vmem:[%s417 + $0x300] sm:$0xff]
        %v595 = vld [vmem:[%s417 + $0x308] sm:$0xff]
        %v596 = vld [vmem:[%s417 + $0x310] sm:$0xff]
        %v597 = vld [vmem:[%s417 + $0x318] sm:$0xff]
        %v598 = vld [vmem:[%s417 + $0x320] sm:$0xff]
        %v599 = vld [vmem:[%s417 + $0x328] sm:$0xff]
        %v600 = vld [vmem:[%s417 + $0x330] sm:$0xff]
        %v601 = vld [vmem:[%s417 + $0x338] sm:$0xff]
        %v602 = vld [vmem:[%s417 + $0x340] sm:$0xff]
        %v603 = vld [vmem:[%s417 + $0x348] sm:$0xff]
        %v604 = vld [vmem:[%s417 + $0x350] sm:$0xff]
        %v605 = vld [vmem:[%s417 + $0x358] sm:$0xff]
        %v606 = vld [vmem:[%s417 + $0x360] sm:$0xff]
        %v607 = vld [vmem:[%s417 + $0x368] sm:$0xff]
        %v608 = vld [vmem:[%s417 + $0x370] sm:$0xff]
        %v609 = vld [vmem:[%s417 + $0x378] sm:$0xff]
        %v610 = vld [vmem:[%s417 + $0x380] sm:$0xff]
        %v611 = vld [vmem:[%s417 + $0x388] sm:$0xff]
        %v612 = vld [vmem:[%s417 + $0x390] sm:$0xff]
        %v613 = vld [vmem:[%s417 + $0x398] sm:$0xff]
        %v614 = vld [vmem:[%s417 + $0x3a0] sm:$0xff]
        %v615 = vld [vmem:[%s417 + $0x3a8] sm:$0xff]
        %v616 = vld [vmem:[%s417 + $0x3b0] sm:$0xff]
        %v617 = vld [vmem:[%s417 + $0x3b8] sm:$0xff]
        %v618 = vld [vmem:[%s417 + $0x3c0] sm:$0xff]
        %v619 = vld [vmem:[%s417 + $0x3c8] sm:$0xff]
        %v620 = vld [vmem:[%s417 + $0x3d0] sm:$0xff]
        %v621 = vld [vmem:[%s417 + $0x3d8] sm:$0xff]
        %v622 = vld [vmem:[%s417 + $0x3e0] sm:$0xff]
        %v623 = vld [vmem:[%s417 + $0x3e8] sm:$0xff]
        %v624 = vld [vmem:[%s417 + $0x3f0] sm:$0xff]
        %v625 = vld [vmem:[%s417 + $0x3f8] sm:$0xff]
        %v626 = vld [vmem:[%s2] sm:$0xf]
        %v627 = vld [vmem:[%s2 + $0x4] sm:$0xf]
        %v628 = vld [vmem:[%s2 + $0x8] sm:$0xf]
        %v629 = vld [vmem:[%s2 + $0xc] sm:$0xf]
        %v630 = vld [vmem:[%s2 + $0x10] sm:$0xf]
        %v631 = vld [vmem:[%s2 + $0x14] sm:$0xf]
        %v632 = vld [vmem:[%s2 + $0x18] sm:$0xf]
        %v633 = vld [vmem:[%s2 + $0x1c] sm:$0xf]
        %v634 = vld [vmem:[%s2 + $0x20] sm:$0xf]
        %v635 = vld [vmem:[%s2 + $0x24] sm:$0xf]
        %v636 = vld [vmem:[%s2 + $0x28] sm:$0xf]
        %v637 = vld [vmem:[%s2 + $0x2c] sm:$0xf]
        %v638 = vld [vmem:[%s2 + $0x30] sm:$0xf]
        %v639 = vld [vmem:[%s2 + $0x34] sm:$0xf]
        %v640 = vld [vmem:[%s2 + $0x38] sm:$0xf]
        %v641 = vld [vmem:[%s2 + $0x3c] sm:$0xf]
        %v642 = vld [vmem:[%s2 + $0x40] sm:$0xf]
        %v643 = vld [vmem:[%s2 + $0x44] sm:$0xf]
        %v644 = vld [vmem:[%s2 + $0x48] sm:$0xf]
        %v645 = vld [vmem:[%s2 + $0x4c] sm:$0xf]
        %v646 = vld [vmem:[%s2 + $0x50] sm:$0xf]
        %v647 = vld [vmem:[%s2 + $0x54] sm:$0xf]
        %v648 = vld [vmem:[%s2 + $0x58] sm:$0xf]
        %v649 = vld [vmem:[%s2 + $0x5c] sm:$0xf]
        %v650 = vld [vmem:[%s2 + $0x60] sm:$0xf]
        %v651 = vld [vmem:[%s2 + $0x64] sm:$0xf]
        %v652 = vld [vmem:[%s2 + $0x68] sm:$0xf]
        %v653 = vld [vmem:[%s2 + $0x6c] sm:$0xf]
        %v654 = vld [vmem:[%s2 + $0x70] sm:$0xf]
        %v655 = vld [vmem:[%s2 + $0x74] sm:$0xf]
        %v656 = vld [vmem:[%s2 + $0x78] sm:$0xf]
        %v657 = vld [vmem:[%s2 + $0x7c] sm:$0xf]
        %v658 = vld [vmem:[%s2 + $0x80] sm:$0xf]
        %v659 = vld [vmem:[%s2 + $0x84] sm:$0xf]
        %v660 = vld [vmem:[%s2 + $0x88] sm:$0xf]
        %v661 = vld [vmem:[%s2 + $0x8c] sm:$0xf]
        %v662 = vld [vmem:[%s2 + $0x90] sm:$0xf]
        %v663 = vld [vmem:[%s2 + $0x94] sm:$0xf]
        %v664 = vld [vmem:[%s2 + $0x98] sm:$0xf]
        %v665 = vld [vmem:[%s2 + $0x9c] sm:$0xf]
        %v666 = vld [vmem:[%s2 + $0xa0] sm:$0xf]
        %v667 = vld [vmem:[%s2 + $0xa4] sm:$0xf]
        %v668 = vld [vmem:[%s2 + $0xa8] sm:$0xf]
        %v669 = vld [vmem:[%s2 + $0xac] sm:$0xf]
        %v670 = vld [vmem:[%s2 + $0xb0] sm:$0xf]
        %v671 = vld [vmem:[%s2 + $0xb4] sm:$0xf]
        %v672 = vld [vmem:[%s2 + $0xb8] sm:$0xf]
        %v673 = vld [vmem:[%s2 + $0xbc] sm:$0xf]
        %v674 = vld [vmem:[%s2 + $0xc0] sm:$0xf]
        %v675 = vld [vmem:[%s2 + $0xc4] sm:$0xf]
        %v676 = vld [vmem:[%s2 + $0xc8] sm:$0xf]
        %v677 = vld [vmem:[%s2 + $0xcc] sm:$0xf]
        %v678 = vld [vmem:[%s2 + $0xd0] sm:$0xf]
        %v679 = vld [vmem:[%s2 + $0xd4] sm:$0xf]
        %v680 = vld [vmem:[%s2 + $0xd8] sm:$0xf]
        %v681 = vld [vmem:[%s2 + $0xdc] sm:$0xf]
        %v682 = vld [vmem:[%s2 + $0xe0] sm:$0xf]
        %v683 = vld [vmem:[%s2 + $0xe4] sm:$0xf]
        %v684 = vld [vmem:[%s2 + $0xe8] sm:$0xf]
        %v685 = vld [vmem:[%s2 + $0xec] sm:$0xf]
        %v686 = vld [vmem:[%s2 + $0xf0] sm:$0xf]
        %v687 = vld [vmem:[%s2 + $0xf4] sm:$0xf]
        %v688 = vld [vmem:[%s2 + $0xf8] sm:$0xf]
        %v689 = vld [vmem:[%s2 + $0xfc] sm:$0xf]
        %v690 = vld [vmem:[%s2 + $0x100] sm:$0xf]
        %v691 = vld [vmem:[%s2 + $0x104] sm:$0xf]
        %v692 = vld [vmem:[%s2 + $0x108] sm:$0xf]
        %v693 = vld [vmem:[%s2 + $0x10c] sm:$0xf]
        %v694 = vld [vmem:[%s2 + $0x110] sm:$0xf]
        %v695 = vld [vmem:[%s2 + $0x114] sm:$0xf]
        %v696 = vld [vmem:[%s2 + $0x118] sm:$0xf]
        %v697 = vld [vmem:[%s2 + $0x11c] sm:$0xf]
        %v698 = vld [vmem:[%s2 + $0x120] sm:$0xf]
        %v699 = vld [vmem:[%s2 + $0x124] sm:$0xf]
        %v700 = vld [vmem:[%s2 + $0x128] sm:$0xf]
        %v701 = vld [vmem:[%s2 + $0x12c] sm:$0xf]
        %v702 = vld [vmem:[%s2 + $0x130] sm:$0xf]
        %v703 = vld [vmem:[%s2 + $0x134] sm:$0xf]
        %v704 = vld [vmem:[%s2 + $0x138] sm:$0xf]
        %v705 = vld [vmem:[%s2 + $0x13c] sm:$0xf]
        %v706 = vld [vmem:[%s2 + $0x140] sm:$0xf]
        %v707 = vld [vmem:[%s2 + $0x144] sm:$0xf]
        %v708 = vld [vmem:[%s2 + $0x148] sm:$0xf]
        %v709 = vld [vmem:[%s2 + $0x14c] sm:$0xf]
        %v710 = vld [vmem:[%s2 + $0x150] sm:$0xf]
        %v711 = vld [vmem:[%s2 + $0x154] sm:$0xf]
        %v712 = vld [vmem:[%s2 + $0x158] sm:$0xf]
        %v713 = vld [vmem:[%s2 + $0x15c] sm:$0xf]
        %v714 = vld [vmem:[%s2 + $0x160] sm:$0xf]
        %v715 = vld [vmem:[%s2 + $0x164] sm:$0xf]
        %v716 = vld [vmem:[%s2 + $0x168] sm:$0xf]
        %v717 = vld [vmem:[%s2 + $0x16c] sm:$0xf]
        %v718 = vld [vmem:[%s2 + $0x170] sm:$0xf]
        %v719 = vld [vmem:[%s2 + $0x174] sm:$0xf]
        %v720 = vld [vmem:[%s2 + $0x178] sm:$0xf]
        %v721 = vld [vmem:[%s2 + $0x17c] sm:$0xf]
        %v722 = vld [vmem:[%s2 + $0x180] sm:$0xf]
        %v723 = vld [vmem:[%s2 + $0x184] sm:$0xf]
        %v724 = vld [vmem:[%s2 + $0x188] sm:$0xf]
        %v725 = vld [vmem:[%s2 + $0x18c] sm:$0xf]
        %v726 = vld [vmem:[%s2 + $0x190] sm:$0xf]
        %v727 = vld [vmem:[%s2 + $0x194] sm:$0xf]
        %v728 = vld [vmem:[%s2 + $0x198] sm:$0xf]
        %v729 = vld [vmem:[%s2 + $0x19c] sm:$0xf]
        %v730 = vld [vmem:[%s2 + $0x1a0] sm:$0xf]
        %v731 = vld [vmem:[%s2 + $0x1a4] sm:$0xf]
        %v732 = vld [vmem:[%s2 + $0x1a8] sm:$0xf]
        %v733 = vld [vmem:[%s2 + $0x1ac] sm:$0xf]
        %v734 = vld [vmem:[%s2 + $0x1b0] sm:$0xf]
        %v735 = vld [vmem:[%s2 + $0x1b4] sm:$0xf]
        %v736 = vld [vmem:[%s2 + $0x1b8] sm:$0xf]
        %v737 = vld [vmem:[%s2 + $0x1bc] sm:$0xf]
        %v738 = vld [vmem:[%s2 + $0x1c0] sm:$0xf]
        %v739 = vld [vmem:[%s2 + $0x1c4] sm:$0xf]
        %v740 = vld [vmem:[%s2 + $0x1c8] sm:$0xf]
        %v741 = vld [vmem:[%s2 + $0x1cc] sm:$0xf]
        %v742 = vld [vmem:[%s2 + $0x1d0] sm:$0xf]
        %v743 = vld [vmem:[%s2 + $0x1d4] sm:$0xf]
        %v744 = vld [vmem:[%s2 + $0x1d8] sm:$0xf]
        %v745 = vld [vmem:[%s2 + $0x1dc] sm:$0xf]
        %v746 = vld [vmem:[%s2 + $0x1e0] sm:$0xf]
        %v747 = vld [vmem:[%s2 + $0x1e4] sm:$0xf]
        %v748 = vld [vmem:[%s2 + $0x1e8] sm:$0xf]
        %v749 = vld [vmem:[%s2 + $0x1ec] sm:$0xf]
        %v750 = vld [vmem:[%s2 + $0x1f0] sm:$0xf]
        %v751 = vld [vmem:[%s2 + $0x1f4] sm:$0xf]
        %v752 = vld [vmem:[%s2 + $0x1f8] sm:$0xf]
        %v753 = vld [vmem:[%s2 + $0x1fc] sm:$0xf]
        %v754 = vld [vmem:[#allocation11] sm:$0x1]
        %v756 = vperm.slane %v754, 0
        %v886 = vunpack.c.l.b16 %v498
        %v887 = vunpack.c.h.b16 %v498
        %v888 = vunpack.c.l.b16 %v499
        %v889 = vunpack.c.h.b16 %v499
        %v890 = vunpack.c.l.b16 %v500
        %v891 = vunpack.c.h.b16 %v500
        %v892 = vunpack.c.l.b16 %v501
        %v893 = vunpack.c.h.b16 %v501
        %v894 = vunpack.c.l.b16 %v502
        %v895 = vunpack.c.h.b16 %v502
        %v896 = vunpack.c.l.b16 %v503
        %v897 = vunpack.c.h.b16 %v503
        %v898 = vunpack.c.l.b16 %v504
        %v899 = vunpack.c.h.b16 %v504
        %v900 = vunpack.c.l.b16 %v505
        %v901 = vunpack.c.h.b16 %v505
        %v902 = vunpack.c.l.b16 %v506
        %v903 = vunpack.c.h.b16 %v506
        %v904 = vunpack.c.l.b16 %v507
        %v905 = vunpack.c.h.b16 %v507
        %v906 = vunpack.c.l.b16 %v508
        %v907 = vunpack.c.h.b16 %v508
        %v908 = vunpack.c.l.b16 %v509
        %v909 = vunpack.c.h.b16 %v509
        %v910 = vunpack.c.l.b16 %v510
        %v911 = vunpack.c.h.b16 %v510
        %v912 = vunpack.c.l.b16 %v511
        %v913 = vunpack.c.h.b16 %v511
        %v914 = vunpack.c.l.b16 %v512
        %v915 = vunpack.c.h.b16 %v512
        %v916 = vunpack.c.l.b16 %v513
        %v917 = vunpack.c.h.b16 %v513
        %v918 = vunpack.c.l.b16 %v514
        %v919 = vunpack.c.h.b16 %v514
        %v920 = vunpack.c.l.b16 %v515
        %v921 = vunpack.c.h.b16 %v515
        %v922 = vunpack.c.l.b16 %v516
        %v923 = vunpack.c.h.b16 %v516
        %v924 = vunpack.c.l.b16 %v517
        %v925 = vunpack.c.h.b16 %v517
        %v926 = vunpack.c.l.b16 %v518
        %v927 = vunpack.c.h.b16 %v518
        %v928 = vunpack.c.l.b16 %v519
        %v929 = vunpack.c.h.b16 %v519
        %v930 = vunpack.c.l.b16 %v520
        %v931 = vunpack.c.h.b16 %v520
        %v932 = vunpack.c.l.b16 %v521
        %v933 = vunpack.c.h.b16 %v521
        %v934 = vunpack.c.l.b16 %v522
        %v935 = vunpack.c.h.b16 %v522
        %v936 = vunpack.c.l.b16 %v523
        %v937 = vunpack.c.h.b16 %v523
        %v938 = vunpack.c.l.b16 %v524
        %v939 = vunpack.c.h.b16 %v524
        %v940 = vunpack.c.l.b16 %v525
        %v941 = vunpack.c.h.b16 %v525
        %v942 = vunpack.c.l.b16 %v526
        %v943 = vunpack.c.h.b16 %v526
        %v944 = vunpack.c.l.b16 %v527
        %v945 = vunpack.c.h.b16 %v527
        %v946 = vunpack.c.l.b16 %v528
        %v947 = vunpack.c.h.b16 %v528
        %v948 = vunpack.c.l.b16 %v529
        %v949 = vunpack.c.h.b16 %v529
        %v950 = vunpack.c.l.b16 %v530
        %v951 = vunpack.c.h.b16 %v530
        %v952 = vunpack.c.l.b16 %v531
        %v953 = vunpack.c.h.b16 %v531
        %v954 = vunpack.c.l.b16 %v532
        %v955 = vunpack.c.h.b16 %v532
        %v956 = vunpack.c.l.b16 %v533
        %v957 = vunpack.c.h.b16 %v533
        %v958 = vunpack.c.l.b16 %v534
        %v959 = vunpack.c.h.b16 %v534
        %v960 = vunpack.c.l.b16 %v535
        %v961 = vunpack.c.h.b16 %v535
        %v962 = vunpack.c.l.b16 %v536
        %v963 = vunpack.c.h.b16 %v536
        %v964 = vunpack.c.l.b16 %v537
        %v965 = vunpack.c.h.b16 %v537
        %v966 = vunpack.c.l.b16 %v538
        %v967 = vunpack.c.h.b16 %v538
        %v968 = vunpack.c.l.b16 %v539
        %v969 = vunpack.c.h.b16 %v539
        %v970 = vunpack.c.l.b16 %v540
        %v971 = vunpack.c.h.b16 %v540
        %v972 = vunpack.c.l.b16 %v541
        %v973 = vunpack.c.h.b16 %v541
        %v974 = vunpack.c.l.b16 %v542
        %v975 = vunpack.c.h.b16 %v542
        %v976 = vunpack.c.l.b16 %v543
        %v977 = vunpack.c.h.b16 %v543
        %v978 = vunpack.c.l.b16 %v544
        %v979 = vunpack.c.h.b16 %v544
        %v980 = vunpack.c.l.b16 %v545
        %v981 = vunpack.c.h.b16 %v545
        %v982 = vunpack.c.l.b16 %v546
        %v983 = vunpack.c.h.b16 %v546
        %v984 = vunpack.c.l.b16 %v547
        %v985 = vunpack.c.h.b16 %v547
        %v986 = vunpack.c.l.b16 %v548
        %v987 = vunpack.c.h.b16 %v548
        %v988 = vunpack.c.l.b16 %v549
        %v989 = vunpack.c.h.b16 %v549
        %v990 = vunpack.c.l.b16 %v550
        %v991 = vunpack.c.h.b16 %v550
        %v992 = vunpack.c.l.b16 %v551
        %v993 = vunpack.c.h.b16 %v551
        %v994 = vunpack.c.l.b16 %v552
        %v995 = vunpack.c.h.b16 %v552
        %v996 = vunpack.c.l.b16 %v553
        %v997 = vunpack.c.h.b16 %v553
        %v998 = vunpack.c.l.b16 %v554
        %v999 = vunpack.c.h.b16 %v554
        %v1000 = vunpack.c.l.b16 %v555
        %v1001 = vunpack.c.h.b16 %v555
        %v1002 = vunpack.c.l.b16 %v556
        %v1003 = vunpack.c.h.b16 %v556
        %v1004 = vunpack.c.l.b16 %v557
        %v1005 = vunpack.c.h.b16 %v557
        %v1006 = vunpack.c.l.b16 %v558
        %v1007 = vunpack.c.h.b16 %v558
        %v1008 = vunpack.c.l.b16 %v559
        %v1009 = vunpack.c.h.b16 %v559
        %v1010 = vunpack.c.l.b16 %v560
        %v1011 = vunpack.c.h.b16 %v560
        %v1012 = vunpack.c.l.b16 %v561
        %v1013 = vunpack.c.h.b16 %v561
        %v1014 = vunpack.c.l.b16 %v562
        %v1015 = vunpack.c.h.b16 %v562
        %v1016 = vunpack.c.l.b16 %v563
        %v1017 = vunpack.c.h.b16 %v563
        %v1018 = vunpack.c.l.b16 %v564
        %v1019 = vunpack.c.h.b16 %v564
        %v1020 = vunpack.c.l.b16 %v565
        %v1021 = vunpack.c.h.b16 %v565
        %v1022 = vunpack.c.l.b16 %v566
        %v1023 = vunpack.c.h.b16 %v566
        %v1024 = vunpack.c.l.b16 %v567
        %v1025 = vunpack.c.h.b16 %v567
        %v1026 = vunpack.c.l.b16 %v568
        %v1027 = vunpack.c.h.b16 %v568
        %v1028 = vunpack.c.l.b16 %v569
        %v1029 = vunpack.c.h.b16 %v569
        %v1030 = vunpack.c.l.b16 %v570
        %v1031 = vunpack.c.h.b16 %v570
        %v1032 = vunpack.c.l.b16 %v571
        %v1033 = vunpack.c.h.b16 %v571
        %v1034 = vunpack.c.l.b16 %v572
        %v1035 = vunpack.c.h.b16 %v572
        %v1036 = vunpack.c.l.b16 %v573
        %v1037 = vunpack.c.h.b16 %v573
        %v1038 = vunpack.c.l.b16 %v574
        %v1039 = vunpack.c.h.b16 %v574
        %v1040 = vunpack.c.l.b16 %v575
        %v1041 = vunpack.c.h.b16 %v575
        %v1042 = vunpack.c.l.b16 %v576
        %v1043 = vunpack.c.h.b16 %v576
        %v1044 = vunpack.c.l.b16 %v577
        %v1045 = vunpack.c.h.b16 %v577
        %v1046 = vunpack.c.l.b16 %v578
        %v1047 = vunpack.c.h.b16 %v578
        %v1048 = vunpack.c.l.b16 %v579
        %v1049 = vunpack.c.h.b16 %v579
        %v1050 = vunpack.c.l.b16 %v580
        %v1051 = vunpack.c.h.b16 %v580
        %v1052 = vunpack.c.l.b16 %v581
        %v1053 = vunpack.c.h.b16 %v581
        %v1054 = vunpack.c.l.b16 %v582
        %v1055 = vunpack.c.h.b16 %v582
        %v1056 = vunpack.c.l.b16 %v583
        %v1057 = vunpack.c.h.b16 %v583
        %v1058 = vunpack.c.l.b16 %v584
        %v1059 = vunpack.c.h.b16 %v584
        %v1060 = vunpack.c.l.b16 %v585
        %v1061 = vunpack.c.h.b16 %v585
        %v1062 = vunpack.c.l.b16 %v586
        %v1063 = vunpack.c.h.b16 %v586
        %v1064 = vunpack.c.l.b16 %v587
        %v1065 = vunpack.c.h.b16 %v587
        %v1066 = vunpack.c.l.b16 %v588
        %v1067 = vunpack.c.h.b16 %v588
        %v1068 = vunpack.c.l.b16 %v589
        %v1069 = vunpack.c.h.b16 %v589
        %v1070 = vunpack.c.l.b16 %v590
        %v1071 = vunpack.c.h.b16 %v590
        %v1072 = vunpack.c.l.b16 %v591
        %v1073 = vunpack.c.h.b16 %v591
        %v1074 = vunpack.c.l.b16 %v592
        %v1075 = vunpack.c.h.b16 %v592
        %v1076 = vunpack.c.l.b16 %v593
        %v1077 = vunpack.c.h.b16 %v593
        %v1078 = vunpack.c.l.b16 %v594
        %v1079 = vunpack.c.h.b16 %v594
        %v1080 = vunpack.c.l.b16 %v595
        %v1081 = vunpack.c.h.b16 %v595
        %v1082 = vunpack.c.l.b16 %v596
        %v1083 = vunpack.c.h.b16 %v596
        %v1084 = vunpack.c.l.b16 %v597
        %v1085 = vunpack.c.h.b16 %v597
        %v1086 = vunpack.c.l.b16 %v598
        %v1087 = vunpack.c.h.b16 %v598
        %v1088 = vunpack.c.l.b16 %v599
        %v1089 = vunpack.c.h.b16 %v599
        %v1090 = vunpack.c.l.b16 %v600
        %v1091 = vunpack.c.h.b16 %v600
        %v1092 = vunpack.c.l.b16 %v601
        %v1093 = vunpack.c.h.b16 %v601
        %v1094 = vunpack.c.l.b16 %v602
        %v1095 = vunpack.c.h.b16 %v602
        %v1096 = vunpack.c.l.b16 %v603
        %v1097 = vunpack.c.h.b16 %v603
        %v1098 = vunpack.c.l.b16 %v604
        %v1099 = vunpack.c.h.b16 %v604
        %v1100 = vunpack.c.l.b16 %v605
        %v1101 = vunpack.c.h.b16 %v605
        %v1102 = vunpack.c.l.b16 %v606
        %v1103 = vunpack.c.h.b16 %v606
        %v1104 = vunpack.c.l.b16 %v607
        %v1105 = vunpack.c.h.b16 %v607
        %v1106 = vunpack.c.l.b16 %v608
        %v1107 = vunpack.c.h.b16 %v608
        %v1108 = vunpack.c.l.b16 %v609
        %v1109 = vunpack.c.h.b16 %v609
        %v1110 = vunpack.c.l.b16 %v610
        %v1111 = vunpack.c.h.b16 %v610
        %v1112 = vunpack.c.l.b16 %v611
        %v1113 = vunpack.c.h.b16 %v611
        %v1114 = vunpack.c.l.b16 %v612
        %v1115 = vunpack.c.h.b16 %v612
        %v1116 = vunpack.c.l.b16 %v613
        %v1117 = vunpack.c.h.b16 %v613
        %v1118 = vunpack.c.l.b16 %v614
        %v1119 = vunpack.c.h.b16 %v614
        %v1120 = vunpack.c.l.b16 %v615
        %v1121 = vunpack.c.h.b16 %v615
        %v1122 = vunpack.c.l.b16 %v616
        %v1123 = vunpack.c.h.b16 %v616
        %v1124 = vunpack.c.l.b16 %v617
        %v1125 = vunpack.c.h.b16 %v617
        %v1126 = vunpack.c.l.b16 %v618
        %v1127 = vunpack.c.h.b16 %v618
        %v1128 = vunpack.c.l.b16 %v619
        %v1129 = vunpack.c.h.b16 %v619
        %v1130 = vunpack.c.l.b16 %v620
        %v1131 = vunpack.c.h.b16 %v620
        %v1132 = vunpack.c.l.b16 %v621
        %v1133 = vunpack.c.h.b16 %v621
        %v1134 = vunpack.c.l.b16 %v622
        %v1135 = vunpack.c.h.b16 %v622
        %v1136 = vunpack.c.l.b16 %v623
        %v1137 = vunpack.c.h.b16 %v623
        %v1138 = vunpack.c.l.b16 %v624
        %v1139 = vunpack.c.h.b16 %v624
        %v1140 = vunpack.c.l.b16 %v625
        %v1141 = vunpack.c.h.b16 %v625
        %v1142 = vpack.c.b16 %v894, %v886
        %v1143 = vpack.c.b16 %v895, %v887
        %v1144 = vpack.c.b16 %v896, %v888
        %v1145 = vpack.c.b16 %v897, %v889
        %v1146 = vpack.c.b16 %v898, %v890
        %v1147 = vpack.c.b16 %v899, %v891
        %v1148 = vpack.c.b16 %v900, %v892
        %v1149 = vpack.c.b16 %v901, %v893
        %v1150 = vpack.c.b16 %v910, %v902
        %v1151 = vpack.c.b16 %v911, %v903
        %v1152 = vpack.c.b16 %v912, %v904
        %v1153 = vpack.c.b16 %v913, %v905
        %v1154 = vpack.c.b16 %v914, %v906
        %v1155 = vpack.c.b16 %v915, %v907
        %v1156 = vpack.c.b16 %v916, %v908
        %v1157 = vpack.c.b16 %v917, %v909
        %v1158 = vpack.c.b16 %v926, %v918
        %v1159 = vpack.c.b16 %v927, %v919
        %v1160 = vpack.c.b16 %v928, %v920
        %v1161 = vpack.c.b16 %v929, %v921
        %v1162 = vpack.c.b16 %v930, %v922
        %v1163 = vpack.c.b16 %v931, %v923
        %v1164 = vpack.c.b16 %v932, %v924
        %v1165 = vpack.c.b16 %v933, %v925
        %v1166 = vpack.c.b16 %v942, %v934
        %v1167 = vpack.c.b16 %v943, %v935
        %v1168 = vpack.c.b16 %v944, %v936
        %v1169 = vpack.c.b16 %v945, %v937
        %v1170 = vpack.c.b16 %v946, %v938
        %v1171 = vpack.c.b16 %v947, %v939
        %v1172 = vpack.c.b16 %v948, %v940
        %v1173 = vpack.c.b16 %v949, %v941
        %v1174 = vpack.c.b16 %v958, %v950
        %v1175 = vpack.c.b16 %v959, %v951
        %v1176 = vpack.c.b16 %v960, %v952
        %v1177 = vpack.c.b16 %v961, %v953
        %v1178 = vpack.c.b16 %v962, %v954
        %v1179 = vpack.c.b16 %v963, %v955
        %v1180 = vpack.c.b16 %v964, %v956
        %v1181 = vpack.c.b16 %v965, %v957
        %v1182 = vpack.c.b16 %v974, %v966
        %v1183 = vpack.c.b16 %v975, %v967
        %v1184 = vpack.c.b16 %v976, %v968
        %v1185 = vpack.c.b16 %v977, %v969
        %v1186 = vpack.c.b16 %v978, %v970
        %v1187 = vpack.c.b16 %v979, %v971
        %v1188 = vpack.c.b16 %v980, %v972
        %v1189 = vpack.c.b16 %v981, %v973
        %v1190 = vpack.c.b16 %v990, %v982
        %v1191 = vpack.c.b16 %v991, %v983
        %v1192 = vpack.c.b16 %v992, %v984
        %v1193 = vpack.c.b16 %v993, %v985
        %v1194 = vpack.c.b16 %v994, %v986
        %v1195 = vpack.c.b16 %v995, %v987
        %v1196 = vpack.c.b16 %v996, %v988
        %v1197 = vpack.c.b16 %v997, %v989
        %v1198 = vpack.c.b16 %v1006, %v998
        %v1199 = vpack.c.b16 %v1007, %v999
        %v1200 = vpack.c.b16 %v1008, %v1000
        %v1201 = vpack.c.b16 %v1009, %v1001
        %v1202 = vpack.c.b16 %v1010, %v1002
        %v1203 = vpack.c.b16 %v1011, %v1003
        %v1204 = vpack.c.b16 %v1012, %v1004
        %v1205 = vpack.c.b16 %v1013, %v1005
        %v1206 = vpack.c.b16 %v1022, %v1014
        %v1207 = vpack.c.b16 %v1023, %v1015
        %v1208 = vpack.c.b16 %v1024, %v1016
        %v1209 = vpack.c.b16 %v1025, %v1017
        %v1210 = vpack.c.b16 %v1026, %v1018
        %v1211 = vpack.c.b16 %v1027, %v1019
        %v1212 = vpack.c.b16 %v1028, %v1020
        %v1213 = vpack.c.b16 %v1029, %v1021
        %v1214 = vpack.c.b16 %v1038, %v1030
        %v1215 = vpack.c.b16 %v1039, %v1031
        %v1216 = vpack.c.b16 %v1040, %v1032
        %v1217 = vpack.c.b16 %v1041, %v1033
        %v1218 = vpack.c.b16 %v1042, %v1034
        %v1219 = vpack.c.b16 %v1043, %v1035
        %v1220 = vpack.c.b16 %v1044, %v1036
        %v1221 = vpack.c.b16 %v1045, %v1037
        %v1222 = vpack.c.b16 %v1054, %v1046
        %v1223 = vpack.c.b16 %v1055, %v1047
        %v1224 = vpack.c.b16 %v1056, %v1048
        %v1225 = vpack.c.b16 %v1057, %v1049
        %v1226 = vpack.c.b16 %v1058, %v1050
        %v1227 = vpack.c.b16 %v1059, %v1051
        %v1228 = vpack.c.b16 %v1060, %v1052
        %v1229 = vpack.c.b16 %v1061, %v1053
        %v1230 = vpack.c.b16 %v1070, %v1062
        %v1231 = vpack.c.b16 %v1071, %v1063
        %v1232 = vpack.c.b16 %v1072, %v1064
        %v1233 = vpack.c.b16 %v1073, %v1065
        %v1234 = vpack.c.b16 %v1074, %v1066
        %v1235 = vpack.c.b16 %v1075, %v1067
        %v1236 = vpack.c.b16 %v1076, %v1068
        %v1237 = vpack.c.b16 %v1077, %v1069
        %v1238 = vpack.c.b16 %v1086, %v1078
        %v1239 = vpack.c.b16 %v1087, %v1079
        %v1240 = vpack.c.b16 %v1088, %v1080
        %v1241 = vpack.c.b16 %v1089, %v1081
        %v1242 = vpack.c.b16 %v1090, %v1082
        %v1243 = vpack.c.b16 %v1091, %v1083
        %v1244 = vpack.c.b16 %v1092, %v1084
        %v1245 = vpack.c.b16 %v1093, %v1085
        %v1246 = vpack.c.b16 %v1102, %v1094
        %v1247 = vpack.c.b16 %v1103, %v1095
        %v1248 = vpack.c.b16 %v1104, %v1096
        %v1249 = vpack.c.b16 %v1105, %v1097
        %v1250 = vpack.c.b16 %v1106, %v1098
        %v1251 = vpack.c.b16 %v1107, %v1099
        %v1252 = vpack.c.b16 %v1108, %v1100
        %v1253 = vpack.c.b16 %v1109, %v1101
        %v1254 = vpack.c.b16 %v1118, %v1110
        %v1255 = vpack.c.b16 %v1119, %v1111
        %v1256 = vpack.c.b16 %v1120, %v1112
        %v1257 = vpack.c.b16 %v1121, %v1113
        %v1258 = vpack.c.b16 %v1122, %v1114
        %v1259 = vpack.c.b16 %v1123, %v1115
        %v1260 = vpack.c.b16 %v1124, %v1116
        %v1261 = vpack.c.b16 %v1125, %v1117
        %v1262 = vpack.c.b16 %v1134, %v1126
        %v1263 = vpack.c.b16 %v1135, %v1127
        %v1264 = vpack.c.b16 %v1136, %v1128
        %v1265 = vpack.c.b16 %v1137, %v1129
        %v1266 = vpack.c.b16 %v1138, %v1130
        %v1267 = vpack.c.b16 %v1139, %v1131
        %v1268 = vpack.c.b16 %v1140, %v1132
        %v1269 = vpack.c.b16 %v1141, %v1133
        %v1526 = vunpack.c.l.b16 %v626
        %v1527 = vunpack.c.l.b16 %v627
        %v1528 = vunpack.c.l.b16 %v628
        %v1529 = vunpack.c.l.b16 %v629
        %v1530 = vunpack.c.l.b16 %v630
        %v1531 = vunpack.c.l.b16 %v631
        %v1532 = vunpack.c.l.b16 %v632
        %v1533 = vunpack.c.l.b16 %v633
        %v1534 = vunpack.c.l.b16 %v634
        %v1535 = vunpack.c.l.b16 %v635
        %v1536 = vunpack.c.l.b16 %v636
        %v1537 = vunpack.c.l.b16 %v637
        %v1538 = vunpack.c.l.b16 %v638
        %v1539 = vunpack.c.l.b16 %v639
        %v1540 = vunpack.c.l.b16 %v640
        %v1541 = vunpack.c.l.b16 %v641
        %v1542 = vunpack.c.l.b16 %v642
        %v1543 = vunpack.c.l.b16 %v643
        %v1544 = vunpack.c.l.b16 %v644
        %v1545 = vunpack.c.l.b16 %v645
        %v1546 = vunpack.c.l.b16 %v646
        %v1547 = vunpack.c.l.b16 %v647
        %v1548 = vunpack.c.l.b16 %v648
        %v1549 = vunpack.c.l.b16 %v649
        %v1550 = vunpack.c.l.b16 %v650
        %v1551 = vunpack.c.l.b16 %v651
        %v1552 = vunpack.c.l.b16 %v652
        %v1553 = vunpack.c.l.b16 %v653
        %v1554 = vunpack.c.l.b16 %v654
        %v1555 = vunpack.c.l.b16 %v655
        %v1556 = vunpack.c.l.b16 %v656
        %v1557 = vunpack.c.l.b16 %v657
        %v1558 = vunpack.c.l.b16 %v658
        %v1559 = vunpack.c.l.b16 %v659
        %v1560 = vunpack.c.l.b16 %v660
        %v1561 = vunpack.c.l.b16 %v661
        %v1562 = vunpack.c.l.b16 %v662
        %v1563 = vunpack.c.l.b16 %v663
        %v1564 = vunpack.c.l.b16 %v664
        %v1565 = vunpack.c.l.b16 %v665
        %v1566 = vunpack.c.l.b16 %v666
        %v1567 = vunpack.c.l.b16 %v667
        %v1568 = vunpack.c.l.b16 %v668
        %v1569 = vunpack.c.l.b16 %v669
        %v1570 = vunpack.c.l.b16 %v670
        %v1571 = vunpack.c.l.b16 %v671
        %v1572 = vunpack.c.l.b16 %v672
        %v1573 = vunpack.c.l.b16 %v673
        %v1574 = vunpack.c.l.b16 %v674
        %v1575 = vunpack.c.l.b16 %v675
        %v1576 = vunpack.c.l.b16 %v676
        %v1577 = vunpack.c.l.b16 %v677
        %v1578 = vunpack.c.l.b16 %v678
        %v1579 = vunpack.c.l.b16 %v679
        %v1580 = vunpack.c.l.b16 %v680
        %v1581 = vunpack.c.l.b16 %v681
        %v1582 = vunpack.c.l.b16 %v682
        %v1583 = vunpack.c.l.b16 %v683
        %v1584 = vunpack.c.l.b16 %v684
        %v1585 = vunpack.c.l.b16 %v685
        %v1586 = vunpack.c.l.b16 %v686
        %v1587 = vunpack.c.l.b16 %v687
        %v1588 = vunpack.c.l.b16 %v688
        %v1589 = vunpack.c.l.b16 %v689
        %v1590 = vunpack.c.l.b16 %v690
        %v1591 = vunpack.c.l.b16 %v691
        %v1592 = vunpack.c.l.b16 %v692
        %v1593 = vunpack.c.l.b16 %v693
        %v1594 = vunpack.c.l.b16 %v694
        %v1595 = vunpack.c.l.b16 %v695
        %v1596 = vunpack.c.l.b16 %v696
        %v1597 = vunpack.c.l.b16 %v697
        %v1598 = vunpack.c.l.b16 %v698
        %v1599 = vunpack.c.l.b16 %v699
        %v1600 = vunpack.c.l.b16 %v700
        %v1601 = vunpack.c.l.b16 %v701
        %v1602 = vunpack.c.l.b16 %v702
        %v1603 = vunpack.c.l.b16 %v703
        %v1604 = vunpack.c.l.b16 %v704
        %v1605 = vunpack.c.l.b16 %v705
        %v1606 = vunpack.c.l.b16 %v706
        %v1607 = vunpack.c.l.b16 %v707
        %v1608 = vunpack.c.l.b16 %v708
        %v1609 = vunpack.c.l.b16 %v709
        %v1610 = vunpack.c.l.b16 %v710
        %v1611 = vunpack.c.l.b16 %v711
        %v1612 = vunpack.c.l.b16 %v712
        %v1613 = vunpack.c.l.b16 %v713
        %v1614 = vunpack.c.l.b16 %v714
        %v1615 = vunpack.c.l.b16 %v715
        %v1616 = vunpack.c.l.b16 %v716
        %v1617 = vunpack.c.l.b16 %v717
        %v1618 = vunpack.c.l.b16 %v718
        %v1619 = vunpack.c.l.b16 %v719
        %v1620 = vunpack.c.l.b16 %v720
        %v1621 = vunpack.c.l.b16 %v721
        %v1622 = vunpack.c.l.b16 %v722
        %v1623 = vunpack.c.l.b16 %v723
        %v1624 = vunpack.c.l.b16 %v724
        %v1625 = vunpack.c.l.b16 %v725
        %v1626 = vunpack.c.l.b16 %v726
        %v1627 = vunpack.c.l.b16 %v727
        %v1628 = vunpack.c.l.b16 %v728
        %v1629 = vunpack.c.l.b16 %v729
        %v1630 = vunpack.c.l.b16 %v730
        %v1631 = vunpack.c.l.b16 %v731
        %v1632 = vunpack.c.l.b16 %v732
        %v1633 = vunpack.c.l.b16 %v733
        %v1634 = vunpack.c.l.b16 %v734
        %v1635 = vunpack.c.l.b16 %v735
        %v1636 = vunpack.c.l.b16 %v736
        %v1637 = vunpack.c.l.b16 %v737
        %v1638 = vunpack.c.l.b16 %v738
        %v1639 = vunpack.c.l.b16 %v739
        %v1640 = vunpack.c.l.b16 %v740
        %v1641 = vunpack.c.l.b16 %v741
        %v1642 = vunpack.c.l.b16 %v742
        %v1643 = vunpack.c.l.b16 %v743
        %v1644 = vunpack.c.l.b16 %v744
        %v1645 = vunpack.c.l.b16 %v745
        %v1646 = vunpack.c.l.b16 %v746
        %v1647 = vunpack.c.l.b16 %v747
        %v1648 = vunpack.c.l.b16 %v748
        %v1649 = vunpack.c.l.b16 %v749
        %v1650 = vunpack.c.l.b16 %v750
        %v1651 = vunpack.c.l.b16 %v751
        %v1652 = vunpack.c.l.b16 %v752
        %v1653 = vunpack.c.l.b16 %v753
        %v1654 = vpack.c.b16 %v1527, %v1526
        %v1655 = vpack.c.b16 %v1529, %v1528
        %v1656 = vpack.c.b16 %v1531, %v1530
        %v1657 = vpack.c.b16 %v1533, %v1532
        %v1658 = vpack.c.b16 %v1535, %v1534
        %v1659 = vpack.c.b16 %v1537, %v1536
        %v1660 = vpack.c.b16 %v1539, %v1538
        %v1661 = vpack.c.b16 %v1541, %v1540
        %v1662 = vpack.c.b16 %v1543, %v1542
        %v1663 = vpack.c.b16 %v1545, %v1544
        %v1664 = vpack.c.b16 %v1547, %v1546
        %v1665 = vpack.c.b16 %v1549, %v1548
        %v1666 = vpack.c.b16 %v1551, %v1550
        %v1667 = vpack.c.b16 %v1553, %v1552
        %v1668 = vpack.c.b16 %v1555, %v1554
        %v1669 = vpack.c.b16 %v1557, %v1556
        %v1670 = vpack.c.b16 %v1559, %v1558
        %v1671 = vpack.c.b16 %v1561, %v1560
        %v1672 = vpack.c.b16 %v1563, %v1562
        %v1673 = vpack.c.b16 %v1565, %v1564
        %v1674 = vpack.c.b16 %v1567, %v1566
        %v1675 = vpack.c.b16 %v1569, %v1568
        %v1676 = vpack.c.b16 %v1571, %v1570
        %v1677 = vpack.c.b16 %v1573, %v1572
        %v1678 = vpack.c.b16 %v1575, %v1574
        %v1679 = vpack.c.b16 %v1577, %v1576
        %v1680 = vpack.c.b16 %v1579, %v1578
        %v1681 = vpack.c.b16 %v1581, %v1580
        %v1682 = vpack.c.b16 %v1583, %v1582
        %v1683 = vpack.c.b16 %v1585, %v1584
        %v1684 = vpack.c.b16 %v1587, %v1586
        %v1685 = vpack.c.b16 %v1589, %v1588
        %v1686 = vpack.c.b16 %v1591, %v1590
        %v1687 = vpack.c.b16 %v1593, %v1592
        %v1688 = vpack.c.b16 %v1595, %v1594
        %v1689 = vpack.c.b16 %v1597, %v1596
        %v1690 = vpack.c.b16 %v1599, %v1598
        %v1691 = vpack.c.b16 %v1601, %v1600
        %v1692 = vpack.c.b16 %v1603, %v1602
        %v1693 = vpack.c.b16 %v1605, %v1604
        %v1694 = vpack.c.b16 %v1607, %v1606
        %v1695 = vpack.c.b16 %v1609, %v1608
        %v1696 = vpack.c.b16 %v1611, %v1610
        %v1697 = vpack.c.b16 %v1613, %v1612
        %v1698 = vpack.c.b16 %v1615, %v1614
        %v1699 = vpack.c.b16 %v1617, %v1616
        %v1700 = vpack.c.b16 %v1619, %v1618
        %v1701 = vpack.c.b16 %v1621, %v1620
        %v1702 = vpack.c.b16 %v1623, %v1622
        %v1703 = vpack.c.b16 %v1625, %v1624
        %v1704 = vpack.c.b16 %v1627, %v1626
        %v1705 = vpack.c.b16 %v1629, %v1628
        %v1706 = vpack.c.b16 %v1631, %v1630
        %v1707 = vpack.c.b16 %v1633, %v1632
        %v1708 = vpack.c.b16 %v1635, %v1634
        %v1709 = vpack.c.b16 %v1637, %v1636
        %v1710 = vpack.c.b16 %v1639, %v1638
        %v1711 = vpack.c.b16 %v1641, %v1640
        %v1712 = vpack.c.b16 %v1643, %v1642
        %v1713 = vpack.c.b16 %v1645, %v1644
        %v1714 = vpack.c.b16 %v1647, %v1646
        %v1715 = vpack.c.b16 %v1649, %v1648
        %v1716 = vpack.c.b16 %v1651, %v1650
        %v1717 = vpack.c.b16 %v1653, %v1652
        %1782 = vmatpush.bf16.msra.mxu0 %v1661
        %1783 = vmatpush.bf16.msra.mxu0 %v1660
        %1784 = vmatpush.bf16.msra.mxu0 %v1659
        %1785 = vmatpush.bf16.msra.mxu0 %v1658
        %1786 = vmatpush.bf16.msra.mxu0 %v1657
        %1787 = vmatpush.bf16.msra.mxu0 %v1656
        %1788 = vmatpush.bf16.msra.mxu0 %v1655
        %1789 = vmatpush.bf16.msra.mxu0 %v1654
        %1790 = vmatmul.bf16.gmra.mxu0 %v1142
        %v1791 = vpop.f32.mrf.mxu0
        %v1792 = vadd.f32 %v756, %v1791
        %v1793 = vpop.f32.mrf.mxu0
        %v1794 = vadd.f32 %v756, %v1793
        %1795 = vmatmul.bf16.gmra.mxu0 %v1150
        %v1796 = vpop.f32.mrf.mxu0
        %v1797 = vadd.f32 %v756, %v1796
        %v1798 = vpop.f32.mrf.mxu0
        %v1799 = vadd.f32 %v756, %v1798
        %1800 = vmatmul.bf16.gmra.mxu0 %v1158
        %v1801 = vpop.f32.mrf.mxu0
        %v1802 = vadd.f32 %v756, %v1801
        %v1803 = vpop.f32.mrf.mxu0
        %v1804 = vadd.f32 %v756, %v1803
        %1805 = vmatmul.bf16.gmra.mxu0 %v1166
        %v1806 = vpop.f32.mrf.mxu0
        %v1807 = vadd.f32 %v756, %v1806
        %v1808 = vpop.f32.mrf.mxu0
        %v1809 = vadd.f32 %v756, %v1808
        %1810 = vmatmul.bf16.gmra.mxu0 %v1174
        %v1811 = vpop.f32.mrf.mxu0
        %v1812 = vadd.f32 %v756, %v1811
        %v1813 = vpop.f32.mrf.mxu0
        %v1814 = vadd.f32 %v756, %v1813
        %1815 = vmatmul.bf16.gmra.mxu0 %v1182
        %v1816 = vpop.f32.mrf.mxu0
        %v1817 = vadd.f32 %v756, %v1816
        %v1818 = vpop.f32.mrf.mxu0
        %v1819 = vadd.f32 %v756, %v1818
        %1820 = vmatmul.bf16.gmra.mxu0 %v1190
        %v1821 = vpop.f32.mrf.mxu0
        %v1822 = vadd.f32 %v756, %v1821
        %v1823 = vpop.f32.mrf.mxu0
        %v1824 = vadd.f32 %v756, %v1823
        %1825 = vmatmul.bf16.gmra.mxu0 %v1198
        %v1826 = vpop.f32.mrf.mxu0
        %v1827 = vadd.f32 %v756, %v1826
        %v1828 = vpop.f32.mrf.mxu0
        %v1829 = vadd.f32 %v756, %v1828
        %1830 = vmatmul.bf16.gmra.mxu0 %v1206
        %v1831 = vpop.f32.mrf.mxu0
        %v1832 = vadd.f32 %v756, %v1831
        %v1833 = vpop.f32.mrf.mxu0
        %v1834 = vadd.f32 %v756, %v1833
        %1835 = vmatmul.bf16.gmra.mxu0 %v1214
        %v1836 = vpop.f32.mrf.mxu0
        %v1837 = vadd.f32 %v756, %v1836
        %v1838 = vpop.f32.mrf.mxu0
        %v1839 = vadd.f32 %v756, %v1838
        %1840 = vmatmul.bf16.gmra.mxu0 %v1222
        %v1841 = vpop.f32.mrf.mxu0
        %v1842 = vadd.f32 %v756, %v1841
        %v1843 = vpop.f32.mrf.mxu0
        %v1844 = vadd.f32 %v756, %v1843
        %1845 = vmatmul.bf16.gmra.mxu0 %v1230
        %v1846 = vpop.f32.mrf.mxu0
        %v1847 = vadd.f32 %v756, %v1846
        %v1848 = vpop.f32.mrf.mxu0
        %v1849 = vadd.f32 %v756, %v1848
        %1850 = vmatmul.bf16.gmra.mxu0 %v1238
        %v1851 = vpop.f32.mrf.mxu0
        %v1852 = vadd.f32 %v756, %v1851
        %v1853 = vpop.f32.mrf.mxu0
        %v1854 = vadd.f32 %v756, %v1853
        %1855 = vmatmul.bf16.gmra.mxu0 %v1246
        %v1856 = vpop.f32.mrf.mxu0
        %v1857 = vadd.f32 %v756, %v1856
        %v1858 = vpop.f32.mrf.mxu0
        %v1859 = vadd.f32 %v756, %v1858
        %1860 = vmatmul.bf16.gmra.mxu0 %v1254
        %v1861 = vpop.f32.mrf.mxu0
        %v1862 = vadd.f32 %v756, %v1861
        %v1863 = vpop.f32.mrf.mxu0
        %v1864 = vadd.f32 %v756, %v1863
        %1865 = vmatmul.bf16.gmra.mxu0 %v1262
        %v1866 = vpop.f32.mrf.mxu0
        %v1867 = vadd.f32 %v756, %v1866
        %v1868 = vpop.f32.mrf.mxu0
        %v1869 = vadd.f32 %v756, %v1868
        %1870 = vdwg.mxu0
        %1871 = vmatpush.bf16.msra.mxu0 %v1669
        %1872 = vmatpush.bf16.msra.mxu0 %v1668
        %1873 = vmatpush.bf16.msra.mxu0 %v1667
        %1874 = vmatpush.bf16.msra.mxu0 %v1666
        %1875 = vmatpush.bf16.msra.mxu0 %v1665
        %1876 = vmatpush.bf16.msra.mxu0 %v1664
        %1877 = vmatpush.bf16.msra.mxu0 %v1663
        %1878 = vmatpush.bf16.msra.mxu0 %v1662
        %1879 = vmatmul.bf16.gmra.mxu0 %v1143
        %v1880 = vpop.f32.mrf.mxu0
        %v1881 = vadd.f32 %v1792, %v1880
        %v1882 = vpop.f32.mrf.mxu0
        %v1883 = vadd.f32 %v1794, %v1882
        %1884 = vmatmul.bf16.gmra.mxu0 %v1151
        %v1885 = vpop.f32.mrf.mxu0
        %v1886 = vadd.f32 %v1797, %v1885
        %v1887 = vpop.f32.mrf.mxu0
        %v1888 = vadd.f32 %v1799, %v1887
        %1889 = vmatmul.bf16.gmra.mxu0 %v1159
        %v1890 = vpop.f32.mrf.mxu0
        %v1891 = vadd.f32 %v1802, %v1890
        %v1892 = vpop.f32.mrf.mxu0
        %v1893 = vadd.f32 %v1804, %v1892
        %1894 = vmatmul.bf16.gmra.mxu0 %v1167
        %v1895 = vpop.f32.mrf.mxu0
        %v1896 = vadd.f32 %v1807, %v1895
        %v1897 = vpop.f32.mrf.mxu0
        %v1898 = vadd.f32 %v1809, %v1897
        %1899 = vmatmul.bf16.gmra.mxu0 %v1175
        %v1900 = vpop.f32.mrf.mxu0
        %v1901 = vadd.f32 %v1812, %v1900
        %v1902 = vpop.f32.mrf.mxu0
        %v1903 = vadd.f32 %v1814, %v1902
        %1904 = vmatmul.bf16.gmra.mxu0 %v1183
        %v1905 = vpop.f32.mrf.mxu0
        %v1906 = vadd.f32 %v1817, %v1905
        %v1907 = vpop.f32.mrf.mxu0
        %v1908 = vadd.f32 %v1819, %v1907
        %1909 = vmatmul.bf16.gmra.mxu0 %v1191
        %v1910 = vpop.f32.mrf.mxu0
        %v1911 = vadd.f32 %v1822, %v1910
        %v1912 = vpop.f32.mrf.mxu0
        %v1913 = vadd.f32 %v1824, %v1912
        %1914 = vmatmul.bf16.gmra.mxu0 %v1199
        %v1915 = vpop.f32.mrf.mxu0
        %v1916 = vadd.f32 %v1827, %v1915
        %v1917 = vpop.f32.mrf.mxu0
        %v1918 = vadd.f32 %v1829, %v1917
        %1919 = vmatmul.bf16.gmra.mxu0 %v1207
        %v1920 = vpop.f32.mrf.mxu0
        %v1921 = vadd.f32 %v1832, %v1920
        %v1922 = vpop.f32.mrf.mxu0
        %v1923 = vadd.f32 %v1834, %v1922
        %1924 = vmatmul.bf16.gmra.mxu0 %v1215
        %v1925 = vpop.f32.mrf.mxu0
        %v1926 = vadd.f32 %v1837, %v1925
        %v1927 = vpop.f32.mrf.mxu0
        %v1928 = vadd.f32 %v1839, %v1927
        %1929 = vmatmul.bf16.gmra.mxu0 %v1223
        %v1930 = vpop.f32.mrf.mxu0
        %v1931 = vadd.f32 %v1842, %v1930
        %v1932 = vpop.f32.mrf.mxu0
        %v1933 = vadd.f32 %v1844, %v1932
        %1934 = vmatmul.bf16.gmra.mxu0 %v1231
        %v1935 = vpop.f32.mrf.mxu0
        %v1936 = vadd.f32 %v1847, %v1935
        %v1937 = vpop.f32.mrf.mxu0
        %v1938 = vadd.f32 %v1849, %v1937
        %1939 = vmatmul.bf16.gmra.mxu0 %v1239
        %v1940 = vpop.f32.mrf.mxu0
        %v1941 = vadd.f32 %v1852, %v1940
        %v1942 = vpop.f32.mrf.mxu0
        %v1943 = vadd.f32 %v1854, %v1942
        %1944 = vmatmul.bf16.gmra.mxu0 %v1247
        %v1945 = vpop.f32.mrf.mxu0
        %v1946 = vadd.f32 %v1857, %v1945
        %v1947 = vpop.f32.mrf.mxu0
        %v1948 = vadd.f32 %v1859, %v1947
        %1949 = vmatmul.bf16.gmra.mxu0 %v1255
        %v1950 = vpop.f32.mrf.mxu0
        %v1951 = vadd.f32 %v1862, %v1950
        %v1952 = vpop.f32.mrf.mxu0
        %v1953 = vadd.f32 %v1864, %v1952
        %1954 = vmatmul.bf16.gmra.mxu0 %v1263
        %v1955 = vpop.f32.mrf.mxu0
        %v1956 = vadd.f32 %v1867, %v1955
        %v1957 = vpop.f32.mrf.mxu0
        %v1958 = vadd.f32 %v1869, %v1957
        %1959 = vdwg.mxu0
        %1960 = vmatpush.bf16.msra.mxu0 %v1677
        %1961 = vmatpush.bf16.msra.mxu0 %v1676
        %1962 = vmatpush.bf16.msra.mxu0 %v1675
        %1963 = vmatpush.bf16.msra.mxu0 %v1674
        %1964 = vmatpush.bf16.msra.mxu0 %v1673
        %1965 = vmatpush.bf16.msra.mxu0 %v1672
        %1966 = vmatpush.bf16.msra.mxu0 %v1671
        %1967 = vmatpush.bf16.msra.mxu0 %v1670
        %1968 = vmatmul.bf16.gmra.mxu0 %v1144
        %v1969 = vpop.f32.mrf.mxu0
        %v1970 = vadd.f32 %v1881, %v1969
        %v1971 = vpop.f32.mrf.mxu0
        %v1972 = vadd.f32 %v1883, %v1971
        %1973 = vmatmul.bf16.gmra.mxu0 %v1152
        %v1974 = vpop.f32.mrf.mxu0
        %v1975 = vadd.f32 %v1886, %v1974
        %v1976 = vpop.f32.mrf.mxu0
        %v1977 = vadd.f32 %v1888, %v1976
        %1978 = vmatmul.bf16.gmra.mxu0 %v1160
        %v1979 = vpop.f32.mrf.mxu0
        %v1980 = vadd.f32 %v1891, %v1979
        %v1981 = vpop.f32.mrf.mxu0
        %v1982 = vadd.f32 %v1893, %v1981
        %1983 = vmatmul.bf16.gmra.mxu0 %v1168
        %v1984 = vpop.f32.mrf.mxu0
        %v1985 = vadd.f32 %v1896, %v1984
        %v1986 = vpop.f32.mrf.mxu0
        %v1987 = vadd.f32 %v1898, %v1986
        %1988 = vmatmul.bf16.gmra.mxu0 %v1176
        %v1989 = vpop.f32.mrf.mxu0
        %v1990 = vadd.f32 %v1901, %v1989
        %v1991 = vpop.f32.mrf.mxu0
        %v1992 = vadd.f32 %v1903, %v1991
        %1993 = vmatmul.bf16.gmra.mxu0 %v1184
        %v1994 = vpop.f32.mrf.mxu0
        %v1995 = vadd.f32 %v1906, %v1994
        %v1996 = vpop.f32.mrf.mxu0
        %v1997 = vadd.f32 %v1908, %v1996
        %1998 = vmatmul.bf16.gmra.mxu0 %v1192
        %v1999 = vpop.f32.mrf.mxu0
        %v2000 = vadd.f32 %v1911, %v1999
        %v2001 = vpop.f32.mrf.mxu0
        %v2002 = vadd.f32 %v1913, %v2001
        %2003 = vmatmul.bf16.gmra.mxu0 %v1200
        %v2004 = vpop.f32.mrf.mxu0
        %v2005 = vadd.f32 %v1916, %v2004
        %v2006 = vpop.f32.mrf.mxu0
        %v2007 = vadd.f32 %v1918, %v2006
        %2008 = vmatmul.bf16.gmra.mxu0 %v1208
        %v2009 = vpop.f32.mrf.mxu0
        %v2010 = vadd.f32 %v1921, %v2009
        %v2011 = vpop.f32.mrf.mxu0
        %v2012 = vadd.f32 %v1923, %v2011
        %2013 = vmatmul.bf16.gmra.mxu0 %v1216
        %v2014 = vpop.f32.mrf.mxu0
        %v2015 = vadd.f32 %v1926, %v2014
        %v2016 = vpop.f32.mrf.mxu0
        %v2017 = vadd.f32 %v1928, %v2016
        %2018 = vmatmul.bf16.gmra.mxu0 %v1224
        %v2019 = vpop.f32.mrf.mxu0
        %v2020 = vadd.f32 %v1931, %v2019
        %v2021 = vpop.f32.mrf.mxu0
        %v2022 = vadd.f32 %v1933, %v2021
        %2023 = vmatmul.bf16.gmra.mxu0 %v1232
        %v2024 = vpop.f32.mrf.mxu0
        %v2025 = vadd.f32 %v1936, %v2024
        %v2026 = vpop.f32.mrf.mxu0
        %v2027 = vadd.f32 %v1938, %v2026
        %2028 = vmatmul.bf16.gmra.mxu0 %v1240
        %v2029 = vpop.f32.mrf.mxu0
        %v2030 = vadd.f32 %v1941, %v2029
        %v2031 = vpop.f32.mrf.mxu0
        %v2032 = vadd.f32 %v1943, %v2031
        %2033 = vmatmul.bf16.gmra.mxu0 %v1248
        %v2034 = vpop.f32.mrf.mxu0
        %v2035 = vadd.f32 %v1946, %v2034
        %v2036 = vpop.f32.mrf.mxu0
        %v2037 = vadd.f32 %v1948, %v2036
        %2038 = vmatmul.bf16.gmra.mxu0 %v1256
        %v2039 = vpop.f32.mrf.mxu0
        %v2040 = vadd.f32 %v1951, %v2039
        %v2041 = vpop.f32.mrf.mxu0
        %v2042 = vadd.f32 %v1953, %v2041
        %2043 = vmatmul.bf16.gmra.mxu0 %v1264
        %v2044 = vpop.f32.mrf.mxu0
        %v2045 = vadd.f32 %v1956, %v2044
        %v2046 = vpop.f32.mrf.mxu0
        %v2047 = vadd.f32 %v1958, %v2046
        %2048 = vdwg.mxu0
        %2049 = vmatpush.bf16.msra.mxu0 %v1685
        %2050 = vmatpush.bf16.msra.mxu0 %v1684
        %2051 = vmatpush.bf16.msra.mxu0 %v1683
        %2052 = vmatpush.bf16.msra.mxu0 %v1682
        %2053 = vmatpush.bf16.msra.mxu0 %v1681
        %2054 = vmatpush.bf16.msra.mxu0 %v1680
        %2055 = vmatpush.bf16.msra.mxu0 %v1679
        %2056 = vmatpush.bf16.msra.mxu0 %v1678
        %2057 = vmatmul.bf16.gmra.mxu0 %v1145
        %v2058 = vpop.f32.mrf.mxu0
        %v2059 = vadd.f32 %v1970, %v2058
        %v2060 = vpop.f32.mrf.mxu0
        %v2061 = vadd.f32 %v1972, %v2060
        %2062 = vmatmul.bf16.gmra.mxu0 %v1153
        %v2063 = vpop.f32.mrf.mxu0
        %v2064 = vadd.f32 %v1975, %v2063
        %v2065 = vpop.f32.mrf.mxu0
        %v2066 = vadd.f32 %v1977, %v2065
        %2067 = vmatmul.bf16.gmra.mxu0 %v1161
        %v2068 = vpop.f32.mrf.mxu0
        %v2069 = vadd.f32 %v1980, %v2068
        %v2070 = vpop.f32.mrf.mxu0
        %v2071 = vadd.f32 %v1982, %v2070
        %2072 = vmatmul.bf16.gmra.mxu0 %v1169
        %v2073 = vpop.f32.mrf.mxu0
        %v2074 = vadd.f32 %v1985, %v2073
        %v2075 = vpop.f32.mrf.mxu0
        %v2076 = vadd.f32 %v1987, %v2075
        %2077 = vmatmul.bf16.gmra.mxu0 %v1177
        %v2078 = vpop.f32.mrf.mxu0
        %v2079 = vadd.f32 %v1990, %v2078
        %v2080 = vpop.f32.mrf.mxu0
        %v2081 = vadd.f32 %v1992, %v2080
        %2082 = vmatmul.bf16.gmra.mxu0 %v1185
        %v2083 = vpop.f32.mrf.mxu0
        %v2084 = vadd.f32 %v1995, %v2083
        %v2085 = vpop.f32.mrf.mxu0
        %v2086 = vadd.f32 %v1997, %v2085
        %2087 = vmatmul.bf16.gmra.mxu0 %v1193
        %v2088 = vpop.f32.mrf.mxu0
        %v2089 = vadd.f32 %v2000, %v2088
        %v2090 = vpop.f32.mrf.mxu0
        %v2091 = vadd.f32 %v2002, %v2090
        %2092 = vmatmul.bf16.gmra.mxu0 %v1201
        %v2093 = vpop.f32.mrf.mxu0
        %v2094 = vadd.f32 %v2005, %v2093
        %v2095 = vpop.f32.mrf.mxu0
        %v2096 = vadd.f32 %v2007, %v2095
        %2097 = vmatmul.bf16.gmra.mxu0 %v1209
        %v2098 = vpop.f32.mrf.mxu0
        %v2099 = vadd.f32 %v2010, %v2098
        %v2100 = vpop.f32.mrf.mxu0
        %v2101 = vadd.f32 %v2012, %v2100
        %2102 = vmatmul.bf16.gmra.mxu0 %v1217
        %v2103 = vpop.f32.mrf.mxu0
        %v2104 = vadd.f32 %v2015, %v2103
        %v2105 = vpop.f32.mrf.mxu0
        %v2106 = vadd.f32 %v2017, %v2105
        %2107 = vmatmul.bf16.gmra.mxu0 %v1225
        %v2108 = vpop.f32.mrf.mxu0
        %v2109 = vadd.f32 %v2020, %v2108
        %v2110 = vpop.f32.mrf.mxu0
        %v2111 = vadd.f32 %v2022, %v2110
        %2112 = vmatmul.bf16.gmra.mxu0 %v1233
        %v2113 = vpop.f32.mrf.mxu0
        %v2114 = vadd.f32 %v2025, %v2113
        %v2115 = vpop.f32.mrf.mxu0
        %v2116 = vadd.f32 %v2027, %v2115
        %2117 = vmatmul.bf16.gmra.mxu0 %v1241
        %v2118 = vpop.f32.mrf.mxu0
        %v2119 = vadd.f32 %v2030, %v2118
        %v2120 = vpop.f32.mrf.mxu0
        %v2121 = vadd.f32 %v2032, %v2120
        %2122 = vmatmul.bf16.gmra.mxu0 %v1249
        %v2123 = vpop.f32.mrf.mxu0
        %v2124 = vadd.f32 %v2035, %v2123
        %v2125 = vpop.f32.mrf.mxu0
        %v2126 = vadd.f32 %v2037, %v2125
        %2127 = vmatmul.bf16.gmra.mxu0 %v1257
        %v2128 = vpop.f32.mrf.mxu0
        %v2129 = vadd.f32 %v2040, %v2128
        %v2130 = vpop.f32.mrf.mxu0
        %v2131 = vadd.f32 %v2042, %v2130
        %2132 = vmatmul.bf16.gmra.mxu0 %v1265
        %v2133 = vpop.f32.mrf.mxu0
        %v2134 = vadd.f32 %v2045, %v2133
        %v2135 = vpop.f32.mrf.mxu0
        %v2136 = vadd.f32 %v2047, %v2135
        %2137 = vdwg.mxu0
        %2138 = vmatpush.bf16.msra.mxu0 %v1693
        %2139 = vmatpush.bf16.msra.mxu0 %v1692
        %2140 = vmatpush.bf16.msra.mxu0 %v1691
        %2141 = vmatpush.bf16.msra.mxu0 %v1690
        %2142 = vmatpush.bf16.msra.mxu0 %v1689
        %2143 = vmatpush.bf16.msra.mxu0 %v1688
        %2144 = vmatpush.bf16.msra.mxu0 %v1687
        %2145 = vmatpush.bf16.msra.mxu0 %v1686
        %2146 = vmatmul.bf16.gmra.mxu0 %v1146
        %v2147 = vpop.f32.mrf.mxu0
        %v2148 = vadd.f32 %v2059, %v2147
        %v2149 = vpop.f32.mrf.mxu0
        %v2150 = vadd.f32 %v2061, %v2149
        %2151 = vmatmul.bf16.gmra.mxu0 %v1154
        %v2152 = vpop.f32.mrf.mxu0
        %v2153 = vadd.f32 %v2064, %v2152
        %v2154 = vpop.f32.mrf.mxu0
        %v2155 = vadd.f32 %v2066, %v2154
        %2156 = vmatmul.bf16.gmra.mxu0 %v1162
        %v2157 = vpop.f32.mrf.mxu0
        %v2158 = vadd.f32 %v2069, %v2157
        %v2159 = vpop.f32.mrf.mxu0
        %v2160 = vadd.f32 %v2071, %v2159
        %2161 = vmatmul.bf16.gmra.mxu0 %v1170
        %v2162 = vpop.f32.mrf.mxu0
        %v2163 = vadd.f32 %v2074, %v2162
        %v2164 = vpop.f32.mrf.mxu0
        %v2165 = vadd.f32 %v2076, %v2164
        %2166 = vmatmul.bf16.gmra.mxu0 %v1178
        %v2167 = vpop.f32.mrf.mxu0
        %v2168 = vadd.f32 %v2079, %v2167
        %v2169 = vpop.f32.mrf.mxu0
        %v2170 = vadd.f32 %v2081, %v2169
        %2171 = vmatmul.bf16.gmra.mxu0 %v1186
        %v2172 = vpop.f32.mrf.mxu0
        %v2173 = vadd.f32 %v2084, %v2172
        %v2174 = vpop.f32.mrf.mxu0
        %v2175 = vadd.f32 %v2086, %v2174
        %2176 = vmatmul.bf16.gmra.mxu0 %v1194
        %v2177 = vpop.f32.mrf.mxu0
        %v2178 = vadd.f32 %v2089, %v2177
        %v2179 = vpop.f32.mrf.mxu0
        %v2180 = vadd.f32 %v2091, %v2179
        %2181 = vmatmul.bf16.gmra.mxu0 %v1202
        %v2182 = vpop.f32.mrf.mxu0
        %v2183 = vadd.f32 %v2094, %v2182
        %v2184 = vpop.f32.mrf.mxu0
        %v2185 = vadd.f32 %v2096, %v2184
        %2186 = vmatmul.bf16.gmra.mxu0 %v1210
        %v2187 = vpop.f32.mrf.mxu0
        %v2188 = vadd.f32 %v2099, %v2187
        %v2189 = vpop.f32.mrf.mxu0
        %v2190 = vadd.f32 %v2101, %v2189
        %2191 = vmatmul.bf16.gmra.mxu0 %v1218
        %v2192 = vpop.f32.mrf.mxu0
        %v2193 = vadd.f32 %v2104, %v2192
        %v2194 = vpop.f32.mrf.mxu0
        %v2195 = vadd.f32 %v2106, %v2194
        %2196 = vmatmul.bf16.gmra.mxu0 %v1226
        %v2197 = vpop.f32.mrf.mxu0
        %v2198 = vadd.f32 %v2109, %v2197
        %v2199 = vpop.f32.mrf.mxu0
        %v2200 = vadd.f32 %v2111, %v2199
        %2201 = vmatmul.bf16.gmra.mxu0 %v1234
        %v2202 = vpop.f32.mrf.mxu0
        %v2203 = vadd.f32 %v2114, %v2202
        %v2204 = vpop.f32.mrf.mxu0
        %v2205 = vadd.f32 %v2116, %v2204
        %2206 = vmatmul.bf16.gmra.mxu0 %v1242
        %v2207 = vpop.f32.mrf.mxu0
        %v2208 = vadd.f32 %v2119, %v2207
        %v2209 = vpop.f32.mrf.mxu0
        %v2210 = vadd.f32 %v2121, %v2209
        %2211 = vmatmul.bf16.gmra.mxu0 %v1250
        %v2212 = vpop.f32.mrf.mxu0
        %v2213 = vadd.f32 %v2124, %v2212
        %v2214 = vpop.f32.mrf.mxu0
        %v2215 = vadd.f32 %v2126, %v2214
        %2216 = vmatmul.bf16.gmra.mxu0 %v1258
        %v2217 = vpop.f32.mrf.mxu0
        %v2218 = vadd.f32 %v2129, %v2217
        %v2219 = vpop.f32.mrf.mxu0
        %v2220 = vadd.f32 %v2131, %v2219
        %2221 = vmatmul.bf16.gmra.mxu0 %v1266
        %v2222 = vpop.f32.mrf.mxu0
        %v2223 = vadd.f32 %v2134, %v2222
        %v2224 = vpop.f32.mrf.mxu0
        %v2225 = vadd.f32 %v2136, %v2224
        %2226 = vdwg.mxu0
        %2227 = vmatpush.bf16.msra.mxu0 %v1701
        %2228 = vmatpush.bf16.msra.mxu0 %v1700
        %2229 = vmatpush.bf16.msra.mxu0 %v1699
        %2230 = vmatpush.bf16.msra.mxu0 %v1698
        %2231 = vmatpush.bf16.msra.mxu0 %v1697
        %2232 = vmatpush.bf16.msra.mxu0 %v1696
        %2233 = vmatpush.bf16.msra.mxu0 %v1695
        %2234 = vmatpush.bf16.msra.mxu0 %v1694
        %2235 = vmatmul.bf16.gmra.mxu0 %v1147
        %v2236 = vpop.f32.mrf.mxu0
        %v2237 = vadd.f32 %v2148, %v2236
        %v2238 = vpop.f32.mrf.mxu0
        %v2239 = vadd.f32 %v2150, %v2238
        %2240 = vmatmul.bf16.gmra.mxu0 %v1155
        %v2241 = vpop.f32.mrf.mxu0
        %v2242 = vadd.f32 %v2153, %v2241
        %v2243 = vpop.f32.mrf.mxu0
        %v2244 = vadd.f32 %v2155, %v2243
        %2245 = vmatmul.bf16.gmra.mxu0 %v1163
        %v2246 = vpop.f32.mrf.mxu0
        %v2247 = vadd.f32 %v2158, %v2246
        %v2248 = vpop.f32.mrf.mxu0
        %v2249 = vadd.f32 %v2160, %v2248
        %2250 = vmatmul.bf16.gmra.mxu0 %v1171
        %v2251 = vpop.f32.mrf.mxu0
        %v2252 = vadd.f32 %v2163, %v2251
        %v2253 = vpop.f32.mrf.mxu0
        %v2254 = vadd.f32 %v2165, %v2253
        %2255 = vmatmul.bf16.gmra.mxu0 %v1179
        %v2256 = vpop.f32.mrf.mxu0
        %v2257 = vadd.f32 %v2168, %v2256
        %v2258 = vpop.f32.mrf.mxu0
        %v2259 = vadd.f32 %v2170, %v2258
        %2260 = vmatmul.bf16.gmra.mxu0 %v1187
        %v2261 = vpop.f32.mrf.mxu0
        %v2262 = vadd.f32 %v2173, %v2261
        %v2263 = vpop.f32.mrf.mxu0
        %v2264 = vadd.f32 %v2175, %v2263
        %2265 = vmatmul.bf16.gmra.mxu0 %v1195
        %v2266 = vpop.f32.mrf.mxu0
        %v2267 = vadd.f32 %v2178, %v2266
        %v2268 = vpop.f32.mrf.mxu0
        %v2269 = vadd.f32 %v2180, %v2268
        %2270 = vmatmul.bf16.gmra.mxu0 %v1203
        %v2271 = vpop.f32.mrf.mxu0
        %v2272 = vadd.f32 %v2183, %v2271
        %v2273 = vpop.f32.mrf.mxu0
        %v2274 = vadd.f32 %v2185, %v2273
        %2275 = vmatmul.bf16.gmra.mxu0 %v1211
        %v2276 = vpop.f32.mrf.mxu0
        %v2277 = vadd.f32 %v2188, %v2276
        %v2278 = vpop.f32.mrf.mxu0
        %v2279 = vadd.f32 %v2190, %v2278
        %2280 = vmatmul.bf16.gmra.mxu0 %v1219
        %v2281 = vpop.f32.mrf.mxu0
        %v2282 = vadd.f32 %v2193, %v2281
        %v2283 = vpop.f32.mrf.mxu0
        %v2284 = vadd.f32 %v2195, %v2283
        %2285 = vmatmul.bf16.gmra.mxu0 %v1227
        %v2286 = vpop.f32.mrf.mxu0
        %v2287 = vadd.f32 %v2198, %v2286
        %v2288 = vpop.f32.mrf.mxu0
        %v2289 = vadd.f32 %v2200, %v2288
        %2290 = vmatmul.bf16.gmra.mxu0 %v1235
        %v2291 = vpop.f32.mrf.mxu0
        %v2292 = vadd.f32 %v2203, %v2291
        %v2293 = vpop.f32.mrf.mxu0
        %v2294 = vadd.f32 %v2205, %v2293
        %2295 = vmatmul.bf16.gmra.mxu0 %v1243
        %v2296 = vpop.f32.mrf.mxu0
        %v2297 = vadd.f32 %v2208, %v2296
        %v2298 = vpop.f32.mrf.mxu0
        %v2299 = vadd.f32 %v2210, %v2298
        %2300 = vmatmul.bf16.gmra.mxu0 %v1251
        %v2301 = vpop.f32.mrf.mxu0
        %v2302 = vadd.f32 %v2213, %v2301
        %v2303 = vpop.f32.mrf.mxu0
        %v2304 = vadd.f32 %v2215, %v2303
        %2305 = vmatmul.bf16.gmra.mxu0 %v1259
        %v2306 = vpop.f32.mrf.mxu0
        %v2307 = vadd.f32 %v2218, %v2306
        %v2308 = vpop.f32.mrf.mxu0
        %v2309 = vadd.f32 %v2220, %v2308
        %2310 = vmatmul.bf16.gmra.mxu0 %v1267
        %v2311 = vpop.f32.mrf.mxu0
        %v2312 = vadd.f32 %v2223, %v2311
        %v2313 = vpop.f32.mrf.mxu0
        %v2314 = vadd.f32 %v2225, %v2313
        %2315 = vdwg.mxu0
        %2316 = vmatpush.bf16.msra.mxu0 %v1709
        %2317 = vmatpush.bf16.msra.mxu0 %v1708
        %2318 = vmatpush.bf16.msra.mxu0 %v1707
        %2319 = vmatpush.bf16.msra.mxu0 %v1706
        %2320 = vmatpush.bf16.msra.mxu0 %v1705
        %2321 = vmatpush.bf16.msra.mxu0 %v1704
        %2322 = vmatpush.bf16.msra.mxu0 %v1703
        %2323 = vmatpush.bf16.msra.mxu0 %v1702
        %2324 = vmatmul.bf16.gmra.mxu0 %v1148
        %v2325 = vpop.f32.mrf.mxu0
        %v2326 = vadd.f32 %v2237, %v2325
        %v2327 = vpop.f32.mrf.mxu0
        %v2328 = vadd.f32 %v2239, %v2327
        %2329 = vmatmul.bf16.gmra.mxu0 %v1156
        %v2330 = vpop.f32.mrf.mxu0
        %v2331 = vadd.f32 %v2242, %v2330
        %v2332 = vpop.f32.mrf.mxu0
        %v2333 = vadd.f32 %v2244, %v2332
        %2334 = vmatmul.bf16.gmra.mxu0 %v1164
        %v2335 = vpop.f32.mrf.mxu0
        %v2336 = vadd.f32 %v2247, %v2335
        %v2337 = vpop.f32.mrf.mxu0
        %v2338 = vadd.f32 %v2249, %v2337
        %2339 = vmatmul.bf16.gmra.mxu0 %v1172
        %v2340 = vpop.f32.mrf.mxu0
        %v2341 = vadd.f32 %v2252, %v2340
        %v2342 = vpop.f32.mrf.mxu0
        %v2343 = vadd.f32 %v2254, %v2342
        %2344 = vmatmul.bf16.gmra.mxu0 %v1180
        %v2345 = vpop.f32.mrf.mxu0
        %v2346 = vadd.f32 %v2257, %v2345
        %v2347 = vpop.f32.mrf.mxu0
        %v2348 = vadd.f32 %v2259, %v2347
        %2349 = vmatmul.bf16.gmra.mxu0 %v1188
        %v2350 = vpop.f32.mrf.mxu0
        %v2351 = vadd.f32 %v2262, %v2350
        %v2352 = vpop.f32.mrf.mxu0
        %v2353 = vadd.f32 %v2264, %v2352
        %2354 = vmatmul.bf16.gmra.mxu0 %v1196
        %v2355 = vpop.f32.mrf.mxu0
        %v2356 = vadd.f32 %v2267, %v2355
        %v2357 = vpop.f32.mrf.mxu0
        %v2358 = vadd.f32 %v2269, %v2357
        %2359 = vmatmul.bf16.gmra.mxu0 %v1204
        %v2360 = vpop.f32.mrf.mxu0
        %v2361 = vadd.f32 %v2272, %v2360
        %v2362 = vpop.f32.mrf.mxu0
        %v2363 = vadd.f32 %v2274, %v2362
        %2364 = vmatmul.bf16.gmra.mxu0 %v1212
        %v2365 = vpop.f32.mrf.mxu0
        %v2366 = vadd.f32 %v2277, %v2365
        %v2367 = vpop.f32.mrf.mxu0
        %v2368 = vadd.f32 %v2279, %v2367
        %2369 = vmatmul.bf16.gmra.mxu0 %v1220
        %v2370 = vpop.f32.mrf.mxu0
        %v2371 = vadd.f32 %v2282, %v2370
        %v2372 = vpop.f32.mrf.mxu0
        %v2373 = vadd.f32 %v2284, %v2372
        %2374 = vmatmul.bf16.gmra.mxu0 %v1228
        %v2375 = vpop.f32.mrf.mxu0
        %v2376 = vadd.f32 %v2287, %v2375
        %v2377 = vpop.f32.mrf.mxu0
        %v2378 = vadd.f32 %v2289, %v2377
        %2379 = vmatmul.bf16.gmra.mxu0 %v1236
        %v2380 = vpop.f32.mrf.mxu0
        %v2381 = vadd.f32 %v2292, %v2380
        %v2382 = vpop.f32.mrf.mxu0
        %v2383 = vadd.f32 %v2294, %v2382
        %2384 = vmatmul.bf16.gmra.mxu0 %v1244
        %v2385 = vpop.f32.mrf.mxu0
        %v2386 = vadd.f32 %v2297, %v2385
        %v2387 = vpop.f32.mrf.mxu0
        %v2388 = vadd.f32 %v2299, %v2387
        %2389 = vmatmul.bf16.gmra.mxu0 %v1252
        %v2390 = vpop.f32.mrf.mxu0
        %v2391 = vadd.f32 %v2302, %v2390
        %v2392 = vpop.f32.mrf.mxu0
        %v2393 = vadd.f32 %v2304, %v2392
        %2394 = vmatmul.bf16.gmra.mxu0 %v1260
        %v2395 = vpop.f32.mrf.mxu0
        %v2396 = vadd.f32 %v2307, %v2395
        %v2397 = vpop.f32.mrf.mxu0
        %v2398 = vadd.f32 %v2309, %v2397
        %2399 = vmatmul.bf16.gmra.mxu0 %v1268
        %v2400 = vpop.f32.mrf.mxu0
        %v2401 = vadd.f32 %v2312, %v2400
        %v2402 = vpop.f32.mrf.mxu0
        %v2403 = vadd.f32 %v2314, %v2402
        %2404 = vdwg.mxu0
        %2405 = vmatpush.bf16.msra.mxu0 %v1717
        %2406 = vmatpush.bf16.msra.mxu0 %v1716
        %2407 = vmatpush.bf16.msra.mxu0 %v1715
        %2408 = vmatpush.bf16.msra.mxu0 %v1714
        %2409 = vmatpush.bf16.msra.mxu0 %v1713
        %2410 = vmatpush.bf16.msra.mxu0 %v1712
        %2411 = vmatpush.bf16.msra.mxu0 %v1711
        %2412 = vmatpush.bf16.msra.mxu0 %v1710
        %2413 = vmatmul.bf16.gmra.mxu0 %v1149
        %v2414 = vpop.f32.mrf.mxu0
        %v2415 = vadd.f32 %v2326, %v2414
        %v2416 = vpop.f32.mrf.mxu0
        %v2417 = vadd.f32 %v2328, %v2416
        %2418 = vmatmul.bf16.gmra.mxu0 %v1157
        %v2419 = vpop.f32.mrf.mxu0
        %v2420 = vadd.f32 %v2331, %v2419
        %v2421 = vpop.f32.mrf.mxu0
        %v2422 = vadd.f32 %v2333, %v2421
        %2423 = vmatmul.bf16.gmra.mxu0 %v1165
        %v2424 = vpop.f32.mrf.mxu0
        %v2425 = vadd.f32 %v2336, %v2424
        %v2426 = vpop.f32.mrf.mxu0
        %v2427 = vadd.f32 %v2338, %v2426
        %2428 = vmatmul.bf16.gmra.mxu0 %v1173
        %v2429 = vpop.f32.mrf.mxu0
        %v2430 = vadd.f32 %v2341, %v2429
        %v2431 = vpop.f32.mrf.mxu0
        %v2432 = vadd.f32 %v2343, %v2431
        %2433 = vmatmul.bf16.gmra.mxu0 %v1181
        %v2434 = vpop.f32.mrf.mxu0
        %v2435 = vadd.f32 %v2346, %v2434
        %v2436 = vpop.f32.mrf.mxu0
        %v2437 = vadd.f32 %v2348, %v2436
        %2438 = vmatmul.bf16.gmra.mxu0 %v1189
        %v2439 = vpop.f32.mrf.mxu0
        %v2440 = vadd.f32 %v2351, %v2439
        %v2441 = vpop.f32.mrf.mxu0
        %v2442 = vadd.f32 %v2353, %v2441
        %2443 = vmatmul.bf16.gmra.mxu0 %v1197
        %v2444 = vpop.f32.mrf.mxu0
        %v2445 = vadd.f32 %v2356, %v2444
        %v2446 = vpop.f32.mrf.mxu0
        %v2447 = vadd.f32 %v2358, %v2446
        %2448 = vmatmul.bf16.gmra.mxu0 %v1205
        %v2449 = vpop.f32.mrf.mxu0
        %v2450 = vadd.f32 %v2361, %v2449
        %v2451 = vpop.f32.mrf.mxu0
        %v2452 = vadd.f32 %v2363, %v2451
        %2453 = vmatmul.bf16.gmra.mxu0 %v1213
        %v2454 = vpop.f32.mrf.mxu0
        %v2455 = vadd.f32 %v2366, %v2454
        %v2456 = vpop.f32.mrf.mxu0
        %v2457 = vadd.f32 %v2368, %v2456
        %2458 = vmatmul.bf16.gmra.mxu0 %v1221
        %v2459 = vpop.f32.mrf.mxu0
        %v2460 = vadd.f32 %v2371, %v2459
        %v2461 = vpop.f32.mrf.mxu0
        %v2462 = vadd.f32 %v2373, %v2461
        %2463 = vmatmul.bf16.gmra.mxu0 %v1229
        %v2464 = vpop.f32.mrf.mxu0
        %v2465 = vadd.f32 %v2376, %v2464
        %v2466 = vpop.f32.mrf.mxu0
        %v2467 = vadd.f32 %v2378, %v2466
        %2468 = vmatmul.bf16.gmra.mxu0 %v1237
        %v2469 = vpop.f32.mrf.mxu0
        %v2470 = vadd.f32 %v2381, %v2469
        %v2471 = vpop.f32.mrf.mxu0
        %v2472 = vadd.f32 %v2383, %v2471
        %2473 = vmatmul.bf16.gmra.mxu0 %v1245
        %v2474 = vpop.f32.mrf.mxu0
        %v2475 = vadd.f32 %v2386, %v2474
        %v2476 = vpop.f32.mrf.mxu0
        %v2477 = vadd.f32 %v2388, %v2476
        %2478 = vmatmul.bf16.gmra.mxu0 %v1253
        %v2479 = vpop.f32.mrf.mxu0
        %v2480 = vadd.f32 %v2391, %v2479
        %v2481 = vpop.f32.mrf.mxu0
        %v2482 = vadd.f32 %v2393, %v2481
        %2483 = vmatmul.bf16.gmra.mxu0 %v1261
        %v2484 = vpop.f32.mrf.mxu0
        %v2485 = vadd.f32 %v2396, %v2484
        %v2486 = vpop.f32.mrf.mxu0
        %v2487 = vadd.f32 %v2398, %v2486
        %2488 = vmatmul.bf16.gmra.mxu0 %v1269
        %v2489 = vpop.f32.mrf.mxu0
        %v2490 = vadd.f32 %v2401, %v2489
        %v2491 = vpop.f32.mrf.mxu0
        %v2492 = vadd.f32 %v2403, %v2491
        %2493 = vdwg.mxu0
        %v2494 = vmax.f32 %v2415, 0.0
        %v2495 = vmax.f32 %v2417, 0.0
        %v2496 = vmax.f32 %v2420, 0.0
        %v2497 = vmax.f32 %v2422, 0.0
        %v2498 = vmax.f32 %v2425, 0.0
        %v2499 = vmax.f32 %v2427, 0.0
        %v2500 = vmax.f32 %v2430, 0.0
        %v2501 = vmax.f32 %v2432, 0.0
        %v2502 = vmax.f32 %v2435, 0.0
        %v2503 = vmax.f32 %v2437, 0.0
        %v2504 = vmax.f32 %v2440, 0.0
        %v2505 = vmax.f32 %v2442, 0.0
        %v2506 = vmax.f32 %v2445, 0.0
        %v2507 = vmax.f32 %v2447, 0.0
        %v2508 = vmax.f32 %v2450, 0.0
        %v2509 = vmax.f32 %v2452, 0.0
        %v2510 = vmax.f32 %v2455, 0.0
        %v2511 = vmax.f32 %v2457, 0.0
        %v2512 = vmax.f32 %v2460, 0.0
        %v2513 = vmax.f32 %v2462, 0.0
        %v2514 = vmax.f32 %v2465, 0.0
        %v2515 = vmax.f32 %v2467, 0.0
        %v2516 = vmax.f32 %v2470, 0.0
        %v2517 = vmax.f32 %v2472, 0.0
        %v2518 = vmax.f32 %v2475, 0.0
        %v2519 = vmax.f32 %v2477, 0.0
        %v2520 = vmax.f32 %v2480, 0.0
        %v2521 = vmax.f32 %v2482, 0.0
        %v2522 = vmax.f32 %v2485, 0.0
        %v2523 = vmax.f32 %v2487, 0.0
        %v2524 = vmax.f32 %v2490, 0.0
        %v2525 = vmax.f32 %v2492, 0.0
        %v2526 = vld [vmem:[#allocation13] sm:$0xff]
        %v2527 = vld [vmem:[#allocation13 + $0x8] sm:$0xff]
        %v2528 = vld [vmem:[#allocation13 + $0x10] sm:$0xff]
        %v2529 = vld [vmem:[#allocation13 + $0x18] sm:$0xff]
        %v2530 = vld [vmem:[#allocation13 + $0x20] sm:$0xff]
        %v2531 = vld [vmem:[#allocation13 + $0x28] sm:$0xff]
        %v2532 = vld [vmem:[#allocation13 + $0x30] sm:$0xff]
        %v2533 = vld [vmem:[#allocation13 + $0x38] sm:$0xff]
        %v2534 = vld [vmem:[#allocation14] sm:$0x1]
        %v2536 = vperm.slane %v2534, 0
        %vm2538 = vcmask 523264
        %v2540 = vsel %vm2538, %v2494, 0
        %v2543 = vsel %vm2538, %v2495, 0
        %v2546 = vsel %vm2538, %v2496, 0
        %v2549 = vsel %vm2538, %v2497, 0
        %v2552 = vsel %vm2538, %v2498, 0
        %v2555 = vsel %vm2538, %v2499, 0
        %v2558 = vsel %vm2538, %v2500, 0
        %v2561 = vsel %vm2538, %v2501, 0
        %v2564 = vsel %vm2538, %v2502, 0
        %v2567 = vsel %vm2538, %v2503, 0
        %v2570 = vsel %vm2538, %v2504, 0
        %v2573 = vsel %vm2538, %v2505, 0
        %v2576 = vsel %vm2538, %v2506, 0
        %v2579 = vsel %vm2538, %v2507, 0
        %v2582 = vsel %vm2538, %v2508, 0
        %v2585 = vsel %vm2538, %v2509, 0
        %v2588 = vsel %vm2538, %v2510, 0
        %v2591 = vsel %vm2538, %v2511, 0
        %v2594 = vsel %vm2538, %v2512, 0
        %v2597 = vsel %vm2538, %v2513, 0
        %v2600 = vsel %vm2538, %v2514, 0
        %v2603 = vsel %vm2538, %v2515, 0
        %v2606 = vsel %vm2538, %v2516, 0
        %v2609 = vsel %vm2538, %v2517, 0
        %v2612 = vsel %vm2538, %v2518, 0
        %v2615 = vsel %vm2538, %v2519, 0
        %v2618 = vsel %vm2538, %v2520, 0
        %v2621 = vsel %vm2538, %v2521, 0
        %v2624 = vsel %vm2538, %v2522, 0
        %v2627 = vsel %vm2538, %v2523, 0
        %v2630 = vsel %vm2538, %v2524, 0
        %v2633 = vsel %vm2538, %v2525, 0
        %2635 = vmatpush.msra.mxu0 0.0
        %2636 = vmatpush.msra.mxu0 0.0
        %2637 = vmatpush.msra.mxu0 0.0
        %2638 = vmatpush.msra.mxu0 0.0
        %2639 = vmatpush.msra.mxu0 0.0
        %2640 = vmatpush.msra.mxu0 0.0
        %2641 = vmatpush.msra.mxu0 0.0
        %2642 = vmatpush.msra.mxu0 0.0
        %2643 = vmatpush.msra.mxu0 %v2533
        %2644 = vmatpush.msra.mxu0 %v2532
        %2645 = vmatpush.msra.mxu0 %v2531
        %2646 = vmatpush.msra.mxu0 %v2530
        %2647 = vmatpush.msra.mxu0 %v2529
        %2648 = vmatpush.msra.mxu0 %v2528
        %2649 = vmatpush.msra.mxu0 %v2527
        %2650 = vmatpush.msra.mxu0 %v2526
        %2651 = vmatmul.f32.gmra.mxu0 %v2540
        %v2652 = vpop.f32.mrf.mxu0
        %v2653 = vadd.f32 %v2536, %v2652
        %2654 = vmatmul.f32.gmra.mxu0 %v2543
        %v2655 = vpop.f32.mrf.mxu0
        %v2656 = vadd.f32 %v2536, %v2655
        %2657 = vmatmul.f32.gmra.mxu0 %v2546
        %v2658 = vpop.f32.mrf.mxu0
        %v2659 = vadd.f32 %v2536, %v2658
        %2660 = vmatmul.f32.gmra.mxu0 %v2549
        %v2661 = vpop.f32.mrf.mxu0
        %v2662 = vadd.f32 %v2536, %v2661
        %2663 = vmatmul.f32.gmra.mxu0 %v2552
        %v2664 = vpop.f32.mrf.mxu0
        %v2665 = vadd.f32 %v2536, %v2664
        %2666 = vmatmul.f32.gmra.mxu0 %v2555
        %v2667 = vpop.f32.mrf.mxu0
        %v2668 = vadd.f32 %v2536, %v2667
        %2669 = vmatmul.f32.gmra.mxu0 %v2558
        %v2670 = vpop.f32.mrf.mxu0
        %v2671 = vadd.f32 %v2536, %v2670
        %2672 = vmatmul.f32.gmra.mxu0 %v2561
        %v2673 = vpop.f32.mrf.mxu0
        %v2674 = vadd.f32 %v2536, %v2673
        %2675 = vmatmul.f32.gmra.mxu0 %v2564
        %v2676 = vpop.f32.mrf.mxu0
        %v2677 = vadd.f32 %v2536, %v2676
        %2678 = vmatmul.f32.gmra.mxu0 %v2567
        %v2679 = vpop.f32.mrf.mxu0
        %v2680 = vadd.f32 %v2536, %v2679
        %2681 = vmatmul.f32.gmra.mxu0 %v2570
        %v2682 = vpop.f32.mrf.mxu0
        %v2683 = vadd.f32 %v2536, %v2682
        %2684 = vmatmul.f32.gmra.mxu0 %v2573
        %v2685 = vpop.f32.mrf.mxu0
        %v2686 = vadd.f32 %v2536, %v2685
        %2687 = vmatmul.f32.gmra.mxu0 %v2576
        %v2688 = vpop.f32.mrf.mxu0
        %v2689 = vadd.f32 %v2536, %v2688
        %2690 = vmatmul.f32.gmra.mxu0 %v2579
        %v2691 = vpop.f32.mrf.mxu0
        %v2692 = vadd.f32 %v2536, %v2691
        %2693 = vmatmul.f32.gmra.mxu0 %v2582
        %v2694 = vpop.f32.mrf.mxu0
        %v2695 = vadd.f32 %v2536, %v2694
        %2696 = vmatmul.f32.gmra.mxu0 %v2585
        %v2697 = vpop.f32.mrf.mxu0
        %v2698 = vadd.f32 %v2536, %v2697
        %2699 = vmatmul.f32.gmra.mxu0 %v2588
        %v2700 = vpop.f32.mrf.mxu0
        %v2701 = vadd.f32 %v2536, %v2700
        %2702 = vmatmul.f32.gmra.mxu0 %v2591
        %v2703 = vpop.f32.mrf.mxu0
        %v2704 = vadd.f32 %v2536, %v2703
        %2705 = vmatmul.f32.gmra.mxu0 %v2594
        %v2706 = vpop.f32.mrf.mxu0
        %v2707 = vadd.f32 %v2536, %v2706
        %2708 = vmatmul.f32.gmra.mxu0 %v2597
        %v2709 = vpop.f32.mrf.mxu0
        %v2710 = vadd.f32 %v2536, %v2709
        %2711 = vmatmul.f32.gmra.mxu0 %v2600
        %v2712 = vpop.f32.mrf.mxu0
        %v2713 = vadd.f32 %v2536, %v2712
        %2714 = vmatmul.f32.gmra.mxu0 %v2603
        %v2715 = vpop.f32.mrf.mxu0
        %v2716 = vadd.f32 %v2536, %v2715
        %2717 = vmatmul.f32.gmra.mxu0 %v2606
        %v2718 = vpop.f32.mrf.mxu0
        %v2719 = vadd.f32 %v2536, %v2718
        %2720 = vmatmul.f32.gmra.mxu0 %v2609
        %v2721 = vpop.f32.mrf.mxu0
        %v2722 = vadd.f32 %v2536, %v2721
        %2723 = vmatmul.f32.gmra.mxu0 %v2612
        %v2724 = vpop.f32.mrf.mxu0
        %v2725 = vadd.f32 %v2536, %v2724
        %2726 = vmatmul.f32.gmra.mxu0 %v2615
        %v2727 = vpop.f32.mrf.mxu0
        %v2728 = vadd.f32 %v2536, %v2727
        %2729 = vmatmul.f32.gmra.mxu0 %v2618
        %v2730 = vpop.f32.mrf.mxu0
        %v2731 = vadd.f32 %v2536, %v2730
        %2732 = vmatmul.f32.gmra.mxu0 %v2621
        %v2733 = vpop.f32.mrf.mxu0
        %v2734 = vadd.f32 %v2536, %v2733
        %2735 = vmatmul.f32.gmra.mxu0 %v2624
        %v2736 = vpop.f32.mrf.mxu0
        %v2737 = vadd.f32 %v2536, %v2736
        %2738 = vmatmul.f32.gmra.mxu0 %v2627
        %v2739 = vpop.f32.mrf.mxu0
        %v2740 = vadd.f32 %v2536, %v2739
        %2741 = vmatmul.f32.gmra.mxu0 %v2630
        %v2742 = vpop.f32.mrf.mxu0
        %v2743 = vadd.f32 %v2536, %v2742
        %2744 = vmatmul.f32.gmra.mxu0 %v2633
        %v2745 = vpop.f32.mrf.mxu0
        %v2746 = vadd.f32 %v2536, %v2745
        %2747 = vdwg.mxu0
        %v2748 = vtanh.pop %v2653
        %v2749 = vtanh.pop %v2656
        %v2750 = vtanh.pop %v2659
        %v2751 = vtanh.pop %v2662
        %v2752 = vtanh.pop %v2665
        %v2753 = vtanh.pop %v2668
        %v2754 = vtanh.pop %v2671
        %v2755 = vtanh.pop %v2674
        %v2756 = vtanh.pop %v2677
        %v2757 = vtanh.pop %v2680
        %v2758 = vtanh.pop %v2683
        %v2759 = vtanh.pop %v2686
        %v2760 = vtanh.pop %v2689
        %v2761 = vtanh.pop %v2692
        %v2762 = vtanh.pop %v2695
        %v2763 = vtanh.pop %v2698
        %v2764 = vtanh.pop %v2701
        %v2765 = vtanh.pop %v2704
        %v2766 = vtanh.pop %v2707
        %v2767 = vtanh.pop %v2710
        %v2768 = vtanh.pop %v2713
        %v2769 = vtanh.pop %v2716
        %v2770 = vtanh.pop %v2719
        %v2771 = vtanh.pop %v2722
        %v2772 = vtanh.pop %v2725
        %v2773 = vtanh.pop %v2728
        %v2774 = vtanh.pop %v2731
        %v2775 = vtanh.pop %v2734
        %v2776 = vtanh.pop %v2737
        %v2777 = vtanh.pop %v2740
        %v2778 = vtanh.pop %v2743
        %v2779 = vtanh.pop %v2746
        %v2780 = vxor.u32 %v2653, 2147483648
        %v2781 = vxor.u32 %v2656, 2147483648
        %v2782 = vxor.u32 %v2659, 2147483648
        %v2783 = vxor.u32 %v2662, 2147483648
        %v2784 = vxor.u32 %v2665, 2147483648
        %v2785 = vxor.u32 %v2668, 2147483648
        %v2786 = vxor.u32 %v2671, 2147483648
        %v2787 = vxor.u32 %v2674, 2147483648
        %v2788 = vxor.u32 %v2677, 2147483648
        %v2789 = vxor.u32 %v2680, 2147483648
        %v2790 = vxor.u32 %v2683, 2147483648
        %v2791 = vxor.u32 %v2686, 2147483648
        %v2792 = vxor.u32 %v2689, 2147483648
        %v2793 = vxor.u32 %v2692, 2147483648
        %v2794 = vxor.u32 %v2695, 2147483648
        %v2795 = vxor.u32 %v2698, 2147483648
        %v2796 = vxor.u32 %v2701, 2147483648
        %v2797 = vxor.u32 %v2704, 2147483648
        %v2798 = vxor.u32 %v2707, 2147483648
        %v2799 = vxor.u32 %v2710, 2147483648
        %v2800 = vxor.u32 %v2713, 2147483648
        %v2801 = vxor.u32 %v2716, 2147483648
        %v2802 = vxor.u32 %v2719, 2147483648
        %v2803 = vxor.u32 %v2722, 2147483648
        %v2804 = vxor.u32 %v2725, 2147483648
        %v2805 = vxor.u32 %v2728, 2147483648
        %v2806 = vxor.u32 %v2731, 2147483648
        %v2807 = vxor.u32 %v2734, 2147483648
        %v2808 = vxor.u32 %v2737, 2147483648
        %v2809 = vxor.u32 %v2740, 2147483648
        %v2810 = vxor.u32 %v2743, 2147483648
        %v2811 = vxor.u32 %v2746, 2147483648
        %v2812 = vmul.f32 %v2780, 1.442695
        %v2813 = vpow.pop %v2812
        %v2814 = vmul.f32 %v2781, 1.442695
        %v2815 = vpow.pop %v2814
        %v2816 = vmul.f32 %v2782, 1.442695
        %v2817 = vpow.pop %v2816
        %v2818 = vmul.f32 %v2783, 1.442695
        %v2819 = vpow.pop %v2818
        %v2820 = vmul.f32 %v2784, 1.442695
        %v2821 = vpow.pop %v2820
        %v2822 = vmul.f32 %v2785, 1.442695
        %v2823 = vpow.pop %v2822
        %v2824 = vmul.f32 %v2786, 1.442695
        %v2825 = vpow.pop %v2824
        %v2826 = vmul.f32 %v2787, 1.442695
        %v2827 = vpow.pop %v2826
        %v2828 = vmul.f32 %v2788, 1.442695
        %v2829 = vpow.pop %v2828
        %v2830 = vmul.f32 %v2789, 1.442695
        %v2831 = vpow.pop %v2830
        %v2832 = vmul.f32 %v2790, 1.442695
        %v2833 = vpow.pop %v2832
        %v2834 = vmul.f32 %v2791, 1.442695
        %v2835 = vpow.pop %v2834
        %v2836 = vmul.f32 %v2792, 1.442695
        %v2837 = vpow.pop %v2836
        %v2838 = vmul.f32 %v2793, 1.442695
        %v2839 = vpow.pop %v2838
        %v2840 = vmul.f32 %v2794, 1.442695
        %v2841 = vpow.pop %v2840
        %v2842 = vmul.f32 %v2795, 1.442695
        %v2843 = vpow.pop %v2842
        %v2844 = vmul.f32 %v2796, 1.442695
        %v2845 = vpow.pop %v2844
        %v2846 = vmul.f32 %v2797, 1.442695
        %v2847 = vpow.pop %v2846
        %v2848 = vmul.f32 %v2798, 1.442695
        %v2849 = vpow.pop %v2848
        %v2850 = vmul.f32 %v2799, 1.442695
        %v2851 = vpow.pop %v2850
        %v2852 = vmul.f32 %v2800, 1.442695
        %v2853 = vpow.pop %v2852
        %v2854 = vmul.f32 %v2801, 1.442695
        %v2855 = vpow.pop %v2854
        %v2856 = vmul.f32 %v2802, 1.442695
        %v2857 = vpow.pop %v2856
        %v2858 = vmul.f32 %v2803, 1.442695
        %v2859 = vpow.pop %v2858
        %v2860 = vmul.f32 %v2804, 1.442695
        %v2861 = vpow.pop %v2860
        %v2862 = vmul.f32 %v2805, 1.442695
        %v2863 = vpow.pop %v2862
        %v2864 = vmul.f32 %v2806, 1.442695
        %v2865 = vpow.pop %v2864
        %v2866 = vmul.f32 %v2807, 1.442695
        %v2867 = vpow.pop %v2866
        %v2868 = vmul.f32 %v2808, 1.442695
        %v2869 = vpow.pop %v2868
        %v2870 = vmul.f32 %v2809, 1.442695
        %v2871 = vpow.pop %v2870
        %v2872 = vmul.f32 %v2810, 1.442695
        %v2873 = vpow.pop %v2872
        %v2874 = vmul.f32 %v2811, 1.442695
        %v2875 = vpow.pop %v2874
        %v2876 = vadd.f32 %v2813, 1.0
        %v2877 = vadd.f32 %v2815, 1.0
        %v2878 = vadd.f32 %v2817, 1.0
        %v2879 = vadd.f32 %v2819, 1.0
        %v2880 = vadd.f32 %v2821, 1.0
        %v2881 = vadd.f32 %v2823, 1.0
        %v2882 = vadd.f32 %v2825, 1.0
        %v2883 = vadd.f32 %v2827, 1.0
        %v2884 = vadd.f32 %v2829, 1.0
        %v2885 = vadd.f32 %v2831, 1.0
        %v2886 = vadd.f32 %v2833, 1.0
        %v2887 = vadd.f32 %v2835, 1.0
        %v2888 = vadd.f32 %v2837, 1.0
        %v2889 = vadd.f32 %v2839, 1.0
        %v2890 = vadd.f32 %v2841, 1.0
        %v2891 = vadd.f32 %v2843, 1.0
        %v2892 = vadd.f32 %v2845, 1.0
        %v2893 = vadd.f32 %v2847, 1.0
        %v2894 = vadd.f32 %v2849, 1.0
        %v2895 = vadd.f32 %v2851, 1.0
        %v2896 = vadd.f32 %v2853, 1.0
        %v2897 = vadd.f32 %v2855, 1.0
        %v2898 = vadd.f32 %v2857, 1.0
        %v2899 = vadd.f32 %v2859, 1.0
        %v2900 = vadd.f32 %v2861, 1.0
        %v2901 = vadd.f32 %v2863, 1.0
        %v2902 = vadd.f32 %v2865, 1.0
        %v2903 = vadd.f32 %v2867, 1.0
        %v2904 = vadd.f32 %v2869, 1.0
        %v2905 = vadd.f32 %v2871, 1.0
        %v2906 = vadd.f32 %v2873, 1.0
        %v2907 = vadd.f32 %v2875, 1.0
        %v2908 = vrcp.pop %v2876
        %v2909 = vmul.f32 %v2876, %v2908
        %v2910 = vsub.f32 1.0, %v2909
        %v2911 = vmul.f32 %v2908, %v2910
        %v2912 = vadd.f32 %v2908, %v2911
        %vm2913 = vweird.f32 %v2876
        %vm2914 = vweird.f32 %v2908
        %vm2915 = vmor %vm2913, %vm2914
        %v2916 = vsel %vm2915, %v2908, %v2912
        %v2917 = vand.u32 2147483647, %v2876
        %vm2918 = vcmp.eq.f32.partialorder %v2917, 8.507059e+37
        %v2919 = vand.u32 %v2876, 2147483648
        %v2920 = vor.u32 1.1754944e-38, %v2919
        %v2921 = vsel %vm2918, %v2920, %v2916
        %v2922 = vmul.f32 1.0, %v2921
        %v2923 = vrcp.pop %v2877
        %v2924 = vmul.f32 %v2877, %v2923
        %v2925 = vsub.f32 1.0, %v2924
        %v2926 = vmul.f32 %v2923, %v2925
        %v2927 = vadd.f32 %v2923, %v2926
        %vm2928 = vweird.f32 %v2877
        %vm2929 = vweird.f32 %v2923
        %vm2930 = vmor %vm2928, %vm2929
        %v2931 = vsel %vm2930, %v2923, %v2927
        %v2932 = vand.u32 2147483647, %v2877
        %vm2933 = vcmp.eq.f32.partialorder %v2932, 8.507059e+37
        %v2934 = vand.u32 %v2877, 2147483648
        %v2935 = vor.u32 1.1754944e-38, %v2934
        %v2936 = vsel %vm2933, %v2935, %v2931
        %v2937 = vmul.f32 1.0, %v2936
        %v2938 = vrcp.pop %v2878
        %v2939 = vmul.f32 %v2878, %v2938
        %v2940 = vsub.f32 1.0, %v2939
        %v2941 = vmul.f32 %v2938, %v2940
        %v2942 = vadd.f32 %v2938, %v2941
        %vm2943 = vweird.f32 %v2878
        %vm2944 = vweird.f32 %v2938
        %vm2945 = vmor %vm2943, %vm2944
        %v2946 = vsel %vm2945, %v2938, %v2942
        %v2947 = vand.u32 2147483647, %v2878
        %vm2948 = vcmp.eq.f32.partialorder %v2947, 8.507059e+37
        %v2949 = vand.u32 %v2878, 2147483648
        %v2950 = vor.u32 1.1754944e-38, %v2949
        %v2951 = vsel %vm2948, %v2950, %v2946
        %v2952 = vmul.f32 1.0, %v2951
        %v2953 = vrcp.pop %v2879
        %v2954 = vmul.f32 %v2879, %v2953
        %v2955 = vsub.f32 1.0, %v2954
        %v2956 = vmul.f32 %v2953, %v2955
        %v2957 = vadd.f32 %v2953, %v2956
        %vm2958 = vweird.f32 %v2879
        %vm2959 = vweird.f32 %v2953
        %vm2960 = vmor %vm2958, %vm2959
        %v2961 = vsel %vm2960, %v2953, %v2957
        %v2962 = vand.u32 2147483647, %v2879
        %vm2963 = vcmp.eq.f32.partialorder %v2962, 8.507059e+37
        %v2964 = vand.u32 %v2879, 2147483648
        %v2965 = vor.u32 1.1754944e-38, %v2964
        %v2966 = vsel %vm2963, %v2965, %v2961
        %v2967 = vmul.f32 1.0, %v2966
        %v2968 = vrcp.pop %v2880
        %v2969 = vmul.f32 %v2880, %v2968
        %v2970 = vsub.f32 1.0, %v2969
        %v2971 = vmul.f32 %v2968, %v2970
        %v2972 = vadd.f32 %v2968, %v2971
        %vm2973 = vweird.f32 %v2880
        %vm2974 = vweird.f32 %v2968
        %vm2975 = vmor %vm2973, %vm2974
        %v2976 = vsel %vm2975, %v2968, %v2972
        %v2977 = vand.u32 2147483647, %v2880
        %vm2978 = vcmp.eq.f32.partialorder %v2977, 8.507059e+37
        %v2979 = vand.u32 %v2880, 2147483648
        %v2980 = vor.u32 1.1754944e-38, %v2979
        %v2981 = vsel %vm2978, %v2980, %v2976
        %v2982 = vmul.f32 1.0, %v2981
        %v2983 = vrcp.pop %v2881
        %v2984 = vmul.f32 %v2881, %v2983
        %v2985 = vsub.f32 1.0, %v2984
        %v2986 = vmul.f32 %v2983, %v2985
        %v2987 = vadd.f32 %v2983, %v2986
        %vm2988 = vweird.f32 %v2881
        %vm2989 = vweird.f32 %v2983
        %vm2990 = vmor %vm2988, %vm2989
        %v2991 = vsel %vm2990, %v2983, %v2987
        %v2992 = vand.u32 2147483647, %v2881
        %vm2993 = vcmp.eq.f32.partialorder %v2992, 8.507059e+37
        %v2994 = vand.u32 %v2881, 2147483648
        %v2995 = vor.u32 1.1754944e-38, %v2994
        %v2996 = vsel %vm2993, %v2995, %v2991
        %v2997 = vmul.f32 1.0, %v2996
        %v2998 = vrcp.pop %v2882
        %v2999 = vmul.f32 %v2882, %v2998
        %v3000 = vsub.f32 1.0, %v2999
        %v3001 = vmul.f32 %v2998, %v3000
        %v3002 = vadd.f32 %v2998, %v3001
        %vm3003 = vweird.f32 %v2882
        %vm3004 = vweird.f32 %v2998
        %vm3005 = vmor %vm3003, %vm3004
        %v3006 = vsel %vm3005, %v2998, %v3002
        %v3007 = vand.u32 2147483647, %v2882
        %vm3008 = vcmp.eq.f32.partialorder %v3007, 8.507059e+37
        %v3009 = vand.u32 %v2882, 2147483648
        %v3010 = vor.u32 1.1754944e-38, %v3009
        %v3011 = vsel %vm3008, %v3010, %v3006
        %v3012 = vmul.f32 1.0, %v3011
        %v3013 = vrcp.pop %v2883
        %v3014 = vmul.f32 %v2883, %v3013
        %v3015 = vsub.f32 1.0, %v3014
        %v3016 = vmul.f32 %v3013, %v3015
        %v3017 = vadd.f32 %v3013, %v3016
        %vm3018 = vweird.f32 %v2883
        %vm3019 = vweird.f32 %v3013
        %vm3020 = vmor %vm3018, %vm3019
        %v3021 = vsel %vm3020, %v3013, %v3017
        %v3022 = vand.u32 2147483647, %v2883
        %vm3023 = vcmp.eq.f32.partialorder %v3022, 8.507059e+37
        %v3024 = vand.u32 %v2883, 2147483648
        %v3025 = vor.u32 1.1754944e-38, %v3024
        %v3026 = vsel %vm3023, %v3025, %v3021
        %v3027 = vmul.f32 1.0, %v3026
        %v3028 = vrcp.pop %v2884
        %v3029 = vmul.f32 %v2884, %v3028
        %v3030 = vsub.f32 1.0, %v3029
        %v3031 = vmul.f32 %v3028, %v3030
        %v3032 = vadd.f32 %v3028, %v3031
        %vm3033 = vweird.f32 %v2884
        %vm3034 = vweird.f32 %v3028
        %vm3035 = vmor %vm3033, %vm3034
        %v3036 = vsel %vm3035, %v3028, %v3032
        %v3037 = vand.u32 2147483647, %v2884
        %vm3038 = vcmp.eq.f32.partialorder %v3037, 8.507059e+37
        %v3039 = vand.u32 %v2884, 2147483648
        %v3040 = vor.u32 1.1754944e-38, %v3039
        %v3041 = vsel %vm3038, %v3040, %v3036
        %v3042 = vmul.f32 1.0, %v3041
        %v3043 = vrcp.pop %v2885
        %v3044 = vmul.f32 %v2885, %v3043
        %v3045 = vsub.f32 1.0, %v3044
        %v3046 = vmul.f32 %v3043, %v3045
        %v3047 = vadd.f32 %v3043, %v3046
        %vm3048 = vweird.f32 %v2885
        %vm3049 = vweird.f32 %v3043
        %vm3050 = vmor %vm3048, %vm3049
        %v3051 = vsel %vm3050, %v3043, %v3047
        %v3052 = vand.u32 2147483647, %v2885
        %vm3053 = vcmp.eq.f32.partialorder %v3052, 8.507059e+37
        %v3054 = vand.u32 %v2885, 2147483648
        %v3055 = vor.u32 1.1754944e-38, %v3054
        %v3056 = vsel %vm3053, %v3055, %v3051
        %v3057 = vmul.f32 1.0, %v3056
        %v3058 = vrcp.pop %v2886
        %v3059 = vmul.f32 %v2886, %v3058
        %v3060 = vsub.f32 1.0, %v3059
        %v3061 = vmul.f32 %v3058, %v3060
        %v3062 = vadd.f32 %v3058, %v3061
        %vm3063 = vweird.f32 %v2886
        %vm3064 = vweird.f32 %v3058
        %vm3065 = vmor %vm3063, %vm3064
        %v3066 = vsel %vm3065, %v3058, %v3062
        %v3067 = vand.u32 2147483647, %v2886
        %vm3068 = vcmp.eq.f32.partialorder %v3067, 8.507059e+37
        %v3069 = vand.u32 %v2886, 2147483648
        %v3070 = vor.u32 1.1754944e-38, %v3069
        %v3071 = vsel %vm3068, %v3070, %v3066
        %v3072 = vmul.f32 1.0, %v3071
        %v3073 = vrcp.pop %v2887
        %v3074 = vmul.f32 %v2887, %v3073
        %v3075 = vsub.f32 1.0, %v3074
        %v3076 = vmul.f32 %v3073, %v3075
        %v3077 = vadd.f32 %v3073, %v3076
        %vm3078 = vweird.f32 %v2887
        %vm3079 = vweird.f32 %v3073
        %vm3080 = vmor %vm3078, %vm3079
        %v3081 = vsel %vm3080, %v3073, %v3077
        %v3082 = vand.u32 2147483647, %v2887
        %vm3083 = vcmp.eq.f32.partialorder %v3082, 8.507059e+37
        %v3084 = vand.u32 %v2887, 2147483648
        %v3085 = vor.u32 1.1754944e-38, %v3084
        %v3086 = vsel %vm3083, %v3085, %v3081
        %v3087 = vmul.f32 1.0, %v3086
        %v3088 = vrcp.pop %v2888
        %v3089 = vmul.f32 %v2888, %v3088
        %v3090 = vsub.f32 1.0, %v3089
        %v3091 = vmul.f32 %v3088, %v3090
        %v3092 = vadd.f32 %v3088, %v3091
        %vm3093 = vweird.f32 %v2888
        %vm3094 = vweird.f32 %v3088
        %vm3095 = vmor %vm3093, %vm3094
        %v3096 = vsel %vm3095, %v3088, %v3092
        %v3097 = vand.u32 2147483647, %v2888
        %vm3098 = vcmp.eq.f32.partialorder %v3097, 8.507059e+37
        %v3099 = vand.u32 %v2888, 2147483648
        %v3100 = vor.u32 1.1754944e-38, %v3099
        %v3101 = vsel %vm3098, %v3100, %v3096
        %v3102 = vmul.f32 1.0, %v3101
        %v3103 = vrcp.pop %v2889
        %v3104 = vmul.f32 %v2889, %v3103
        %v3105 = vsub.f32 1.0, %v3104
        %v3106 = vmul.f32 %v3103, %v3105
        %v3107 = vadd.f32 %v3103, %v3106
        %vm3108 = vweird.f32 %v2889
        %vm3109 = vweird.f32 %v3103
        %vm3110 = vmor %vm3108, %vm3109
        %v3111 = vsel %vm3110, %v3103, %v3107
        %v3112 = vand.u32 2147483647, %v2889
        %vm3113 = vcmp.eq.f32.partialorder %v3112, 8.507059e+37
        %v3114 = vand.u32 %v2889, 2147483648
        %v3115 = vor.u32 1.1754944e-38, %v3114
        %v3116 = vsel %vm3113, %v3115, %v3111
        %v3117 = vmul.f32 1.0, %v3116
        %v3118 = vrcp.pop %v2890
        %v3119 = vmul.f32 %v2890, %v3118
        %v3120 = vsub.f32 1.0, %v3119
        %v3121 = vmul.f32 %v3118, %v3120
        %v3122 = vadd.f32 %v3118, %v3121
        %vm3123 = vweird.f32 %v2890
        %vm3124 = vweird.f32 %v3118
        %vm3125 = vmor %vm3123, %vm3124
        %v3126 = vsel %vm3125, %v3118, %v3122
        %v3127 = vand.u32 2147483647, %v2890
        %vm3128 = vcmp.eq.f32.partialorder %v3127, 8.507059e+37
        %v3129 = vand.u32 %v2890, 2147483648
        %v3130 = vor.u32 1.1754944e-38, %v3129
        %v3131 = vsel %vm3128, %v3130, %v3126
        %v3132 = vmul.f32 1.0, %v3131
        %v3133 = vrcp.pop %v2891
        %v3134 = vmul.f32 %v2891, %v3133
        %v3135 = vsub.f32 1.0, %v3134
        %v3136 = vmul.f32 %v3133, %v3135
        %v3137 = vadd.f32 %v3133, %v3136
        %vm3138 = vweird.f32 %v2891
        %vm3139 = vweird.f32 %v3133
        %vm3140 = vmor %vm3138, %vm3139
        %v3141 = vsel %vm3140, %v3133, %v3137
        %v3142 = vand.u32 2147483647, %v2891
        %vm3143 = vcmp.eq.f32.partialorder %v3142, 8.507059e+37
        %v3144 = vand.u32 %v2891, 2147483648
        %v3145 = vor.u32 1.1754944e-38, %v3144
        %v3146 = vsel %vm3143, %v3145, %v3141
        %v3147 = vmul.f32 1.0, %v3146
        %v3148 = vrcp.pop %v2892
        %v3149 = vmul.f32 %v2892, %v3148
        %v3150 = vsub.f32 1.0, %v3149
        %v3151 = vmul.f32 %v3148, %v3150
        %v3152 = vadd.f32 %v3148, %v3151
        %vm3153 = vweird.f32 %v2892
        %vm3154 = vweird.f32 %v3148
        %vm3155 = vmor %vm3153, %vm3154
        %v3156 = vsel %vm3155, %v3148, %v3152
        %v3157 = vand.u32 2147483647, %v2892
        %vm3158 = vcmp.eq.f32.partialorder %v3157, 8.507059e+37
        %v3159 = vand.u32 %v2892, 2147483648
        %v3160 = vor.u32 1.1754944e-38, %v3159
        %v3161 = vsel %vm3158, %v3160, %v3156
        %v3162 = vmul.f32 1.0, %v3161
        %v3163 = vrcp.pop %v2893
        %v3164 = vmul.f32 %v2893, %v3163
        %v3165 = vsub.f32 1.0, %v3164
        %v3166 = vmul.f32 %v3163, %v3165
        %v3167 = vadd.f32 %v3163, %v3166
        %vm3168 = vweird.f32 %v2893
        %vm3169 = vweird.f32 %v3163
        %vm3170 = vmor %vm3168, %vm3169
        %v3171 = vsel %vm3170, %v3163, %v3167
        %v3172 = vand.u32 2147483647, %v2893
        %vm3173 = vcmp.eq.f32.partialorder %v3172, 8.507059e+37
        %v3174 = vand.u32 %v2893, 2147483648
        %v3175 = vor.u32 1.1754944e-38, %v3174
        %v3176 = vsel %vm3173, %v3175, %v3171
        %v3177 = vmul.f32 1.0, %v3176
        %v3178 = vrcp.pop %v2894
        %v3179 = vmul.f32 %v2894, %v3178
        %v3180 = vsub.f32 1.0, %v3179
        %v3181 = vmul.f32 %v3178, %v3180
        %v3182 = vadd.f32 %v3178, %v3181
        %vm3183 = vweird.f32 %v2894
        %vm3184 = vweird.f32 %v3178
        %vm3185 = vmor %vm3183, %vm3184
        %v3186 = vsel %vm3185, %v3178, %v3182
        %v3187 = vand.u32 2147483647, %v2894
        %vm3188 = vcmp.eq.f32.partialorder %v3187, 8.507059e+37
        %v3189 = vand.u32 %v2894, 2147483648
        %v3190 = vor.u32 1.1754944e-38, %v3189
        %v3191 = vsel %vm3188, %v3190, %v3186
        %v3192 = vmul.f32 1.0, %v3191
        %v3193 = vrcp.pop %v2895
        %v3194 = vmul.f32 %v2895, %v3193
        %v3195 = vsub.f32 1.0, %v3194
        %v3196 = vmul.f32 %v3193, %v3195
        %v3197 = vadd.f32 %v3193, %v3196
        %vm3198 = vweird.f32 %v2895
        %vm3199 = vweird.f32 %v3193
        %vm3200 = vmor %vm3198, %vm3199
        %v3201 = vsel %vm3200, %v3193, %v3197
        %v3202 = vand.u32 2147483647, %v2895
        %vm3203 = vcmp.eq.f32.partialorder %v3202, 8.507059e+37
        %v3204 = vand.u32 %v2895, 2147483648
        %v3205 = vor.u32 1.1754944e-38, %v3204
        %v3206 = vsel %vm3203, %v3205, %v3201
        %v3207 = vmul.f32 1.0, %v3206
        %v3208 = vrcp.pop %v2896
        %v3209 = vmul.f32 %v2896, %v3208
        %v3210 = vsub.f32 1.0, %v3209
        %v3211 = vmul.f32 %v3208, %v3210
        %v3212 = vadd.f32 %v3208, %v3211
        %vm3213 = vweird.f32 %v2896
        %vm3214 = vweird.f32 %v3208
        %vm3215 = vmor %vm3213, %vm3214
        %v3216 = vsel %vm3215, %v3208, %v3212
        %v3217 = vand.u32 2147483647, %v2896
        %vm3218 = vcmp.eq.f32.partialorder %v3217, 8.507059e+37
        %v3219 = vand.u32 %v2896, 2147483648
        %v3220 = vor.u32 1.1754944e-38, %v3219
        %v3221 = vsel %vm3218, %v3220, %v3216
        %v3222 = vmul.f32 1.0, %v3221
        %v3223 = vrcp.pop %v2897
        %v3224 = vmul.f32 %v2897, %v3223
        %v3225 = vsub.f32 1.0, %v3224
        %v3226 = vmul.f32 %v3223, %v3225
        %v3227 = vadd.f32 %v3223, %v3226
        %vm3228 = vweird.f32 %v2897
        %vm3229 = vweird.f32 %v3223
        %vm3230 = vmor %vm3228, %vm3229
        %v3231 = vsel %vm3230, %v3223, %v3227
        %v3232 = vand.u32 2147483647, %v2897
        %vm3233 = vcmp.eq.f32.partialorder %v3232, 8.507059e+37
        %v3234 = vand.u32 %v2897, 2147483648
        %v3235 = vor.u32 1.1754944e-38, %v3234
        %v3236 = vsel %vm3233, %v3235, %v3231
        %v3237 = vmul.f32 1.0, %v3236
        %v3238 = vrcp.pop %v2898
        %v3239 = vmul.f32 %v2898, %v3238
        %v3240 = vsub.f32 1.0, %v3239
        %v3241 = vmul.f32 %v3238, %v3240
        %v3242 = vadd.f32 %v3238, %v3241
        %vm3243 = vweird.f32 %v2898
        %vm3244 = vweird.f32 %v3238
        %vm3245 = vmor %vm3243, %vm3244
        %v3246 = vsel %vm3245, %v3238, %v3242
        %v3247 = vand.u32 2147483647, %v2898
        %vm3248 = vcmp.eq.f32.partialorder %v3247, 8.507059e+37
        %v3249 = vand.u32 %v2898, 2147483648
        %v3250 = vor.u32 1.1754944e-38, %v3249
        %v3251 = vsel %vm3248, %v3250, %v3246
        %v3252 = vmul.f32 1.0, %v3251
        %v3253 = vrcp.pop %v2899
        %v3254 = vmul.f32 %v2899, %v3253
        %v3255 = vsub.f32 1.0, %v3254
        %v3256 = vmul.f32 %v3253, %v3255
        %v3257 = vadd.f32 %v3253, %v3256
        %vm3258 = vweird.f32 %v2899
        %vm3259 = vweird.f32 %v3253
        %vm3260 = vmor %vm3258, %vm3259
        %v3261 = vsel %vm3260, %v3253, %v3257
        %v3262 = vand.u32 2147483647, %v2899
        %vm3263 = vcmp.eq.f32.partialorder %v3262, 8.507059e+37
        %v3264 = vand.u32 %v2899, 2147483648
        %v3265 = vor.u32 1.1754944e-38, %v3264
        %v3266 = vsel %vm3263, %v3265, %v3261
        %v3267 = vmul.f32 1.0, %v3266
        %v3268 = vrcp.pop %v2900
        %v3269 = vmul.f32 %v2900, %v3268
        %v3270 = vsub.f32 1.0, %v3269
        %v3271 = vmul.f32 %v3268, %v3270
        %v3272 = vadd.f32 %v3268, %v3271
        %vm3273 = vweird.f32 %v2900
        %vm3274 = vweird.f32 %v3268
        %vm3275 = vmor %vm3273, %vm3274
        %v3276 = vsel %vm3275, %v3268, %v3272
        %v3277 = vand.u32 2147483647, %v2900
        %vm3278 = vcmp.eq.f32.partialorder %v3277, 8.507059e+37
        %v3279 = vand.u32 %v2900, 2147483648
        %v3280 = vor.u32 1.1754944e-38, %v3279
        %v3281 = vsel %vm3278, %v3280, %v3276
        %v3282 = vmul.f32 1.0, %v3281
        %v3283 = vrcp.pop %v2901
        %v3284 = vmul.f32 %v2901, %v3283
        %v3285 = vsub.f32 1.0, %v3284
        %v3286 = vmul.f32 %v3283, %v3285
        %v3287 = vadd.f32 %v3283, %v3286
        %vm3288 = vweird.f32 %v2901
        %vm3289 = vweird.f32 %v3283
        %vm3290 = vmor %vm3288, %vm3289
        %v3291 = vsel %vm3290, %v3283, %v3287
        %v3292 = vand.u32 2147483647, %v2901
        %vm3293 = vcmp.eq.f32.partialorder %v3292, 8.507059e+37
        %v3294 = vand.u32 %v2901, 2147483648
        %v3295 = vor.u32 1.1754944e-38, %v3294
        %v3296 = vsel %vm3293, %v3295, %v3291
        %v3297 = vmul.f32 1.0, %v3296
        %v3298 = vrcp.pop %v2902
        %v3299 = vmul.f32 %v2902, %v3298
        %v3300 = vsub.f32 1.0, %v3299
        %v3301 = vmul.f32 %v3298, %v3300
        %v3302 = vadd.f32 %v3298, %v3301
        %vm3303 = vweird.f32 %v2902
        %vm3304 = vweird.f32 %v3298
        %vm3305 = vmor %vm3303, %vm3304
        %v3306 = vsel %vm3305, %v3298, %v3302
        %v3307 = vand.u32 2147483647, %v2902
        %vm3308 = vcmp.eq.f32.partialorder %v3307, 8.507059e+37
        %v3309 = vand.u32 %v2902, 2147483648
        %v3310 = vor.u32 1.1754944e-38, %v3309
        %v3311 = vsel %vm3308, %v3310, %v3306
        %v3312 = vmul.f32 1.0, %v3311
        %v3313 = vrcp.pop %v2903
        %v3314 = vmul.f32 %v2903, %v3313
        %v3315 = vsub.f32 1.0, %v3314
        %v3316 = vmul.f32 %v3313, %v3315
        %v3317 = vadd.f32 %v3313, %v3316
        %vm3318 = vweird.f32 %v2903
        %vm3319 = vweird.f32 %v3313
        %vm3320 = vmor %vm3318, %vm3319
        %v3321 = vsel %vm3320, %v3313, %v3317
        %v3322 = vand.u32 2147483647, %v2903
        %vm3323 = vcmp.eq.f32.partialorder %v3322, 8.507059e+37
        %v3324 = vand.u32 %v2903, 2147483648
        %v3325 = vor.u32 1.1754944e-38, %v3324
        %v3326 = vsel %vm3323, %v3325, %v3321
        %v3327 = vmul.f32 1.0, %v3326
        %v3328 = vrcp.pop %v2904
        %v3329 = vmul.f32 %v2904, %v3328
        %v3330 = vsub.f32 1.0, %v3329
        %v3331 = vmul.f32 %v3328, %v3330
        %v3332 = vadd.f32 %v3328, %v3331
        %vm3333 = vweird.f32 %v2904
        %vm3334 = vweird.f32 %v3328
        %vm3335 = vmor %vm3333, %vm3334
        %v3336 = vsel %vm3335, %v3328, %v3332
        %v3337 = vand.u32 2147483647, %v2904
        %vm3338 = vcmp.eq.f32.partialorder %v3337, 8.507059e+37
        %v3339 = vand.u32 %v2904, 2147483648
        %v3340 = vor.u32 1.1754944e-38, %v3339
        %v3341 = vsel %vm3338, %v3340, %v3336
        %v3342 = vmul.f32 1.0, %v3341
        %v3343 = vrcp.pop %v2905
        %v3344 = vmul.f32 %v2905, %v3343
        %v3345 = vsub.f32 1.0, %v3344
        %v3346 = vmul.f32 %v3343, %v3345
        %v3347 = vadd.f32 %v3343, %v3346
        %vm3348 = vweird.f32 %v2905
        %vm3349 = vweird.f32 %v3343
        %vm3350 = vmor %vm3348, %vm3349
        %v3351 = vsel %vm3350, %v3343, %v3347
        %v3352 = vand.u32 2147483647, %v2905
        %vm3353 = vcmp.eq.f32.partialorder %v3352, 8.507059e+37
        %v3354 = vand.u32 %v2905, 2147483648
        %v3355 = vor.u32 1.1754944e-38, %v3354
        %v3356 = vsel %vm3353, %v3355, %v3351
        %v3357 = vmul.f32 1.0, %v3356
        %v3358 = vrcp.pop %v2906
        %v3359 = vmul.f32 %v2906, %v3358
        %v3360 = vsub.f32 1.0, %v3359
        %v3361 = vmul.f32 %v3358, %v3360
        %v3362 = vadd.f32 %v3358, %v3361
        %vm3363 = vweird.f32 %v2906
        %vm3364 = vweird.f32 %v3358
        %vm3365 = vmor %vm3363, %vm3364
        %v3366 = vsel %vm3365, %v3358, %v3362
        %v3367 = vand.u32 2147483647, %v2906
        %vm3368 = vcmp.eq.f32.partialorder %v3367, 8.507059e+37
        %v3369 = vand.u32 %v2906, 2147483648
        %v3370 = vor.u32 1.1754944e-38, %v3369
        %v3371 = vsel %vm3368, %v3370, %v3366
        %v3372 = vmul.f32 1.0, %v3371
        %v3373 = vrcp.pop %v2907
        %v3374 = vmul.f32 %v2907, %v3373
        %v3375 = vsub.f32 1.0, %v3374
        %v3376 = vmul.f32 %v3373, %v3375
        %v3377 = vadd.f32 %v3373, %v3376
        %vm3378 = vweird.f32 %v2907
        %vm3379 = vweird.f32 %v3373
        %vm3380 = vmor %vm3378, %vm3379
        %v3381 = vsel %vm3380, %v3373, %v3377
        %v3382 = vand.u32 2147483647, %v2907
        %vm3383 = vcmp.eq.f32.partialorder %v3382, 8.507059e+37
        %v3384 = vand.u32 %v2907, 2147483648
        %v3385 = vor.u32 1.1754944e-38, %v3384
        %v3386 = vsel %vm3383, %v3385, %v3381
        %v3387 = vmul.f32 1.0, %v3386
        %3420 = vrot.lane.b32.xlu0 %v2922, 96
        %v3421 = vpop.permute.xlu0 %3420
        %3422 = vrot.lane.b32.xlu0 %v2937, 96
        %v3423 = vpop.permute.xlu0 %3422
        %3424 = vrot.lane.b32.xlu0 %v2952, 96
        %v3425 = vpop.permute.xlu0 %3424
        %3426 = vrot.lane.b32.xlu0 %v2967, 96
        %v3427 = vpop.permute.xlu0 %3426
        %3428 = vrot.lane.b32.xlu0 %v2982, 96
        %v3429 = vpop.permute.xlu0 %3428
        %3430 = vrot.lane.b32.xlu0 %v2997, 96
        %v3431 = vpop.permute.xlu0 %3430
        %3432 = vrot.lane.b32.xlu0 %v3012, 96
        %v3433 = vpop.permute.xlu0 %3432
        %3434 = vrot.lane.b32.xlu0 %v3027, 96
        %v3435 = vpop.permute.xlu0 %3434
        %3436 = vrot.lane.b32.xlu0 %v3042, 96
        %v3437 = vpop.permute.xlu0 %3436
        %3438 = vrot.lane.b32.xlu0 %v3057, 96
        %v3439 = vpop.permute.xlu0 %3438
        %3440 = vrot.lane.b32.xlu0 %v3072, 96
        %v3441 = vpop.permute.xlu0 %3440
        %3442 = vrot.lane.b32.xlu0 %v3087, 96
        %v3443 = vpop.permute.xlu0 %3442
        %3444 = vrot.lane.b32.xlu0 %v3102, 96
        %v3445 = vpop.permute.xlu0 %3444
        %3446 = vrot.lane.b32.xlu0 %v3117, 96
        %v3447 = vpop.permute.xlu0 %3446
        %3448 = vrot.lane.b32.xlu0 %v3132, 96
        %v3449 = vpop.permute.xlu0 %3448
        %3450 = vrot.lane.b32.xlu0 %v3147, 96
        %v3451 = vpop.permute.xlu0 %3450
        %3452 = vrot.lane.b32.xlu0 %v3162, 96
        %v3453 = vpop.permute.xlu0 %3452
        %3454 = vrot.lane.b32.xlu0 %v3177, 96
        %v3455 = vpop.permute.xlu0 %3454
        %3456 = vrot.lane.b32.xlu0 %v3192, 96
        %v3457 = vpop.permute.xlu0 %3456
        %3458 = vrot.lane.b32.xlu0 %v3207, 96
        %v3459 = vpop.permute.xlu0 %3458
        %3460 = vrot.lane.b32.xlu0 %v3222, 96
        %v3461 = vpop.permute.xlu0 %3460
        %3462 = vrot.lane.b32.xlu0 %v3237, 96
        %v3463 = vpop.permute.xlu0 %3462
        %3464 = vrot.lane.b32.xlu0 %v3252, 96
        %v3465 = vpop.permute.xlu0 %3464
        %3466 = vrot.lane.b32.xlu0 %v3267, 96
        %v3467 = vpop.permute.xlu0 %3466
        %3468 = vrot.lane.b32.xlu0 %v3282, 96
        %v3469 = vpop.permute.xlu0 %3468
        %3470 = vrot.lane.b32.xlu0 %v3297, 96
        %v3471 = vpop.permute.xlu0 %3470
        %3472 = vrot.lane.b32.xlu0 %v3312, 96
        %v3473 = vpop.permute.xlu0 %3472
        %3474 = vrot.lane.b32.xlu0 %v3327, 96
        %v3475 = vpop.permute.xlu0 %3474
        %3476 = vrot.lane.b32.xlu0 %v3342, 96
        %v3477 = vpop.permute.xlu0 %3476
        %3478 = vrot.lane.b32.xlu0 %v3357, 96
        %v3479 = vpop.permute.xlu0 %3478
        %3480 = vrot.lane.b32.xlu0 %v3372, 96
        %v3481 = vpop.permute.xlu0 %3480
        %3482 = vrot.lane.b32.xlu0 %v3387, 96
        %v3483 = vpop.permute.xlu0 %3482
        %v3516 = vmul.f32 %v2748, %v3421
        %v3517 = vmul.f32 %v2749, %v3423
        %v3518 = vmul.f32 %v2750, %v3425
        %v3519 = vmul.f32 %v2751, %v3427
        %v3520 = vmul.f32 %v2752, %v3429
        %v3521 = vmul.f32 %v2753, %v3431
        %v3522 = vmul.f32 %v2754, %v3433
        %v3523 = vmul.f32 %v2755, %v3435
        %v3524 = vmul.f32 %v2756, %v3437
        %v3525 = vmul.f32 %v2757, %v3439
        %v3526 = vmul.f32 %v2758, %v3441
        %v3527 = vmul.f32 %v2759, %v3443
        %v3528 = vmul.f32 %v2760, %v3445
        %v3529 = vmul.f32 %v2761, %v3447
        %v3530 = vmul.f32 %v2762, %v3449
        %v3531 = vmul.f32 %v2763, %v3451
        %v3532 = vmul.f32 %v2764, %v3453
        %v3533 = vmul.f32 %v2765, %v3455
        %v3534 = vmul.f32 %v2766, %v3457
        %v3535 = vmul.f32 %v2767, %v3459
        %v3536 = vmul.f32 %v2768, %v3461
        %v3537 = vmul.f32 %v2769, %v3463
        %v3538 = vmul.f32 %v2770, %v3465
        %v3539 = vmul.f32 %v2771, %v3467
        %v3540 = vmul.f32 %v2772, %v3469
        %v3541 = vmul.f32 %v2773, %v3471
        %v3542 = vmul.f32 %v2774, %v3473
        %v3543 = vmul.f32 %v2775, %v3475
        %v3544 = vmul.f32 %v2776, %v3477
        %v3545 = vmul.f32 %v2777, %v3479
        %v3546 = vmul.f32 %v2778, %v3481
        %v3547 = vmul.f32 %v2779, %v3483
        %v3548 = vld [vmem:[#allocation16] sm:$0x1]
        %v3550 = vperm.slane %v3548, 0
        %v3552 = vmul.f32 %v3516, %v3550
        %v3553 = vmul.f32 %v3517, %v3550
        %v3554 = vmul.f32 %v3518, %v3550
        %v3555 = vmul.f32 %v3519, %v3550
        %v3556 = vmul.f32 %v3520, %v3550
        %v3557 = vmul.f32 %v3521, %v3550
        %v3558 = vmul.f32 %v3522, %v3550
        %v3559 = vmul.f32 %v3523, %v3550
        %v3560 = vmul.f32 %v3524, %v3550
        %v3561 = vmul.f32 %v3525, %v3550
        %v3562 = vmul.f32 %v3526, %v3550
        %v3563 = vmul.f32 %v3527, %v3550
        %v3564 = vmul.f32 %v3528, %v3550
        %v3565 = vmul.f32 %v3529, %v3550
        %v3566 = vmul.f32 %v3530, %v3550
        %v3567 = vmul.f32 %v3531, %v3550
        %v3568 = vmul.f32 %v3532, %v3550
        %v3569 = vmul.f32 %v3533, %v3550
        %v3570 = vmul.f32 %v3534, %v3550
        %v3571 = vmul.f32 %v3535, %v3550
        %v3572 = vmul.f32 %v3536, %v3550
        %v3573 = vmul.f32 %v3537, %v3550
        %v3574 = vmul.f32 %v3538, %v3550
        %v3575 = vmul.f32 %v3539, %v3550
        %v3576 = vmul.f32 %v3540, %v3550
        %v3577 = vmul.f32 %v3541, %v3550
        %v3578 = vmul.f32 %v3542, %v3550
        %v3579 = vmul.f32 %v3543, %v3550
        %v3580 = vmul.f32 %v3544, %v3550
        %v3581 = vmul.f32 %v3545, %v3550
        %v3582 = vmul.f32 %v3546, %v3550
        %v3583 = vmul.f32 %v3547, %v3550
        %vm3584 = vcmask 261120
        %v3585 = vsel %vm3584, %v3552, 0.0
        %3586 = vadd.xlane.f32.xlu0 %v3585
        %v3587 = vpop.xlane.xlu0 %3586
        %v3588 = vsel %vm3584, %v3553, 0.0
        %3589 = vadd.xlane.f32.xlu0 %v3588
        %v3590 = vpop.xlane.xlu0 %3589
        %v3591 = vsel %vm3584, %v3554, 0.0
        %3592 = vadd.xlane.f32.xlu0 %v3591
        %v3593 = vpop.xlane.xlu0 %3592
        %v3594 = vsel %vm3584, %v3555, 0.0
        %3595 = vadd.xlane.f32.xlu0 %v3594
        %v3596 = vpop.xlane.xlu0 %3595
        %v3597 = vsel %vm3584, %v3556, 0.0
        %3598 = vadd.xlane.f32.xlu0 %v3597
        %v3599 = vpop.xlane.xlu0 %3598
        %v3600 = vsel %vm3584, %v3557, 0.0
        %3601 = vadd.xlane.f32.xlu0 %v3600
        %v3602 = vpop.xlane.xlu0 %3601
        %v3603 = vsel %vm3584, %v3558, 0.0
        %3604 = vadd.xlane.f32.xlu0 %v3603
        %v3605 = vpop.xlane.xlu0 %3604
        %v3606 = vsel %vm3584, %v3559, 0.0
        %3607 = vadd.xlane.f32.xlu0 %v3606
        %v3608 = vpop.xlane.xlu0 %3607
        %v3609 = vsel %vm3584, %v3560, 0.0
        %3610 = vadd.xlane.f32.xlu0 %v3609
        %v3611 = vpop.xlane.xlu0 %3610
        %v3612 = vsel %vm3584, %v3561, 0.0
        %3613 = vadd.xlane.f32.xlu0 %v3612
        %v3614 = vpop.xlane.xlu0 %3613
        %v3615 = vsel %vm3584, %v3562, 0.0
        %3616 = vadd.xlane.f32.xlu0 %v3615
        %v3617 = vpop.xlane.xlu0 %3616
        %v3618 = vsel %vm3584, %v3563, 0.0
        %3619 = vadd.xlane.f32.xlu0 %v3618
        %v3620 = vpop.xlane.xlu0 %3619
        %v3621 = vsel %vm3584, %v3564, 0.0
        %3622 = vadd.xlane.f32.xlu0 %v3621
        %v3623 = vpop.xlane.xlu0 %3622
        %v3624 = vsel %vm3584, %v3565, 0.0
        %3625 = vadd.xlane.f32.xlu0 %v3624
        %v3626 = vpop.xlane.xlu0 %3625
        %v3627 = vsel %vm3584, %v3566, 0.0
        %3628 = vadd.xlane.f32.xlu0 %v3627
        %v3629 = vpop.xlane.xlu0 %3628
        %v3630 = vsel %vm3584, %v3567, 0.0
        %3631 = vadd.xlane.f32.xlu0 %v3630
        %v3632 = vpop.xlane.xlu0 %3631
        %v3633 = vsel %vm3584, %v3568, 0.0
        %3634 = vadd.xlane.f32.xlu0 %v3633
        %v3635 = vpop.xlane.xlu0 %3634
        %v3636 = vsel %vm3584, %v3569, 0.0
        %3637 = vadd.xlane.f32.xlu0 %v3636
        %v3638 = vpop.xlane.xlu0 %3637
        %v3639 = vsel %vm3584, %v3570, 0.0
        %3640 = vadd.xlane.f32.xlu0 %v3639
        %v3641 = vpop.xlane.xlu0 %3640
        %v3642 = vsel %vm3584, %v3571, 0.0
        %3643 = vadd.xlane.f32.xlu0 %v3642
        %v3644 = vpop.xlane.xlu0 %3643
        %v3645 = vsel %vm3584, %v3572, 0.0
        %3646 = vadd.xlane.f32.xlu0 %v3645
        %v3647 = vpop.xlane.xlu0 %3646
        %v3648 = vsel %vm3584, %v3573, 0.0
        %3649 = vadd.xlane.f32.xlu0 %v3648
        %v3650 = vpop.xlane.xlu0 %3649
        %v3651 = vsel %vm3584, %v3574, 0.0
        %3652 = vadd.xlane.f32.xlu0 %v3651
        %v3653 = vpop.xlane.xlu0 %3652
        %v3654 = vsel %vm3584, %v3575, 0.0
        %3655 = vadd.xlane.f32.xlu0 %v3654
        %v3656 = vpop.xlane.xlu0 %3655
        %v3657 = vsel %vm3584, %v3576, 0.0
        %3658 = vadd.xlane.f32.xlu0 %v3657
        %v3659 = vpop.xlane.xlu0 %3658
        %v3660 = vsel %vm3584, %v3577, 0.0
        %3661 = vadd.xlane.f32.xlu0 %v3660
        %v3662 = vpop.xlane.xlu0 %3661
        %v3663 = vsel %vm3584, %v3578, 0.0
        %3664 = vadd.xlane.f32.xlu0 %v3663
        %v3665 = vpop.xlane.xlu0 %3664
        %v3666 = vsel %vm3584, %v3579, 0.0
        %3667 = vadd.xlane.f32.xlu0 %v3666
        %v3668 = vpop.xlane.xlu0 %3667
        %v3669 = vsel %vm3584, %v3580, 0.0
        %3670 = vadd.xlane.f32.xlu0 %v3669
        %v3671 = vpop.xlane.xlu0 %3670
        %v3672 = vsel %vm3584, %v3581, 0.0
        %3673 = vadd.xlane.f32.xlu0 %v3672
        %v3674 = vpop.xlane.xlu0 %3673
        %v3675 = vsel %vm3584, %v3582, 0.0
        %3676 = vadd.xlane.f32.xlu0 %v3675
        %v3677 = vpop.xlane.xlu0 %3676
        %v3678 = vsel %vm3584, %v3583, 0.0
        %3679 = vadd.xlane.f32.xlu0 %v3678
        %v3680 = vpop.xlane.xlu0 %3679
        %s3681 = sld [smem:[#allocation6]]
        %v3682 = vstv %s3681
        %v3683 = vadd.f32 %v3587, %v3682
        %v3684 = vadd.f32 %v3590, %v3682
        %v3685 = vadd.f32 %v3593, %v3682
        %v3686 = vadd.f32 %v3596, %v3682
        %v3687 = vadd.f32 %v3599, %v3682
        %v3688 = vadd.f32 %v3602, %v3682
        %v3689 = vadd.f32 %v3605, %v3682
        %v3690 = vadd.f32 %v3608, %v3682
        %v3691 = vadd.f32 %v3611, %v3682
        %v3692 = vadd.f32 %v3614, %v3682
        %v3693 = vadd.f32 %v3617, %v3682
        %v3694 = vadd.f32 %v3620, %v3682
        %v3695 = vadd.f32 %v3623, %v3682
        %v3696 = vadd.f32 %v3626, %v3682
        %v3697 = vadd.f32 %v3629, %v3682
        %v3698 = vadd.f32 %v3632, %v3682
        %v3699 = vadd.f32 %v3635, %v3682
        %v3700 = vadd.f32 %v3638, %v3682
        %v3701 = vadd.f32 %v3641, %v3682
        %v3702 = vadd.f32 %v3644, %v3682
        %v3703 = vadd.f32 %v3647, %v3682
        %v3704 = vadd.f32 %v3650, %v3682
        %v3705 = vadd.f32 %v3653, %v3682
        %v3706 = vadd.f32 %v3656, %v3682
        %v3707 = vadd.f32 %v3659, %v3682
        %v3708 = vadd.f32 %v3662, %v3682
        %v3709 = vadd.f32 %v3665, %v3682
        %v3710 = vadd.f32 %v3668, %v3682
        %v3711 = vadd.f32 %v3671, %v3682
        %v3712 = vadd.f32 %v3674, %v3682
        %v3713 = vadd.f32 %v3677, %v3682
        %v3714 = vadd.f32 %v3680, %v3682
        %vm3715 = vcmask 7168
        %3716 = vst.msk [vmem:[%s487] sm:$0xff] %vm3715, %v3683
        %3717 = vst.msk [vmem:[%s487 + $0x8] sm:$0xff] %vm3715, %v3684
        %3718 = vst.msk [vmem:[%s487 + $0x10] sm:$0xff] %vm3715, %v3685
        %3719 = vst.msk [vmem:[%s487 + $0x18] sm:$0xff] %vm3715, %v3686
        %3720 = vst.msk [vmem:[%s487 + $0x20] sm:$0xff] %vm3715, %v3687
        %3721 = vst.msk [vmem:[%s487 + $0x28] sm:$0xff] %vm3715, %v3688
        %3722 = vst.msk [vmem:[%s487 + $0x30] sm:$0xff] %vm3715, %v3689
        %3723 = vst.msk [vmem:[%s487 + $0x38] sm:$0xff] %vm3715, %v3690
        %3724 = vst.msk [vmem:[%s487 + $0x40] sm:$0xff] %vm3715, %v3691
        %3725 = vst.msk [vmem:[%s487 + $0x48] sm:$0xff] %vm3715, %v3692
        %3726 = vst.msk [vmem:[%s487 + $0x50] sm:$0xff] %vm3715, %v3693
        %3727 = vst.msk [vmem:[%s487 + $0x58] sm:$0xff] %vm3715, %v3694
        %3728 = vst.msk [vmem:[%s487 + $0x60] sm:$0xff] %vm3715, %v3695
        %3729 = vst.msk [vmem:[%s487 + $0x68] sm:$0xff] %vm3715, %v3696
        %3730 = vst.msk [vmem:[%s487 + $0x70] sm:$0xff] %vm3715, %v3697
        %3731 = vst.msk [vmem:[%s487 + $0x78] sm:$0xff] %vm3715, %v3698
        %3732 = vst.msk [vmem:[%s487 + $0x80] sm:$0xff] %vm3715, %v3699
        %3733 = vst.msk [vmem:[%s487 + $0x88] sm:$0xff] %vm3715, %v3700
        %3734 = vst.msk [vmem:[%s487 + $0x90] sm:$0xff] %vm3715, %v3701
        %3735 = vst.msk [vmem:[%s487 + $0x98] sm:$0xff] %vm3715, %v3702
        %3736 = vst.msk [vmem:[%s487 + $0xa0] sm:$0xff] %vm3715, %v3703
        %3737 = vst.msk [vmem:[%s487 + $0xa8] sm:$0xff] %vm3715, %v3704
        %3738 = vst.msk [vmem:[%s487 + $0xb0] sm:$0xff] %vm3715, %v3705
        %3739 = vst.msk [vmem:[%s487 + $0xb8] sm:$0xff] %vm3715, %v3706
        %3740 = vst.msk [vmem:[%s487 + $0xc0] sm:$0xff] %vm3715, %v3707
        %3741 = vst.msk [vmem:[%s487 + $0xc8] sm:$0xff] %vm3715, %v3708
        %3742 = vst.msk [vmem:[%s487 + $0xd0] sm:$0xff] %vm3715, %v3709
        %3743 = vst.msk [vmem:[%s487 + $0xd8] sm:$0xff] %vm3715, %v3710
        %3744 = vst.msk [vmem:[%s487 + $0xe0] sm:$0xff] %vm3715, %v3711
        %3745 = vst.msk [vmem:[%s487 + $0xe8] sm:$0xff] %vm3715, %v3712
        %3746 = vst.msk [vmem:[%s487 + $0xf0] sm:$0xff] %vm3715, %v3713
        %3747 = vst.msk [vmem:[%s487 + $0xf8] sm:$0xff] %vm3715, %v3714
        %s3748 = smul.u32 %s33, 256
        %v3749 = vlaneseq
        %v3750 = vshrl.u32 %v3749, 7
        %v3751 = vadd.s32 %v3750, 8
        %v3752 = vadd.s32 %v3750, 16
        %v3753 = vadd.s32 %v3750, 24
        %v3754 = vadd.s32 %v3750, 32
        %v3755 = vadd.s32 %v3750, 40
        %v3756 = vadd.s32 %v3750, 48
        %v3757 = vadd.s32 %v3750, 56
        %v3758 = vadd.s32 %v3750, 64
        %v3759 = vadd.s32 %v3750, 72
        %v3760 = vadd.s32 %v3750, 80
        %v3761 = vadd.s32 %v3750, 88
        %v3762 = vadd.s32 %v3750, 96
        %v3763 = vadd.s32 %v3750, 104
        %v3764 = vadd.s32 %v3750, 112
        %v3765 = vadd.s32 %v3750, 120
        %v3766 = vadd.s32 %v3750, 128
        %v3767 = vadd.s32 %v3750, 136
        %v3768 = vadd.s32 %v3750, 144
        %v3769 = vadd.s32 %v3750, 152
        %v3770 = vadd.s32 %v3750, 160
        %v3771 = vadd.s32 %v3750, 168
        %v3772 = vadd.s32 %v3750, 176
        %v3773 = vadd.s32 %v3750, 184
        %v3774 = vadd.s32 %v3750, 192
        %v3775 = vadd.s32 %v3750, 200
        %v3776 = vadd.s32 %v3750, 208
        %v3777 = vadd.s32 %v3750, 216
        %v3778 = vadd.s32 %v3750, 224
        %v3779 = vadd.s32 %v3750, 232
        %v3780 = vadd.s32 %v3750, 240
        %v3781 = vadd.s32 %v3750, 248
        %v3782 = vstv %s3748
        %v3783 = vadd.s32 %v3782, %v3750
        %v3784 = vadd.s32 %v3782, %v3751
        %v3785 = vadd.s32 %v3782, %v3752
        %v3786 = vadd.s32 %v3782, %v3753
        %v3787 = vadd.s32 %v3782, %v3754
        %v3788 = vadd.s32 %v3782, %v3755
        %v3789 = vadd.s32 %v3782, %v3756
        %v3790 = vadd.s32 %v3782, %v3757
        %v3791 = vadd.s32 %v3782, %v3758
        %v3792 = vadd.s32 %v3782, %v3759
        %v3793 = vadd.s32 %v3782, %v3760
        %v3794 = vadd.s32 %v3782, %v3761
        %v3795 = vadd.s32 %v3782, %v3762
        %v3796 = vadd.s32 %v3782, %v3763
        %v3797 = vadd.s32 %v3782, %v3764
        %v3798 = vadd.s32 %v3782, %v3765
        %v3799 = vadd.s32 %v3782, %v3766
        %v3800 = vadd.s32 %v3782, %v3767
        %v3801 = vadd.s32 %v3782, %v3768
        %v3802 = vadd.s32 %v3782, %v3769
        %v3803 = vadd.s32 %v3782, %v3770
        %v3804 = vadd.s32 %v3782, %v3771
        %v3805 = vadd.s32 %v3782, %v3772
        %v3806 = vadd.s32 %v3782, %v3773
        %v3807 = vadd.s32 %v3782, %v3774
        %v3808 = vadd.s32 %v3782, %v3775
        %v3809 = vadd.s32 %v3782, %v3776
        %v3810 = vadd.s32 %v3782, %v3777
        %v3811 = vadd.s32 %v3782, %v3778
        %v3812 = vadd.s32 %v3782, %v3779
        %v3813 = vadd.s32 %v3782, %v3780
        %v3814 = vadd.s32 %v3782, %v3781
        %s3815 = sld [smem:[#allocation5]]
        %v3816 = vstv %s3815
        %vm3817 = vcmp.lt.s32.totalorder %v3783, %v3816
        %vm3818 = vcmp.lt.s32.totalorder %v3784, %v3816
        %vm3819 = vcmp.lt.s32.totalorder %v3785, %v3816
        %vm3820 = vcmp.lt.s32.totalorder %v3786, %v3816
        %vm3821 = vcmp.lt.s32.totalorder %v3787, %v3816
        %vm3822 = vcmp.lt.s32.totalorder %v3788, %v3816
        %vm3823 = vcmp.lt.s32.totalorder %v3789, %v3816
        %vm3824 = vcmp.lt.s32.totalorder %v3790, %v3816
        %vm3825 = vcmp.lt.s32.totalorder %v3791, %v3816
        %vm3826 = vcmp.lt.s32.totalorder %v3792, %v3816
        %vm3827 = vcmp.lt.s32.totalorder %v3793, %v3816
        %vm3828 = vcmp.lt.s32.totalorder %v3794, %v3816
        %vm3829 = vcmp.lt.s32.totalorder %v3795, %v3816
        %vm3830 = vcmp.lt.s32.totalorder %v3796, %v3816
        %vm3831 = vcmp.lt.s32.totalorder %v3797, %v3816
        %vm3832 = vcmp.lt.s32.totalorder %v3798, %v3816
        %vm3833 = vcmp.lt.s32.totalorder %v3799, %v3816
        %vm3834 = vcmp.lt.s32.totalorder %v3800, %v3816
        %vm3835 = vcmp.lt.s32.totalorder %v3801, %v3816
        %vm3836 = vcmp.lt.s32.totalorder %v3802, %v3816
        %vm3837 = vcmp.lt.s32.totalorder %v3803, %v3816
        %vm3838 = vcmp.lt.s32.totalorder %v3804, %v3816
        %vm3839 = vcmp.lt.s32.totalorder %v3805, %v3816
        %vm3840 = vcmp.lt.s32.totalorder %v3806, %v3816
        %vm3841 = vcmp.lt.s32.totalorder %v3807, %v3816
        %vm3842 = vcmp.lt.s32.totalorder %v3808, %v3816
        %vm3843 = vcmp.lt.s32.totalorder %v3809, %v3816
        %vm3844 = vcmp.lt.s32.totalorder %v3810, %v3816
        %vm3845 = vcmp.lt.s32.totalorder %v3811, %v3816
        %vm3846 = vcmp.lt.s32.totalorder %v3812, %v3816
        %vm3847 = vcmp.lt.s32.totalorder %v3813, %v3816
        %vm3848 = vcmp.lt.s32.totalorder %v3814, %v3816
        %v3849 = vsel %vm3817, %v3683, -1e+30
        %v3850 = vsel %vm3818, %v3684, -1e+30
        %v3851 = vsel %vm3819, %v3685, -1e+30
        %v3852 = vsel %vm3820, %v3686, -1e+30
        %v3853 = vsel %vm3821, %v3687, -1e+30
        %v3854 = vsel %vm3822, %v3688, -1e+30
        %v3855 = vsel %vm3823, %v3689, -1e+30
        %v3856 = vsel %vm3824, %v3690, -1e+30
        %v3857 = vsel %vm3825, %v3691, -1e+30
        %v3858 = vsel %vm3826, %v3692, -1e+30
        %v3859 = vsel %vm3827, %v3693, -1e+30
        %v3860 = vsel %vm3828, %v3694, -1e+30
        %v3861 = vsel %vm3829, %v3695, -1e+30
        %v3862 = vsel %vm3830, %v3696, -1e+30
        %v3863 = vsel %vm3831, %v3697, -1e+30
        %v3864 = vsel %vm3832, %v3698, -1e+30
        %v3865 = vsel %vm3833, %v3699, -1e+30
        %v3866 = vsel %vm3834, %v3700, -1e+30
        %v3867 = vsel %vm3835, %v3701, -1e+30
        %v3868 = vsel %vm3836, %v3702, -1e+30
        %v3869 = vsel %vm3837, %v3703, -1e+30
        %v3870 = vsel %vm3838, %v3704, -1e+30
        %v3871 = vsel %vm3839, %v3705, -1e+30
        %v3872 = vsel %vm3840, %v3706, -1e+30
        %v3873 = vsel %vm3841, %v3707, -1e+30
        %v3874 = vsel %vm3842, %v3708, -1e+30
        %v3875 = vsel %vm3843, %v3709, -1e+30
        %v3876 = vsel %vm3844, %v3710, -1e+30
        %v3877 = vsel %vm3845, %v3711, -1e+30
        %v3878 = vsel %vm3846, %v3712, -1e+30
        %v3879 = vsel %vm3847, %v3713, -1e+30
        %v3880 = vsel %vm3848, %v3714, -1e+30
        %v3881 = vmax.f32 %v3849, %v3853
        %v3882 = vmax.f32 %v3850, %v3854
        %v3883 = vmax.f32 %v3851, %v3855
        %v3884 = vmax.f32 %v3852, %v3856
        %v3885 = vmax.f32 %v3881, %v3857
        %v3886 = vmax.f32 %v3882, %v3858
        %v3887 = vmax.f32 %v3883, %v3859
        %v3888 = vmax.f32 %v3884, %v3860
        %v3889 = vmax.f32 %v3885, %v3861
        %v3890 = vmax.f32 %v3886, %v3862
        %v3891 = vmax.f32 %v3887, %v3863
        %v3892 = vmax.f32 %v3888, %v3864
        %v3893 = vmax.f32 %v3889, %v3865
        %v3894 = vmax.f32 %v3890, %v3866
        %v3895 = vmax.f32 %v3891, %v3867
        %v3896 = vmax.f32 %v3892, %v3868
        %v3897 = vmax.f32 %v3893, %v3869
        %v3898 = vmax.f32 %v3894, %v3870
        %v3899 = vmax.f32 %v3895, %v3871
        %v3900 = vmax.f32 %v3896, %v3872
        %v3901 = vmax.f32 %v3897, %v3873
        %v3902 = vmax.f32 %v3898, %v3874
        %v3903 = vmax.f32 %v3899, %v3875
        %v3904 = vmax.f32 %v3900, %v3876
        %v3905 = vmax.f32 %v3901, %v3877
        %v3906 = vmax.f32 %v3902, %v3878
        %v3907 = vmax.f32 %v3903, %v3879
        %v3908 = vmax.f32 %v3904, %v3880
        %v3909 = vmax.f32 %v3905, %v3906
        %v3910 = vmax.f32 %v3907, %v3908
        %v3911 = vmax.f32 %v3909, %v3910
        %v3912 = vrot.slane %v3911, 4
        %v3913 = vmax.f32 %v3911, %v3912
        %v3914 = vrot.slane %v3913, 2
        %v3915 = vmax.f32 %v3913, %v3914
        %v3916 = vrot.slane %v3915, 1
        %v3917 = vmax.f32 %v3915, %v3916
        %v3918 = vld [vmem:[#allocation2] sm:$0x1]
        %v3919 = vmax.f32 %v3918, %v3917
        %v3920 = vsub.f32 %v3918, %v3919
        %v3921 = vmul.f32 %v3920, 1.442695
        %v3922 = vpow.pop %v3921
        %v3924 = vperm.slane %v3919, 0
        %v3926 = vsub.f32 %v3849, %v3924
        %v3927 = vsub.f32 %v3850, %v3924
        %v3928 = vsub.f32 %v3851, %v3924
        %v3929 = vsub.f32 %v3852, %v3924
        %v3930 = vsub.f32 %v3853, %v3924
        %v3931 = vsub.f32 %v3854, %v3924
        %v3932 = vsub.f32 %v3855, %v3924
        %v3933 = vsub.f32 %v3856, %v3924
        %v3934 = vsub.f32 %v3857, %v3924
        %v3935 = vsub.f32 %v3858, %v3924
        %v3936 = vsub.f32 %v3859, %v3924
        %v3937 = vsub.f32 %v3860, %v3924
        %v3938 = vsub.f32 %v3861, %v3924
        %v3939 = vsub.f32 %v3862, %v3924
        %v3940 = vsub.f32 %v3863, %v3924
        %v3941 = vsub.f32 %v3864, %v3924
        %v3942 = vsub.f32 %v3865, %v3924
        %v3943 = vsub.f32 %v3866, %v3924
        %v3944 = vsub.f32 %v3867, %v3924
        %v3945 = vsub.f32 %v3868, %v3924
        %v3946 = vsub.f32 %v3869, %v3924
        %v3947 = vsub.f32 %v3870, %v3924
        %v3948 = vsub.f32 %v3871, %v3924
        %v3949 = vsub.f32 %v3872, %v3924
        %v3950 = vsub.f32 %v3873, %v3924
        %v3951 = vsub.f32 %v3874, %v3924
        %v3952 = vsub.f32 %v3875, %v3924
        %v3953 = vsub.f32 %v3876, %v3924
        %v3954 = vsub.f32 %v3877, %v3924
        %v3955 = vsub.f32 %v3878, %v3924
        %v3956 = vsub.f32 %v3879, %v3924
        %v3957 = vsub.f32 %v3880, %v3924
        %v3958 = vmul.f32 %v3926, 1.442695
        %v3959 = vpow.pop %v3958
        %v3960 = vmul.f32 %v3927, 1.442695
        %v3961 = vpow.pop %v3960
        %v3962 = vmul.f32 %v3928, 1.442695
        %v3963 = vpow.pop %v3962
        %v3964 = vmul.f32 %v3929, 1.442695
        %v3965 = vpow.pop %v3964
        %v3966 = vmul.f32 %v3930, 1.442695
        %v3967 = vpow.pop %v3966
        %v3968 = vmul.f32 %v3931, 1.442695
        %v3969 = vpow.pop %v3968
        %v3970 = vmul.f32 %v3932, 1.442695
        %v3971 = vpow.pop %v3970
        %v3972 = vmul.f32 %v3933, 1.442695
        %v3973 = vpow.pop %v3972
        %v3974 = vmul.f32 %v3934, 1.442695
        %v3975 = vpow.pop %v3974
        %v3976 = vmul.f32 %v3935, 1.442695
        %v3977 = vpow.pop %v3976
        %v3978 = vmul.f32 %v3936, 1.442695
        %v3979 = vpow.pop %v3978
        %v3980 = vmul.f32 %v3937, 1.442695
        %v3981 = vpow.pop %v3980
        %v3982 = vmul.f32 %v3938, 1.442695
        %v3983 = vpow.pop %v3982
        %v3984 = vmul.f32 %v3939, 1.442695
        %v3985 = vpow.pop %v3984
        %v3986 = vmul.f32 %v3940, 1.442695
        %v3987 = vpow.pop %v3986
        %v3988 = vmul.f32 %v3941, 1.442695
        %v3989 = vpow.pop %v3988
        %v3990 = vmul.f32 %v3942, 1.442695
        %v3991 = vpow.pop %v3990
        %v3992 = vmul.f32 %v3943, 1.442695
        %v3993 = vpow.pop %v3992
        %v3994 = vmul.f32 %v3944, 1.442695
        %v3995 = vpow.pop %v3994
        %v3996 = vmul.f32 %v3945, 1.442695
        %v3997 = vpow.pop %v3996
        %v3998 = vmul.f32 %v3946, 1.442695
        %v3999 = vpow.pop %v3998
        %v4000 = vmul.f32 %v3947, 1.442695
        %v4001 = vpow.pop %v4000
        %v4002 = vmul.f32 %v3948, 1.442695
        %v4003 = vpow.pop %v4002
        %v4004 = vmul.f32 %v3949, 1.442695
        %v4005 = vpow.pop %v4004
        %v4006 = vmul.f32 %v3950, 1.442695
        %v4007 = vpow.pop %v4006
        %v4008 = vmul.f32 %v3951, 1.442695
        %v4009 = vpow.pop %v4008
        %v4010 = vmul.f32 %v3952, 1.442695
        %v4011 = vpow.pop %v4010
        %v4012 = vmul.f32 %v3953, 1.442695
        %v4013 = vpow.pop %v4012
        %v4014 = vmul.f32 %v3954, 1.442695
        %v4015 = vpow.pop %v4014
        %v4016 = vmul.f32 %v3955, 1.442695
        %v4017 = vpow.pop %v4016
        %v4018 = vmul.f32 %v3956, 1.442695
        %v4019 = vpow.pop %v4018
        %v4020 = vmul.f32 %v3957, 1.442695
        %v4021 = vpow.pop %v4020
        %v4022 = vld [vmem:[#allocation3] sm:$0x1]
        %v4023 = vmul.f32 %v3922, %v4022
        %v4024 = vsel %vm3715, %v3959, 0.0
        %v4025 = vsel %vm3715, %v3961, 0.0
        %v4026 = vadd.f32 %v4024, %v4025
        %v4027 = vsel %vm3715, %v3963, 0.0
        %v4028 = vadd.f32 %v4026, %v4027
        %v4029 = vsel %vm3715, %v3965, 0.0
        %v4030 = vadd.f32 %v4028, %v4029
        %v4031 = vsel %vm3715, %v3967, 0.0
        %v4032 = vadd.f32 %v4030, %v4031
        %v4033 = vsel %vm3715, %v3969, 0.0
        %v4034 = vadd.f32 %v4032, %v4033
        %v4035 = vsel %vm3715, %v3971, 0.0
        %v4036 = vadd.f32 %v4034, %v4035
        %v4037 = vsel %vm3715, %v3973, 0.0
        %v4038 = vadd.f32 %v4036, %v4037
        %v4039 = vsel %vm3715, %v3975, 0.0
        %v4040 = vadd.f32 %v4038, %v4039
        %v4041 = vsel %vm3715, %v3977, 0.0
        %v4042 = vadd.f32 %v4040, %v4041
        %v4043 = vsel %vm3715, %v3979, 0.0
        %v4044 = vadd.f32 %v4042, %v4043
        %v4045 = vsel %vm3715, %v3981, 0.0
        %v4046 = vadd.f32 %v4044, %v4045
        %v4047 = vsel %vm3715, %v3983, 0.0
        %v4048 = vadd.f32 %v4046, %v4047
        %v4049 = vsel %vm3715, %v3985, 0.0
        %v4050 = vadd.f32 %v4048, %v4049
        %v4051 = vsel %vm3715, %v3987, 0.0
        %v4052 = vadd.f32 %v4050, %v4051
        %v4053 = vsel %vm3715, %v3989, 0.0
        %v4054 = vadd.f32 %v4052, %v4053
        %v4055 = vsel %vm3715, %v3991, 0.0
        %v4056 = vadd.f32 %v4054, %v4055
        %v4057 = vsel %vm3715, %v3993, 0.0
        %v4058 = vadd.f32 %v4056, %v4057
        %v4059 = vsel %vm3715, %v3995, 0.0
        %v4060 = vadd.f32 %v4058, %v4059
        %v4061 = vsel %vm3715, %v3997, 0.0
        %v4062 = vadd.f32 %v4060, %v4061
        %v4063 = vsel %vm3715, %v3999, 0.0
        %v4064 = vadd.f32 %v4062, %v4063
        %v4065 = vsel %vm3715, %v4001, 0.0
        %v4066 = vadd.f32 %v4064, %v4065
        %v4067 = vsel %vm3715, %v4003, 0.0
        %v4068 = vadd.f32 %v4066, %v4067
        %v4069 = vsel %vm3715, %v4005, 0.0
        %v4070 = vadd.f32 %v4068, %v4069
        %v4071 = vsel %vm3715, %v4007, 0.0
        %v4072 = vadd.f32 %v4070, %v4071
        %v4073 = vsel %vm3715, %v4009, 0.0
        %v4074 = vadd.f32 %v4072, %v4073
        %v4075 = vsel %vm3715, %v4011, 0.0
        %v4076 = vadd.f32 %v4074, %v4075
        %v4077 = vsel %vm3715, %v4013, 0.0
        %v4078 = vadd.f32 %v4076, %v4077
        %v4079 = vsel %vm3715, %v4015, 0.0
        %v4080 = vadd.f32 %v4078, %v4079
        %v4081 = vsel %vm3715, %v4017, 0.0
        %v4082 = vadd.f32 %v4080, %v4081
        %v4083 = vsel %vm3715, %v4019, 0.0
        %v4084 = vadd.f32 %v4082, %v4083
        %v4085 = vsel %vm3715, %v4021, 0.0
        %v4086 = vadd.f32 %v4084, %v4085
        %v4087 = vrot.slane %v4086, 4
        %v4088 = vadd.f32 %v4086, %v4087
        %v4089 = vrot.slane %v4088, 2
        %v4090 = vadd.f32 %v4088, %v4089
        %v4091 = vrot.slane %v4090, 1
        %v4092 = vadd.f32 %v4090, %v4091
        %v4093 = vadd.f32 %v4023, %v4092
        %vm4094 = vcmask 0
        %4095 = vst.msk [vmem:[#allocation3] sm:$0x1] %vm4094, %v4093
        %v4096 = vld [vmem:[#allocation4] sm:$0x1]
        %4098 = vset.pattern.permute.xlu0 0
        %4099 = vperm.xlu0 %4098, %v3922
        %v4100 = vpop.permute.xlu0 %4099
        %v4102 = vperm.slane %v4100, 0
        %v4103 = vmul.f32 %v4102, %v4096
        %4105 = vset.pattern.permute.xlu0 0
        %4106 = vperm.xlu0 %4105, %v3959
        %v4107 = vpop.permute.xlu0 %4106
        %4110 = vset.pattern.permute.xlu0 0
        %4111 = vperm.xlu0 %4110, %v3961
        %v4112 = vpop.permute.xlu0 %4111
        %4115 = vset.pattern.permute.xlu0 0
        %4116 = vperm.xlu0 %4115, %v3963
        %v4117 = vpop.permute.xlu0 %4116
        %4120 = vset.pattern.permute.xlu0 0
        %4121 = vperm.xlu0 %4120, %v3965
        %v4122 = vpop.permute.xlu0 %4121
        %4125 = vset.pattern.permute.xlu0 0
        %4126 = vperm.xlu0 %4125, %v3967
        %v4127 = vpop.permute.xlu0 %4126
        %4130 = vset.pattern.permute.xlu0 0
        %4131 = vperm.xlu0 %4130, %v3969
        %v4132 = vpop.permute.xlu0 %4131
        %4135 = vset.pattern.permute.xlu0 0
        %4136 = vperm.xlu0 %4135, %v3971
        %v4137 = vpop.permute.xlu0 %4136
        %4140 = vset.pattern.permute.xlu0 0
        %4141 = vperm.xlu0 %4140, %v3973
        %v4142 = vpop.permute.xlu0 %4141
        %4145 = vset.pattern.permute.xlu0 0
        %4146 = vperm.xlu0 %4145, %v3975
        %v4147 = vpop.permute.xlu0 %4146
        %4150 = vset.pattern.permute.xlu0 0
        %4151 = vperm.xlu0 %4150, %v3977
        %v4152 = vpop.permute.xlu0 %4151
        %4155 = vset.pattern.permute.xlu0 0
        %4156 = vperm.xlu0 %4155, %v3979
        %v4157 = vpop.permute.xlu0 %4156
        %4160 = vset.pattern.permute.xlu0 0
        %4161 = vperm.xlu0 %4160, %v3981
        %v4162 = vpop.permute.xlu0 %4161
        %4165 = vset.pattern.permute.xlu0 0
        %4166 = vperm.xlu0 %4165, %v3983
        %v4167 = vpop.permute.xlu0 %4166
        %4170 = vset.pattern.permute.xlu0 0
        %4171 = vperm.xlu0 %4170, %v3985
        %v4172 = vpop.permute.xlu0 %4171
        %4175 = vset.pattern.permute.xlu0 0
        %4176 = vperm.xlu0 %4175, %v3987
        %v4177 = vpop.permute.xlu0 %4176
        %4180 = vset.pattern.permute.xlu0 0
        %4181 = vperm.xlu0 %4180, %v3989
        %v4182 = vpop.permute.xlu0 %4181
        %4185 = vset.pattern.permute.xlu0 0
        %4186 = vperm.xlu0 %4185, %v3991
        %v4187 = vpop.permute.xlu0 %4186
        %4190 = vset.pattern.permute.xlu0 0
        %4191 = vperm.xlu0 %4190, %v3993
        %v4192 = vpop.permute.xlu0 %4191
        %4195 = vset.pattern.permute.xlu0 0
        %4196 = vperm.xlu0 %4195, %v3995
        %v4197 = vpop.permute.xlu0 %4196
        %4200 = vset.pattern.permute.xlu0 0
        %4201 = vperm.xlu0 %4200, %v3997
        %v4202 = vpop.permute.xlu0 %4201
        %4205 = vset.pattern.permute.xlu0 0
        %4206 = vperm.xlu0 %4205, %v3999
        %v4207 = vpop.permute.xlu0 %4206
        %4210 = vset.pattern.permute.xlu0 0
        %4211 = vperm.xlu0 %4210, %v4001
        %v4212 = vpop.permute.xlu0 %4211
        %4215 = vset.pattern.permute.xlu0 0
        %4216 = vperm.xlu0 %4215, %v4003
        %v4217 = vpop.permute.xlu0 %4216
        %4220 = vset.pattern.permute.xlu0 0
        %4221 = vperm.xlu0 %4220, %v4005
        %v4222 = vpop.permute.xlu0 %4221
        %4225 = vset.pattern.permute.xlu0 0
        %4226 = vperm.xlu0 %4225, %v4007
        %v4227 = vpop.permute.xlu0 %4226
        %4230 = vset.pattern.permute.xlu0 0
        %4231 = vperm.xlu0 %4230, %v4009
        %v4232 = vpop.permute.xlu0 %4231
        %4235 = vset.pattern.permute.xlu0 0
        %4236 = vperm.xlu0 %4235, %v4011
        %v4237 = vpop.permute.xlu0 %4236
        %4240 = vset.pattern.permute.xlu0 0
        %4241 = vperm.xlu0 %4240, %v4013
        %v4242 = vpop.permute.xlu0 %4241
        %4245 = vset.pattern.permute.xlu0 0
        %4246 = vperm.xlu0 %4245, %v4015
        %v4247 = vpop.permute.xlu0 %4246
        %4250 = vset.pattern.permute.xlu0 0
        %4251 = vperm.xlu0 %4250, %v4017
        %v4252 = vpop.permute.xlu0 %4251
        %4255 = vset.pattern.permute.xlu0 0
        %4256 = vperm.xlu0 %4255, %v4019
        %v4257 = vpop.permute.xlu0 %4256
        %4260 = vset.pattern.permute.xlu0 0
        %4261 = vperm.xlu0 %4260, %v4021
        %v4262 = vpop.permute.xlu0 %4261
        %v4264 = vmul.f32 %v4107, %v2494
        %v4265 = vmul.f32 %v4112, %v2495
        %v4266 = vmul.f32 %v4117, %v2496
        %v4267 = vmul.f32 %v4122, %v2497
        %v4268 = vmul.f32 %v4127, %v2498
        %v4269 = vmul.f32 %v4132, %v2499
        %v4270 = vmul.f32 %v4137, %v2500
        %v4271 = vmul.f32 %v4142, %v2501
        %v4272 = vmul.f32 %v4147, %v2502
        %v4273 = vmul.f32 %v4152, %v2503
        %v4274 = vmul.f32 %v4157, %v2504
        %v4275 = vmul.f32 %v4162, %v2505
        %v4276 = vmul.f32 %v4167, %v2506
        %v4277 = vmul.f32 %v4172, %v2507
        %v4278 = vmul.f32 %v4177, %v2508
        %v4279 = vmul.f32 %v4182, %v2509
        %v4280 = vmul.f32 %v4187, %v2510
        %v4281 = vmul.f32 %v4192, %v2511
        %v4282 = vmul.f32 %v4197, %v2512
        %v4283 = vmul.f32 %v4202, %v2513
        %v4284 = vmul.f32 %v4207, %v2514
        %v4285 = vmul.f32 %v4212, %v2515
        %v4286 = vmul.f32 %v4217, %v2516
        %v4287 = vmul.f32 %v4222, %v2517
        %v4288 = vmul.f32 %v4227, %v2518
        %v4289 = vmul.f32 %v4232, %v2519
        %v4290 = vmul.f32 %v4237, %v2520
        %v4291 = vmul.f32 %v4242, %v2521
        %v4292 = vmul.f32 %v4247, %v2522
        %v4293 = vmul.f32 %v4252, %v2523
        %v4294 = vmul.f32 %v4257, %v2524
        %v4295 = vmul.f32 %v4262, %v2525
        %v4296 = vsel %vm2538, %v4264, 0.0
        %v4297 = vsel %vm2538, %v4265, 0.0
        %v4298 = vadd.f32 %v4296, %v4297
        %v4299 = vsel %vm2538, %v4266, 0.0
        %v4300 = vadd.f32 %v4298, %v4299
        %v4301 = vsel %vm2538, %v4267, 0.0
        %v4302 = vadd.f32 %v4300, %v4301
        %v4303 = vsel %vm2538, %v4268, 0.0
        %v4304 = vadd.f32 %v4302, %v4303
        %v4305 = vsel %vm2538, %v4269, 0.0
        %v4306 = vadd.f32 %v4304, %v4305
        %v4307 = vsel %vm2538, %v4270, 0.0
        %v4308 = vadd.f32 %v4306, %v4307
        %v4309 = vsel %vm2538, %v4271, 0.0
        %v4310 = vadd.f32 %v4308, %v4309
        %v4311 = vsel %vm2538, %v4272, 0.0
        %v4312 = vadd.f32 %v4310, %v4311
        %v4313 = vsel %vm2538, %v4273, 0.0
        %v4314 = vadd.f32 %v4312, %v4313
        %v4315 = vsel %vm2538, %v4274, 0.0
        %v4316 = vadd.f32 %v4314, %v4315
        %v4317 = vsel %vm2538, %v4275, 0.0
        %v4318 = vadd.f32 %v4316, %v4317
        %v4319 = vsel %vm2538, %v4276, 0.0
        %v4320 = vadd.f32 %v4318, %v4319
        %v4321 = vsel %vm2538, %v4277, 0.0
        %v4322 = vadd.f32 %v4320, %v4321
        %v4323 = vsel %vm2538, %v4278, 0.0
        %v4324 = vadd.f32 %v4322, %v4323
        %v4325 = vsel %vm2538, %v4279, 0.0
        %v4326 = vadd.f32 %v4324, %v4325
        %v4327 = vsel %vm2538, %v4280, 0.0
        %v4328 = vadd.f32 %v4326, %v4327
        %v4329 = vsel %vm2538, %v4281, 0.0
        %v4330 = vadd.f32 %v4328, %v4329
        %v4331 = vsel %vm2538, %v4282, 0.0
        %v4332 = vadd.f32 %v4330, %v4331
        %v4333 = vsel %vm2538, %v4283, 0.0
        %v4334 = vadd.f32 %v4332, %v4333
        %v4335 = vsel %vm2538, %v4284, 0.0
        %v4336 = vadd.f32 %v4334, %v4335
        %v4337 = vsel %vm2538, %v4285, 0.0
        %v4338 = vadd.f32 %v4336, %v4337
        %v4339 = vsel %vm2538, %v4286, 0.0
        %v4340 = vadd.f32 %v4338, %v4339
        %v4341 = vsel %vm2538, %v4287, 0.0
        %v4342 = vadd.f32 %v4340, %v4341
        %v4343 = vsel %vm2538, %v4288, 0.0
        %v4344 = vadd.f32 %v4342, %v4343
        %v4345 = vsel %vm2538, %v4289, 0.0
        %v4346 = vadd.f32 %v4344, %v4345
        %v4347 = vsel %vm2538, %v4290, 0.0
        %v4348 = vadd.f32 %v4346, %v4347
        %v4349 = vsel %vm2538, %v4291, 0.0
        %v4350 = vadd.f32 %v4348, %v4349
        %v4351 = vsel %vm2538, %v4292, 0.0
        %v4352 = vadd.f32 %v4350, %v4351
        %v4353 = vsel %vm2538, %v4293, 0.0
        %v4354 = vadd.f32 %v4352, %v4353
        %v4355 = vsel %vm2538, %v4294, 0.0
        %v4356 = vadd.f32 %v4354, %v4355
        %v4357 = vsel %vm2538, %v4295, 0.0
        %v4358 = vadd.f32 %v4356, %v4357
        %v4359 = vrot.slane %v4358, 4
        %v4360 = vadd.f32 %v4358, %v4359
        %v4361 = vrot.slane %v4360, 2
        %v4362 = vadd.f32 %v4360, %v4361
        %v4363 = vrot.slane %v4362, 1
        %v4364 = vadd.f32 %v4362, %v4363
        %v4365 = vadd.f32 %v4103, %v4364
        %vm4366 = vcmask 516096
        %4367 = vst.msk [vmem:[#allocation4] sm:$0x1] %vm4366, %v4365
        %4368 = vst.msk [vmem:[#allocation2] sm:$0x1] %vm4094, %v3919
        %p4369 = scmp.eq.s32.totalorder %s33, 3
        // Predicated region
        $region89: #{tpu_custom_call.1} parent=59 // pred_check
          %p4370 = pneg %p4369
        $region90: #{tpu_custom_call.1} parent=59 // pred_check_branch
          %4372 = sbr.rel (%p4370) target = $region92
        $region91: #{tpu_custom_call.1} parent=59 // pred_region
          %v4373 = vld [vmem:[#allocation4] sm:$0x1]
          %v4374 = vld [vmem:[#allocation3] sm:$0x1]
          %4376 = vset.pattern.permute.xlu0 0
          %4377 = vperm.xlu0 %4376, %v4374
          %v4378 = vpop.permute.xlu0 %4377
          %v4380 = vperm.slane %v4378, 0
          %v4381 = vrcp.pop %v4380
          %v4382 = vmul.f32 %v4380, %v4381
          %v4383 = vsub.f32 1.0, %v4382
          %v4384 = vmul.f32 %v4381, %v4383
          %v4385 = vadd.f32 %v4381, %v4384
          %vm4386 = vweird.f32 %v4380
          %vm4387 = vweird.f32 %v4381
          %vm4388 = vmor %vm4386, %vm4387
          %v4389 = vsel %vm4388, %v4381, %v4385
          %v4390 = vand.u32 2147483647, %v4380
          %vm4391 = vcmp.eq.f32.partialorder %v4390, 8.507059e+37
          %v4392 = vand.u32 %v4380, 2147483648
          %v4393 = vor.u32 1.1754944e-38, %v4392
          %v4394 = vsel %vm4391, %v4393, %v4389
          %v4395 = vmul.f32 %v4373, %v4394
          %v4396 = vld [vmem:[#allocation17] sm:$0x1]
          %v4397 = vmul.f32 %v4395, %v4396
          %v4398 = vsel %vm4366, %v4397, 0.0
          %4399 = vadd.xlane.f32.xlu0 %v4398
          %v4400 = vpop.xlane.xlu0 %4399
          %s4401 = sld [smem:[#allocation7]]
          %v4402 = vstv %s4401
          %v4403 = vadd.f32 %v4400, %v4402
          %4404 = vst.msk [vmem:[#allocation19] sm:$0x1] %vm4094, %v4403
        $region92: #{tpu_custom_call.1} parent=59 // pred_fallthru
          _
        %s4405 = smul.u32 32, %s33
        %p4406 = scmp.lt.s32.totalorder %s4405, 127
        %s4407 = scalar_select %p4406, %s4405, 127
        %s4408 = smul.addr %s4407, 8
        %s4409 = scalar_lea.vmem %s11, %s4408
        // Predicated region
        $region93: #{tpu_custom_call.1} parent=59 // pred_check
          %p4410 = pneg %p261
        $region94: #{tpu_custom_call.1} parent=59 // pred_check_branch
          %4412 = sbr.rel (%p4410) target = $region96
        $region95: #{tpu_custom_call.1} parent=59 // pred_region
          %4414 = vsyncadd [#allocation10], 0
          %s4416 = sshll.u32 [#allocation19], 4
          %s4417 = int_to_ptr.vmem [resolvable:$true] %s4416
          %s4418 = sshll.u32 %s10, 4
          %s4419 = int_to_ptr.hbm [resolvable:$true] %s4418
          %4421 = dma.vmem_to_hbm [thread:$0]  %s4417, 16, %s4419, [#allocation10]
        $region96: #{tpu_custom_call.1} parent=59 // pred_fallthru
          _
        // Predicated region
        $region97: #{tpu_custom_call.1} parent=59 // pred_check
          %p4422 = pneg %p287
        $region98: #{tpu_custom_call.1} parent=59 // pred_check_branch
          %4424 = sbr.rel (%p4422) target = $region100
        $region99: #{tpu_custom_call.1} parent=59 // pred_region
          %s4425 = smul.u32 32, %s33
        $region100: #{tpu_custom_call.1} parent=59 // pred_fallthru
          _
        // Predicated region
        $region101: #{tpu_custom_call.1} parent=59 // pred_check
          %p4426 = pneg %p261
        $region102: #{tpu_custom_call.1} parent=59 // pred_check_branch
          %4428 = sbr.rel (%p4426) target = $region104
        $region103: #{tpu_custom_call.1} parent=59 // pred_region
          %4430 = dma.done [#allocation10], 16
        $region104: #{tpu_custom_call.1} parent=59 // pred_fallthru
          _
      $region60: #{tpu_custom_call.1} parent=5 // pred_fallthru
        _
      %p4431 = scmp.le.s32.totalorder 2, %s28
      // Predicated region
      $region105: #{tpu_custom_call.1} parent=5 // pred_check
        %p4432 = pneg %p4431
      $region106: #{tpu_custom_call.1} parent=5 // pred_check_branch
        %4434 = sbr.rel (%p4432) target = $region108
      $region107: #{tpu_custom_call.1} parent=5 // pred_region
        %s4435 = ssub.s32 %s28, 2
        // Predicated region
        $region109: #{tpu_custom_call.1} parent=107 // pred_check
          %p4436 = pneg %p293
        $region110: #{tpu_custom_call.1} parent=107 // pred_check_branch
          %4438 = sbr.rel (%p4436) target = $region112
        $region111: #{tpu_custom_call.1} parent=107 // pred_region
          %s4439 = smul.u32 32, %s34
          %p4440 = scmp.lt.s32.totalorder %s4439, 127
          %s4441 = scalar_select %p4440, %s4439, 127
          %s4442 = smul.addr %s4441, 8
          %s4443 = scalar_lea.vmem %s11, %s4442
        $region112: #{tpu_custom_call.1} parent=107 // pred_fallthru
          _
      $region108: #{tpu_custom_call.1} parent=5 // pred_fallthru
        _
    $region6: #{tpu_custom_call.1} parent=1 // loop_footer
      %s32 = sadd.s32 1, %s28
    $region7: #{tpu_custom_call.1} parent=1 // loop_footer_branch
      %27 = sbr.rel target = $region3
    $region8: #{tpu_custom_call.1} parent=1 // loop_exit
      _
    %4444 = vsyncpa [#allocation9], 1
    %s4445 = scalar_lea.sflag [#allocation9], 1
    %4446 = vsyncpa %s4445, 1
    %4447 = vsyncpa [#allocation12], 1
    %4448 = vsyncpa [#allocation15], 1
    %4449 = vsyncpa [#allocation18], 1
    %4450 = vsyncpa [#allocation10], 1
    %s4451 = scalar_lea.sflag [#allocation10], 1
    %4452 = vsyncpa %s4451, 1

</llo_original>
